<compile_context>
chip_gen: v7x
topology: tpu7x:2x2x1
jax: 0.10.0
libtpu: 0.0.40
codegen_flags: <defaults>
</compile_context>

<pallas_src>
import jax
import jax.numpy as jnp
from jax.experimental import pallas as pl
from jax.experimental.pallas import tpu as pltpu

N = 5
R = 100.0
BATCH = 5
LMBD = 0.5
NJU = 0.99

# True (PyTorch) dims and lane-padded dims.
D_IN = N * 3                       # 15
D_H1, D_H1_P = N * 20, 128         # 100 -> 128
D_H2, D_H2_P = N * 40, 256         # 200 -> 256
D_H3 = 2048
D_OUT, D_OUT_P = N, 128            # 5 -> 128 (zero cols, masked in softmax)

# Packed f32 vector: [b1 | b2 | b3 | b4 | s3 | s4]; every segment and every
# offset is a multiple of 128 lanes.
OFF_B1 = 0
OFF_B2 = OFF_B1 + D_H1_P           # 128
OFF_B3 = OFF_B2 + D_H2_P           # 384
OFF_B4 = OFF_B3 + D_H3             # 2432
OFF_S3 = OFF_B4 + D_OUT_P          # 2560
OFF_S4 = OFF_S3 + D_H3             # 4608
VEC_LEN = OFF_S4 + D_OUT_P         # 4736

ROW_BLOCK = 1024                   # max rows per gridded block / small-path cap
VMEM_LIMIT = 40 * 1024 * 1024      # explicit scoped-VMEM limit (v5e default=16MiB)


def _mlp_body(x_f32, w1, w2, w3, w4, vec_ref, o_ref):
    """Shared MLP+softmax body. w1..w4 are bf16 arrays; biases live in vec_ref."""
    b1 = vec_ref[:, OFF_B1:OFF_B1 + D_H1_P]
    b2 = vec_ref[:, OFF_B2:OFF_B2 + D_H2_P]
    b3 = vec_ref[:, OFF_B3:OFF_B3 + D_H3]
    b4 = vec_ref[:, OFF_B4:OFF_B4 + D_OUT_P]

    x = x_f32.astype(jnp.bfloat16)
    h = jnp.dot(x, w1, preferred_element_type=jnp.float32) + b1
    h = jnp.maximum(h, 0.0).astype(jnp.bfloat16)

    h = jnp.dot(h, w2, preferred_element_type=jnp.float32) + b2
    h = jnp.maximum(h, 0.0).astype(jnp.bfloat16)

    h = jnp.dot(h, w3, preferred_element_type=jnp.float32) + b3
    # Layer-3 epilogue in bf16 (ReLU is exact in bf16): halves VALU work and
    # VMEM footprint on the widest (rows, 2048) intermediate.
    h = jnp.maximum(h.astype(jnp.bfloat16), 0.0)

    logits = jnp.dot(h, w4, preferred_element_type=jnp.float32) + b4

    # Mask the 123 padded logit columns so softmax over 128 lanes == softmax over 5.
    col = jax.lax.broadcasted_iota(jnp.int32, logits.shape, 1)
    logits = jnp.where(col < D_OUT, logits, -1e30)

    # Stable softmax (f32).
    m = jnp.max(logits, axis=-1, keepdims=True)
    e = jnp.exp(logits - m)
    s = jnp.sum(e, axis=-1, keepdims=True)
    o_ref[...] = e * pl.reciprocal(s, approx=True)


def _mlp_small_kernel(x_ref, w1_ref, w2_ref, q3_ref, q4_ref, vec_ref, o_ref):
    # int8 w3/w4 dequantized in-kernel (f32 multiply then bf16 cast — identical
    # rounding to the precomputed bf16 copies used by the gridded path).
    s3 = vec_ref[:, OFF_S3:OFF_S3 + D_H3]
    s4 = vec_ref[:, OFF_S4:OFF_S4 + D_OUT_P]
    w3 = (q3_ref[...].astype(jnp.float32) * s3).astype(jnp.bfloat16)
    w4 = (q4_ref[...].astype(jnp.float32) * s4).astype(jnp.bfloat16)
    _mlp_body(x_ref[...], w1_ref[...], w2_ref[...], w3, w4, vec_ref, o_ref)


def _mlp_big_kernel(x_ref, w1_ref, w2_ref, w3_ref, w4_ref, vec_ref, o_ref):
    _mlp_body(x_ref[...], w1_ref[...], w2_ref[...], w3_ref[...], w4_ref[...],
              vec_ref, o_ref)


_MM_TERMS = D_IN * D_H1_P + D_H1_P * D_H2_P + D_H2_P * D_H3 + D_H3 * D_OUT_P


def _cost_estimate(b, int8_w34):
    w12 = 2 * (D_IN * D_H1_P + D_H1_P * D_H2_P)                   # bf16
    w34 = (1 if int8_w34 else 2) * (D_H2_P * D_H3 + D_H3 * D_OUT_P)
    io = 4 * b * (D_IN + D_OUT_P) + 4 * VEC_LEN
    return pl.CostEstimate(flops=int(2 * b * _MM_TERMS),
                           transcendentals=int(b * (D_OUT_P + 1)),
                           bytes_accessed=int(w12 + w34 + io))


def _vmem_spec():
    return pl.BlockSpec(memory_space=pltpu.VMEM)


def _ai_forward_impl(x, params):
    """x: (batch, N, 3) float32 -> (batch, N) softmax probabilities."""
    b = x.shape[0]
    x2d = x.reshape(b, -1).astype(jnp.float32)            # x.view(x.size(0), -1)
    w1, w2, vec = params["w1"], params["w2"], params["vec"]

    if b <= ROW_BLOCK:
        # Small batch: single grid-free invocation, int8 w3/w4 DMA (dominant
        # transfer halved), dequant in-kernel.
        out_p = pl.pallas_call(
            _mlp_small_kernel,
            out_shape=jax.ShapeDtypeStruct((b, D_OUT_P), jnp.float32),
            in_specs=[_vmem_spec()] * 6,
            out_specs=_vmem_spec(),
            compiler_params=pltpu.CompilerParams(vmem_limit_bytes=VMEM_LIMIT),
            cost_estimate=_cost_estimate(b, int8_w34=True),
        )(x2d, w1, w2, params["q3"], params["q4"], vec)
    else:
        # Large batch: grid over rows, weights resident (constant index_map),
        # batch axis "parallel" so v7x shards it across both TensorCores.
        # Even block count (and a correspondingly shrunk row block) keeps the
        # two-TC split balanced.
        nblk = pl.cdiv(b, ROW_BLOCK)
        if nblk % 2 == 1:
            nblk += 1
        rb = -(-b // nblk)                 # ceil
        rb = ((rb + 7) // 8) * 8           # sublane-aligned row block
        bp = rb * nblk
        if bp != b:
            x2d = jnp.pad(x2d, ((0, bp - b), (0, 0)))

        def const(shape):
            return pl.BlockSpec(shape, lambda i: (0, 0))

        out_p = pl.pallas_call(
            _mlp_big_kernel,
            out_shape=jax.ShapeDtypeStruct((bp, D_OUT_P), jnp.float32),
            grid=(nblk,),
            in_specs=[
                pl.BlockSpec((rb, D_IN), lambda i: (i, 0)),
                const((D_IN, D_H1_P)),
                const((D_H1_P, D_H2_P)),
                const((D_H2_P, D_H3)),
                const((D_H3, D_OUT_P)),
                const((1, VEC_LEN)),
            ],
            out_specs=pl.BlockSpec((rb, D_OUT_P), lambda i: (i, 0)),
            compiler_params=pltpu.CompilerParams(
                dimension_semantics=("parallel",),
                vmem_limit_bytes=VMEM_LIMIT),
            cost_estimate=_cost_estimate(bp, int8_w34=False),
        )(x2d, w1, w2, params["w3d"], params["w4d"], vec)
        out_p = out_p[:b]

    return out_p[:, :D_OUT]


ai_forward = jax.jit(_ai_forward_impl)


def init_params(key):
    """Deterministic init mimicking PyTorch Linear default U[-1/sqrt(fan_in), +].

    Weights stored (in_features, out_features), zero-padded to lane-friendly
    shapes.  w1/w2 in bf16; w3/w4 in int8 with per-output-channel f32 scales
    (plus bf16 copies of the SAME dequantized values for the gridded path).
    Biases and scales are packed into one f32 blob. Padded rows/cols are zero,
    so the padded network is mathematically identical to the unpadded one.
    """
    true_dims = [(D_IN, D_H1), (D_H1, D_H2), (D_H2, D_H3), (D_H3, D_OUT)]
    pad_dims = [(D_IN, D_H1_P), (D_H1_P, D_H2_P), (D_H2_P, D_H3), (D_H3, D_OUT_P)]

    ws, bs = [], []
    for i, ((fi, fo), (fip, fop)) in enumerate(zip(true_dims, pad_dims)):
        kw, kb = jax.random.split(jax.random.fold_in(key, i))
        bound = 1.0 / (fi ** 0.5)
        w = jax.random.uniform(kw, (fi, fo), jnp.float32, -bound, bound)
        bvec = jax.random.uniform(kb, (1, fo), jnp.float32, -bound, bound)
        ws.append(jnp.zeros((fip, fop), jnp.float32).at[:fi, :fo].set(w))
        bs.append(jnp.zeros((1, fop), jnp.float32).at[:, :fo].set(bvec))

    def quantize(w):
        amax = jnp.max(jnp.abs(w), axis=0, keepdims=True)
        scale = jnp.maximum(amax, 1e-8) / 127.0
        q = jnp.clip(jnp.round(w / scale), -127, 127).astype(jnp.int8)
        w_deq = (q.astype(jnp.float32) * scale).astype(jnp.bfloat16)
        return q, scale, w_deq

    q3, s3, w3d = quantize(ws[2])
    q4, s4, w4d = quantize(ws[3])

    vec = jnp.concatenate([bs[0], bs[1], bs[2], bs[3], s3, s4], axis=1)
    assert vec.shape == (1, VEC_LEN)

    return dict(
        w1=ws[0].astype(jnp.bfloat16),
        w2=ws[1].astype(jnp.bfloat16),
        q3=q3, q4=q4,
        w3d=w3d, w4d=w4d,
        vec=vec,
    )


# TODO(synk): train_model / calc_probs / predict are host-side training/eval
# utilities (Adam, loss); only the forward pass is implemented as a kernel.

if __name__ == "__main__":
    key = jax.random.PRNGKey(0)
    params = init_params(key)

    # Small-batch path (matches the module's batch_size = 5).
    x = jax.random.normal(jax.random.fold_in(key, 100), (BATCH, N, 3), jnp.float32)
    out = jax.block_until_ready(ai_forward(x, params))
    assert out.shape == (BATCH, N)
    assert bool(jnp.all(jnp.abs(jnp.sum(out, axis=-1) - 1.0) < 2e-3))

    # Large-batch (gridded, weight-load-amortized) path; first rows reuse x so
    # the two code paths can be cross-checked.
    rest = jax.random.normal(jax.random.fold_in(key, 200), (1030 - BATCH, N, 3),
                             jnp.float32)
    xb = jnp.concatenate([x, rest], axis=0)                # 1030 rows -> 2 blocks
    outb = jax.block_until_ready(ai_forward(xb, params))
    assert outb.shape == (1030, N)
    assert bool(jnp.all(jnp.abs(jnp.sum(outb, axis=-1) - 1.0) < 2e-3))
    assert bool(jnp.allclose(outb[:BATCH], out, atol=2e-3))

    print("KERNEL_OK")
</pallas_src>

<mosaic_0001>
module attributes {stable_mosaic.version = 11 : i64} {
  func.func @_mlp_small_kernel(%arg0: memref<5x15xf32, #tpu.memory_space<vmem>>, %arg1: memref<15x128xbf16, #tpu.memory_space<vmem>>, %arg2: memref<128x256xbf16, #tpu.memory_space<vmem>>, %arg3: memref<256x2048xi8, #tpu.memory_space<vmem>>, %arg4: memref<2048x128xi8, #tpu.memory_space<vmem>>, %arg5: memref<1x4736xf32, #tpu.memory_space<vmem>>, %arg6: memref<5x128xf32, #tpu.memory_space<vmem>>) attributes {dimension_semantics = [], scalar_prefetch = 0 : i64, scratch_operands = 0 : i64, tpu.core_type = #tpu.core_type<tc>} {
    %c0 = arith.constant 0 : index
    %c2560 = arith.constant 2560 : index
    %0 = vector.load %arg5[%c0, %c2560] : memref<1x4736xf32, #tpu.memory_space<vmem>>, vector<1x2048xf32>
    %c0_0 = arith.constant 0 : index
    %c4608 = arith.constant 4608 : index
    %1 = vector.load %arg5[%c0_0, %c4608] : memref<1x4736xf32, #tpu.memory_space<vmem>>, vector<1x128xf32>
    %c0_1 = arith.constant 0 : index
    %c0_2 = arith.constant 0 : index
    %2 = vector.load %arg3[%c0_1, %c0_2] : memref<256x2048xi8, #tpu.memory_space<vmem>>, vector<256x2048xi8>
    %3 = arith.sitofp %2 : vector<256x2048xi8> to vector<256x2048xf32>
    %4 = vector.broadcast %0 : vector<1x2048xf32> to vector<256x2048xf32>
    %5 = arith.mulf %3, %4 : vector<256x2048xf32>
    %6 = arith.truncf %5 : vector<256x2048xf32> to vector<256x2048xbf16>
    %c0_3 = arith.constant 0 : index
    %c0_4 = arith.constant 0 : index
    %7 = vector.load %arg4[%c0_3, %c0_4] : memref<2048x128xi8, #tpu.memory_space<vmem>>, vector<2048x128xi8>
    %8 = arith.sitofp %7 : vector<2048x128xi8> to vector<2048x128xf32>
    %9 = vector.broadcast %1 : vector<1x128xf32> to vector<2048x128xf32>
    %10 = arith.mulf %8, %9 : vector<2048x128xf32>
    %11 = arith.truncf %10 : vector<2048x128xf32> to vector<2048x128xbf16>
    %c0_5 = arith.constant 0 : index
    %c0_6 = arith.constant 0 : index
    %12 = vector.load %arg0[%c0_5, %c0_6] : memref<5x15xf32, #tpu.memory_space<vmem>>, vector<5x15xf32>
    %c0_7 = arith.constant 0 : index
    %c0_8 = arith.constant 0 : index
    %13 = vector.load %arg1[%c0_7, %c0_8] : memref<15x128xbf16, #tpu.memory_space<vmem>>, vector<15x128xbf16>
    %c0_9 = arith.constant 0 : index
    %c0_10 = arith.constant 0 : index
    %14 = vector.load %arg2[%c0_9, %c0_10] : memref<128x256xbf16, #tpu.memory_space<vmem>>, vector<128x256xbf16>
    %c0_11 = arith.constant 0 : index
    %c0_12 = arith.constant 0 : index
    %15 = vector.load %arg5[%c0_11, %c0_12] : memref<1x4736xf32, #tpu.memory_space<vmem>>, vector<1x128xf32>
    %c0_13 = arith.constant 0 : index
    %c128 = arith.constant 128 : index
    %16 = vector.load %arg5[%c0_13, %c128] : memref<1x4736xf32, #tpu.memory_space<vmem>>, vector<1x256xf32>
    %c0_14 = arith.constant 0 : index
    %c384 = arith.constant 384 : index
    %17 = vector.load %arg5[%c0_14, %c384] : memref<1x4736xf32, #tpu.memory_space<vmem>>, vector<1x2048xf32>
    %c0_15 = arith.constant 0 : index
    %c2432 = arith.constant 2432 : index
    %18 = vector.load %arg5[%c0_15, %c2432] : memref<1x4736xf32, #tpu.memory_space<vmem>>, vector<1x128xf32>
    %19 = arith.truncf %12 : vector<5x15xf32> to vector<5x15xbf16>
    %cst = arith.constant dense<0.000000e+00> : vector<5x128xf32>
    %20 = tpu.matmul %19, %13, %cst {dimension_numbers = #tpu.dot_dimension_numbers<[1], [0], [0], [1], [0, 0, 1, 1], [], []>} : vector<5x15xbf16>, vector<15x128xbf16>, vector<5x128xf32> -> vector<5x128xf32>
    %21 = vector.broadcast %15 : vector<1x128xf32> to vector<5x128xf32>
    %22 = arith.addf %20, %21 : vector<5x128xf32>
    %cst_16 = arith.constant 0.000000e+00 : f32
    %23 = vector.broadcast %cst_16 : f32 to vector<5x128xf32>
    %24 = arith.maximumf %22, %23 : vector<5x128xf32>
    %25 = arith.truncf %24 : vector<5x128xf32> to vector<5x128xbf16>
    %cst_17 = arith.constant dense<0.000000e+00> : vector<5x256xf32>
    %26 = tpu.matmul %25, %14, %cst_17 {dimension_numbers = #tpu.dot_dimension_numbers<[1], [0], [0], [1], [0, 0, 1, 1], [], []>} : vector<5x128xbf16>, vector<128x256xbf16>, vector<5x256xf32> -> vector<5x256xf32>
    %27 = vector.broadcast %16 : vector<1x256xf32> to vector<5x256xf32>
    %28 = arith.addf %26, %27 : vector<5x256xf32>
    %cst_18 = arith.constant 0.000000e+00 : f32
    %29 = vector.broadcast %cst_18 : f32 to vector<5x256xf32>
    %30 = arith.maximumf %28, %29 : vector<5x256xf32>
    %31 = arith.truncf %30 : vector<5x256xf32> to vector<5x256xbf16>
    %cst_19 = arith.constant dense<0.000000e+00> : vector<5x2048xf32>
    %32 = tpu.matmul %31, %6, %cst_19 {dimension_numbers = #tpu.dot_dimension_numbers<[1], [0], [0], [1], [0, 0, 1, 1], [], []>} : vector<5x256xbf16>, vector<256x2048xbf16>, vector<5x2048xf32> -> vector<5x2048xf32>
    %33 = vector.broadcast %17 : vector<1x2048xf32> to vector<5x2048xf32>
    %34 = arith.addf %32, %33 : vector<5x2048xf32>
    %35 = arith.truncf %34 : vector<5x2048xf32> to vector<5x2048xbf16>
    %cst_20 = arith.constant 0.000000e+00 : bf16
    %36 = vector.broadcast %cst_20 : bf16 to vector<5x2048xbf16>
    %37 = arith.maximumf %35, %36 : vector<5x2048xbf16>
    %cst_21 = arith.constant dense<0.000000e+00> : vector<5x128xf32>
    %38 = tpu.matmul %37, %11, %cst_21 {dimension_numbers = #tpu.dot_dimension_numbers<[1], [0], [0], [1], [0, 0, 1, 1], [], []>} : vector<5x2048xbf16>, vector<2048x128xbf16>, vector<5x128xf32> -> vector<5x128xf32>
    %39 = vector.broadcast %18 : vector<1x128xf32> to vector<5x128xf32>
    %40 = arith.addf %38, %39 : vector<5x128xf32>
    %41 = tpu.iota {dimensions = array<i32: 1>} : vector<5x128xi32>
    %c5_i32 = arith.constant 5 : i32
    %42 = vector.broadcast %c5_i32 : i32 to vector<5x128xi32>
    %43 = arith.cmpi slt, %41, %42 : vector<5x128xi32>
    %cst_22 = arith.constant -1.000000e+30 : f32
    %44 = vector.broadcast %cst_22 : f32 to vector<5x128xf32>
    %45 = arith.select %43, %40, %44 : vector<5x128xi1>, vector<5x128xf32>
    %cst_23 = arith.constant dense<0xFF800000> : vector<5xf32>
    %46 = vector.multi_reduction <maximumf>, %45, %cst_23 [1] : vector<5x128xf32> to vector<5xf32>
    %47 = vector.shape_cast %46 : vector<5xf32> to vector<5x1xf32>
    %48 = vector.broadcast %47 : vector<5x1xf32> to vector<5x128xf32>
    %49 = arith.subf %45, %48 : vector<5x128xf32>
    %50 = math.exp %49 : vector<5x128xf32>
    %cst_24 = arith.constant dense<0.000000e+00> : vector<5xf32>
    %51 = vector.multi_reduction <add>, %50, %cst_24 [1] : vector<5x128xf32> to vector<5xf32>
    %52 = vector.shape_cast %51 : vector<5xf32> to vector<5x1xf32>
    %53 = tpu.reciprocal %52 {approx = true} : vector<5x1xf32> -> vector<5x1xf32>
    %54 = vector.broadcast %53 : vector<5x1xf32> to vector<5x128xf32>
    %55 = arith.mulf %50, %54 : vector<5x128xf32>
    %c0_25 = arith.constant 0 : index
    %c0_26 = arith.constant 0 : index
    %56 = vector.load %arg6[%c0_25, %c0_26] : memref<5x128xf32, #tpu.memory_space<vmem>>, vector<5x128xf32>
    tpu.vector_store %arg6[%c0_25, %c0_26], %55 {strides = array<i32>} : memref<5x128xf32, #tpu.memory_space<vmem>>, vector<5x128xf32>,
    return
  }
}

</mosaic_0001>

<llo_original>
// kernel: _ai_forward_impl.1
$region0: #{_ai_forward_impl.1}
  #allocation0 [shape = 'u32[]', space=smem, size = 0x4, offset = 0x4, fixed_abs, tag = 'smem constant byte address 0x4 - core index']
  #allocation1 [shape = 'u32[144,128]{1,0:T(1,128)}', space=vmem, size = 0x12000, scoped, tag = 'internal scratch']
  %s0 = inlined_call_operand.vmem [shape: f32[5,15], index: 0, kind: input, shape index: {}]
  %s1 = inlined_call_operand.vmem [shape: bf16[15,128], index: 1, kind: input, shape index: {}]
  %s2 = inlined_call_operand.hbm [shape: bf16[128,256], index: 2, kind: input, shape index: {}]
  %s3 = inlined_call_operand.hbm [shape: s8[256,2048], index: 3, kind: input, shape index: {}]
  %s4 = inlined_call_operand.hbm [shape: s8[2048,128], index: 4, kind: input, shape index: {}]
  %s5 = inlined_call_operand.vmem [shape: f32[1,4736], index: 5, kind: input, shape index: {}]
  %s6 = inlined_call_operand.hbm [shape: f32[5,128], index: 6, kind: output, shape index: {}]
  %s7 = sld [smem:[#allocation0]]
  $region46: #{_ai_forward_impl.1} parent=0
    _
  %s9 = ssub.s32 1, %s7
  %s10 = scalar_select 0, %s9, %s7
  $region1: #{_ai_forward_impl.1} parent=0
    #allocation2 [shape = 'u8[65536]{0}', space=vmem, size = 0x10000, scoped, tag = 'input window, operand 2, single buffered']
    #allocation3 [shape = 's32[1]{0}', space=sflag, size = 0x4, scoped, tag = 'scoped memory for _ai_forward_impl.1']
    #allocation4 [shape = 's32[1]{0}', space=sflag, size = 0x4, scoped, tag = 'scoped memory for _ai_forward_impl.1']
    #allocation5 [shape = 'u8[524288]{0}', space=vmem, size = 0x80000, scoped, tag = 'input window, operand 3, single buffered']
    #allocation6 [shape = 's32[1]{0}', space=sflag, size = 0x4, scoped, tag = 'scoped memory for _ai_forward_impl.1']
    #allocation7 [shape = 'u8[262144]{0}', space=vmem, size = 0x40000, scoped, tag = 'input window, operand 4, single buffered']
    #allocation8 [shape = 'u8[4096]{0}', space=vmem, size = 0x1000, scoped, tag = 'output window, operand 0, single buffered']
    %11 = vsyncpa [#allocation3], 0
    %12 = vsyncpa [#allocation6], 0
    %13 = vsyncpa [#allocation4], 0
    // Predicated region
    $region2: #{_ai_forward_impl.1} parent=1 // pred_check
      _
    $region3: #{_ai_forward_impl.1} parent=1 // pred_check_branch
      %15 = sbr.rel (0) target = $region5
    $region4: #{_ai_forward_impl.1} parent=1 // pred_region
      _
    $region5: #{_ai_forward_impl.1} parent=1 // pred_fallthru
      _
    // Predicated region
    $region6: #{_ai_forward_impl.1} parent=1 // pred_check
      _
    $region7: #{_ai_forward_impl.1} parent=1 // pred_check_branch
      %17 = sbr.rel (0) target = $region9
    $region8: #{_ai_forward_impl.1} parent=1 // pred_region
      _
    $region9: #{_ai_forward_impl.1} parent=1 // pred_fallthru
      _
    // Predicated region
    $region10: #{_ai_forward_impl.1} parent=1 // pred_check
      _
    $region11: #{_ai_forward_impl.1} parent=1 // pred_check_branch
      %19 = sbr.rel (0) target = $region13
    $region12: #{_ai_forward_impl.1} parent=1 // pred_region
      %s21 = ssub.s32 2048, 2048
      %22 = vsyncadd [#allocation3], %s21
      %s23 = sshll.u32 [#allocation2], 4
      %s24 = int_to_ptr.vmem [resolvable:$true] %s23
      %29 = dma.hbm_to_vmem [thread:$0]  %s2, 2048, %s24, [#allocation3], 128, 128, 8
    $region13: #{_ai_forward_impl.1} parent=1 // pred_fallthru
      _
    // Predicated region
    $region14: #{_ai_forward_impl.1} parent=1 // pred_check
      _
    $region15: #{_ai_forward_impl.1} parent=1 // pred_check_branch
      %31 = sbr.rel (0) target = $region17
    $region16: #{_ai_forward_impl.1} parent=1 // pred_region
      %s33 = ssub.s32 16384, 16384
      %34 = vsyncadd [#allocation6], %s33
      %s35 = sshll.u32 [#allocation5], 4
      %s36 = int_to_ptr.vmem [resolvable:$true] %s35
      %41 = dma.hbm_to_vmem [thread:$0]  %s3, 16384, %s36, [#allocation6], 2048, 2048, 128
    $region17: #{_ai_forward_impl.1} parent=1 // pred_fallthru
      _
    // Predicated region
    $region18: #{_ai_forward_impl.1} parent=1 // pred_check
      _
    $region19: #{_ai_forward_impl.1} parent=1 // pred_check_branch
      %43 = sbr.rel (0) target = $region21
    $region20: #{_ai_forward_impl.1} parent=1 // pred_region
      %s45 = ssub.s32 8192, 8192
      %46 = vsyncadd [#allocation6], %s45
      %s47 = sshll.u32 [#allocation7], 4
      %s48 = int_to_ptr.vmem [resolvable:$true] %s47
      %53 = dma.hbm_to_vmem [thread:$0]  %s4, 8192, %s48, [#allocation6], 128, 128, 8
    $region21: #{_ai_forward_impl.1} parent=1 // pred_fallthru
      _
    // Predicated region
    $region22: #{_ai_forward_impl.1} parent=1 // pred_check
      _
    $region23: #{_ai_forward_impl.1} parent=1 // pred_check_branch
      %55 = sbr.rel (0) target = $region25
    $region24: #{_ai_forward_impl.1} parent=1 // pred_region
      _
    $region25: #{_ai_forward_impl.1} parent=1 // pred_fallthru
      _
    // Predicated region
    $region26: #{_ai_forward_impl.1} parent=1 // pred_check
      _
    $region27: #{_ai_forward_impl.1} parent=1 // pred_check_branch
      %57 = sbr.rel (0) target = $region29
    $region28: #{_ai_forward_impl.1} parent=1 // pred_region
      %58 = dma.done [#allocation3], 2048
    $region29: #{_ai_forward_impl.1} parent=1 // pred_fallthru
      _
    // Predicated region
    $region30: #{_ai_forward_impl.1} parent=1 // pred_check
      _
    $region31: #{_ai_forward_impl.1} parent=1 // pred_check_branch
      %60 = sbr.rel (0) target = $region33
    $region32: #{_ai_forward_impl.1} parent=1 // pred_region
      %61 = dma.done [#allocation6], 16384
    $region33: #{_ai_forward_impl.1} parent=1 // pred_fallthru
      _
    // Predicated region
    $region34: #{_ai_forward_impl.1} parent=1 // pred_check
      _
    $region35: #{_ai_forward_impl.1} parent=1 // pred_check_branch
      %63 = sbr.rel (0) target = $region37
    $region36: #{_ai_forward_impl.1} parent=1 // pred_region
      %64 = dma.done [#allocation6], 8192
    $region37: #{_ai_forward_impl.1} parent=1 // pred_fallthru
      _
    %v66 = vld [vmem:[%s5 + $0x14] sm:$0xff]
    %v67 = vld [vmem:[%s5 + $0x1c] sm:$0xff]
    %v68 = vld [vmem:[%s5 + $0x24] sm:$0x1]
    %v69 = vld [vmem:[#allocation5] sm:$0xff]
    %v70 = vld [vmem:[#allocation5 + $0x8] sm:$0xff]
    %v71 = vld [vmem:[#allocation5 + $0x10] sm:$0xff]
    %v72 = vld [vmem:[#allocation5 + $0x18] sm:$0xff]
    %v73 = vld [vmem:[#allocation5 + $0x20] sm:$0xff]
    %v74 = vld [vmem:[#allocation5 + $0x28] sm:$0xff]
    %v75 = vld [vmem:[#allocation5 + $0x30] sm:$0xff]
    %v76 = vld [vmem:[#allocation5 + $0x38] sm:$0xff]
    %v77 = vld [vmem:[#allocation5 + $0x40] sm:$0xff]
    %v78 = vld [vmem:[#allocation5 + $0x48] sm:$0xff]
    %v79 = vld [vmem:[#allocation5 + $0x50] sm:$0xff]
    %v80 = vld [vmem:[#allocation5 + $0x58] sm:$0xff]
    %v81 = vld [vmem:[#allocation5 + $0x60] sm:$0xff]
    %v82 = vld [vmem:[#allocation5 + $0x68] sm:$0xff]
    %v83 = vld [vmem:[#allocation5 + $0x70] sm:$0xff]
    %v84 = vld [vmem:[#allocation5 + $0x78] sm:$0xff]
    %v85 = vld [vmem:[#allocation5 + $0x80] sm:$0xff]
    %v86 = vld [vmem:[#allocation5 + $0x88] sm:$0xff]
    %v87 = vld [vmem:[#allocation5 + $0x90] sm:$0xff]
    %v88 = vld [vmem:[#allocation5 + $0x98] sm:$0xff]
    %v89 = vld [vmem:[#allocation5 + $0xa0] sm:$0xff]
    %v90 = vld [vmem:[#allocation5 + $0xa8] sm:$0xff]
    %v91 = vld [vmem:[#allocation5 + $0xb0] sm:$0xff]
    %v92 = vld [vmem:[#allocation5 + $0xb8] sm:$0xff]
    %v93 = vld [vmem:[#allocation5 + $0xc0] sm:$0xff]
    %v94 = vld [vmem:[#allocation5 + $0xc8] sm:$0xff]
    %v95 = vld [vmem:[#allocation5 + $0xd0] sm:$0xff]
    %v96 = vld [vmem:[#allocation5 + $0xd8] sm:$0xff]
    %v97 = vld [vmem:[#allocation5 + $0xe0] sm:$0xff]
    %v98 = vld [vmem:[#allocation5 + $0xe8] sm:$0xff]
    %v99 = vld [vmem:[#allocation5 + $0xf0] sm:$0xff]
    %v100 = vld [vmem:[#allocation5 + $0xf8] sm:$0xff]
    %v101 = vld [vmem:[#allocation5 + $0x100] sm:$0xff]
    %v102 = vld [vmem:[#allocation5 + $0x108] sm:$0xff]
    %v103 = vld [vmem:[#allocation5 + $0x110] sm:$0xff]
    %v104 = vld [vmem:[#allocation5 + $0x118] sm:$0xff]
    %v105 = vld [vmem:[#allocation5 + $0x120] sm:$0xff]
    %v106 = vld [vmem:[#allocation5 + $0x128] sm:$0xff]
    %v107 = vld [vmem:[#allocation5 + $0x130] sm:$0xff]
    %v108 = vld [vmem:[#allocation5 + $0x138] sm:$0xff]
    %v109 = vld [vmem:[#allocation5 + $0x140] sm:$0xff]
    %v110 = vld [vmem:[#allocation5 + $0x148] sm:$0xff]
    %v111 = vld [vmem:[#allocation5 + $0x150] sm:$0xff]
    %v112 = vld [vmem:[#allocation5 + $0x158] sm:$0xff]
    %v113 = vld [vmem:[#allocation5 + $0x160] sm:$0xff]
    %v114 = vld [vmem:[#allocation5 + $0x168] sm:$0xff]
    %v115 = vld [vmem:[#allocation5 + $0x170] sm:$0xff]
    %v116 = vld [vmem:[#allocation5 + $0x178] sm:$0xff]
    %v117 = vld [vmem:[#allocation5 + $0x180] sm:$0xff]
    %v118 = vld [vmem:[#allocation5 + $0x188] sm:$0xff]
    %v119 = vld [vmem:[#allocation5 + $0x190] sm:$0xff]
    %v120 = vld [vmem:[#allocation5 + $0x198] sm:$0xff]
    %v121 = vld [vmem:[#allocation5 + $0x1a0] sm:$0xff]
    %v122 = vld [vmem:[#allocation5 + $0x1a8] sm:$0xff]
    %v123 = vld [vmem:[#allocation5 + $0x1b0] sm:$0xff]
    %v124 = vld [vmem:[#allocation5 + $0x1b8] sm:$0xff]
    %v125 = vld [vmem:[#allocation5 + $0x1c0] sm:$0xff]
    %v126 = vld [vmem:[#allocation5 + $0x1c8] sm:$0xff]
    %v127 = vld [vmem:[#allocation5 + $0x1d0] sm:$0xff]
    %v128 = vld [vmem:[#allocation5 + $0x1d8] sm:$0xff]
    %v129 = vld [vmem:[#allocation5 + $0x1e0] sm:$0xff]
    %v130 = vld [vmem:[#allocation5 + $0x1e8] sm:$0xff]
    %v131 = vld [vmem:[#allocation5 + $0x1f0] sm:$0xff]
    %v132 = vld [vmem:[#allocation5 + $0x1f8] sm:$0xff]
    %v133 = vld [vmem:[#allocation5 + $0x200] sm:$0xff]
    %v134 = vld [vmem:[#allocation5 + $0x208] sm:$0xff]
    %v135 = vld [vmem:[#allocation5 + $0x210] sm:$0xff]
    %v136 = vld [vmem:[#allocation5 + $0x218] sm:$0xff]
    %v137 = vld [vmem:[#allocation5 + $0x220] sm:$0xff]
    %v138 = vld [vmem:[#allocation5 + $0x228] sm:$0xff]
    %v139 = vld [vmem:[#allocation5 + $0x230] sm:$0xff]
    %v140 = vld [vmem:[#allocation5 + $0x238] sm:$0xff]
    %v141 = vld [vmem:[#allocation5 + $0x240] sm:$0xff]
    %v142 = vld [vmem:[#allocation5 + $0x248] sm:$0xff]
    %v143 = vld [vmem:[#allocation5 + $0x250] sm:$0xff]
    %v144 = vld [vmem:[#allocation5 + $0x258] sm:$0xff]
    %v145 = vld [vmem:[#allocation5 + $0x260] sm:$0xff]
    %v146 = vld [vmem:[#allocation5 + $0x268] sm:$0xff]
    %v147 = vld [vmem:[#allocation5 + $0x270] sm:$0xff]
    %v148 = vld [vmem:[#allocation5 + $0x278] sm:$0xff]
    %v149 = vld [vmem:[#allocation5 + $0x280] sm:$0xff]
    %v150 = vld [vmem:[#allocation5 + $0x288] sm:$0xff]
    %v151 = vld [vmem:[#allocation5 + $0x290] sm:$0xff]
    %v152 = vld [vmem:[#allocation5 + $0x298] sm:$0xff]
    %v153 = vld [vmem:[#allocation5 + $0x2a0] sm:$0xff]
    %v154 = vld [vmem:[#allocation5 + $0x2a8] sm:$0xff]
    %v155 = vld [vmem:[#allocation5 + $0x2b0] sm:$0xff]
    %v156 = vld [vmem:[#allocation5 + $0x2b8] sm:$0xff]
    %v157 = vld [vmem:[#allocation5 + $0x2c0] sm:$0xff]
    %v158 = vld [vmem:[#allocation5 + $0x2c8] sm:$0xff]
    %v159 = vld [vmem:[#allocation5 + $0x2d0] sm:$0xff]
    %v160 = vld [vmem:[#allocation5 + $0x2d8] sm:$0xff]
    %v161 = vld [vmem:[#allocation5 + $0x2e0] sm:$0xff]
    %v162 = vld [vmem:[#allocation5 + $0x2e8] sm:$0xff]
    %v163 = vld [vmem:[#allocation5 + $0x2f0] sm:$0xff]
    %v164 = vld [vmem:[#allocation5 + $0x2f8] sm:$0xff]
    %v165 = vld [vmem:[#allocation5 + $0x300] sm:$0xff]
    %v166 = vld [vmem:[#allocation5 + $0x308] sm:$0xff]
    %v167 = vld [vmem:[#allocation5 + $0x310] sm:$0xff]
    %v168 = vld [vmem:[#allocation5 + $0x318] sm:$0xff]
    %v169 = vld [vmem:[#allocation5 + $0x320] sm:$0xff]
    %v170 = vld [vmem:[#allocation5 + $0x328] sm:$0xff]
    %v171 = vld [vmem:[#allocation5 + $0x330] sm:$0xff]
    %v172 = vld [vmem:[#allocation5 + $0x338] sm:$0xff]
    %v173 = vld [vmem:[#allocation5 + $0x340] sm:$0xff]
    %v174 = vld [vmem:[#allocation5 + $0x348] sm:$0xff]
    %v175 = vld [vmem:[#allocation5 + $0x350] sm:$0xff]
    %v176 = vld [vmem:[#allocation5 + $0x358] sm:$0xff]
    %v177 = vld [vmem:[#allocation5 + $0x360] sm:$0xff]
    %v178 = vld [vmem:[#allocation5 + $0x368] sm:$0xff]
    %v179 = vld [vmem:[#allocation5 + $0x370] sm:$0xff]
    %v180 = vld [vmem:[#allocation5 + $0x378] sm:$0xff]
    %v181 = vld [vmem:[#allocation5 + $0x380] sm:$0xff]
    %v182 = vld [vmem:[#allocation5 + $0x388] sm:$0xff]
    %v183 = vld [vmem:[#allocation5 + $0x390] sm:$0xff]
    %v184 = vld [vmem:[#allocation5 + $0x398] sm:$0xff]
    %v185 = vld [vmem:[#allocation5 + $0x3a0] sm:$0xff]
    %v186 = vld [vmem:[#allocation5 + $0x3a8] sm:$0xff]
    %v187 = vld [vmem:[#allocation5 + $0x3b0] sm:$0xff]
    %v188 = vld [vmem:[#allocation5 + $0x3b8] sm:$0xff]
    %v189 = vld [vmem:[#allocation5 + $0x3c0] sm:$0xff]
    %v190 = vld [vmem:[#allocation5 + $0x3c8] sm:$0xff]
    %v191 = vld [vmem:[#allocation5 + $0x3d0] sm:$0xff]
    %v192 = vld [vmem:[#allocation5 + $0x3d8] sm:$0xff]
    %v193 = vld [vmem:[#allocation5 + $0x3e0] sm:$0xff]
    %v194 = vld [vmem:[#allocation5 + $0x3e8] sm:$0xff]
    %v195 = vld [vmem:[#allocation5 + $0x3f0] sm:$0xff]
    %v196 = vld [vmem:[#allocation5 + $0x3f8] sm:$0xff]
    %v197 = vunpack.c.0.s8 %v69
    %v198 = vunpack.c.0.s8 %v70
    %v199 = vunpack.c.0.s8 %v71
    %v200 = vunpack.c.0.s8 %v72
    %v201 = vunpack.c.0.s8 %v73
    %v202 = vunpack.c.0.s8 %v74
    %v203 = vunpack.c.0.s8 %v75
    %v204 = vunpack.c.0.s8 %v76
    %v205 = vunpack.c.0.s8 %v77
    %v206 = vunpack.c.0.s8 %v78
    %v207 = vunpack.c.0.s8 %v79
    %v208 = vunpack.c.0.s8 %v80
    %v209 = vunpack.c.0.s8 %v81
    %v210 = vunpack.c.0.s8 %v82
    %v211 = vunpack.c.0.s8 %v83
    %v212 = vunpack.c.0.s8 %v84
    %v213 = vunpack.c.1.s8 %v69
    %v214 = vunpack.c.1.s8 %v70
    %v215 = vunpack.c.1.s8 %v71
    %v216 = vunpack.c.1.s8 %v72
    %v217 = vunpack.c.1.s8 %v73
    %v218 = vunpack.c.1.s8 %v74
    %v219 = vunpack.c.1.s8 %v75
    %v220 = vunpack.c.1.s8 %v76
    %v221 = vunpack.c.1.s8 %v77
    %v222 = vunpack.c.1.s8 %v78
    %v223 = vunpack.c.1.s8 %v79
    %v224 = vunpack.c.1.s8 %v80
    %v225 = vunpack.c.1.s8 %v81
    %v226 = vunpack.c.1.s8 %v82
    %v227 = vunpack.c.1.s8 %v83
    %v228 = vunpack.c.1.s8 %v84
    %v229 = vunpack.c.2.s8 %v69
    %v230 = vunpack.c.2.s8 %v70
    %v231 = vunpack.c.2.s8 %v71
    %v232 = vunpack.c.2.s8 %v72
    %v233 = vunpack.c.2.s8 %v73
    %v234 = vunpack.c.2.s8 %v74
    %v235 = vunpack.c.2.s8 %v75
    %v236 = vunpack.c.2.s8 %v76
    %v237 = vunpack.c.2.s8 %v77
    %v238 = vunpack.c.2.s8 %v78
    %v239 = vunpack.c.2.s8 %v79
    %v240 = vunpack.c.2.s8 %v80
    %v241 = vunpack.c.2.s8 %v81
    %v242 = vunpack.c.2.s8 %v82
    %v243 = vunpack.c.2.s8 %v83
    %v244 = vunpack.c.2.s8 %v84
    %v245 = vunpack.c.3.s8 %v69
    %v246 = vunpack.c.3.s8 %v70
    %v247 = vunpack.c.3.s8 %v71
    %v248 = vunpack.c.3.s8 %v72
    %v249 = vunpack.c.3.s8 %v73
    %v250 = vunpack.c.3.s8 %v74
    %v251 = vunpack.c.3.s8 %v75
    %v252 = vunpack.c.3.s8 %v76
    %v253 = vunpack.c.3.s8 %v77
    %v254 = vunpack.c.3.s8 %v78
    %v255 = vunpack.c.3.s8 %v79
    %v256 = vunpack.c.3.s8 %v80
    %v257 = vunpack.c.3.s8 %v81
    %v258 = vunpack.c.3.s8 %v82
    %v259 = vunpack.c.3.s8 %v83
    %v260 = vunpack.c.3.s8 %v84
    %v261 = vunpack.c.0.s8 %v85
    %v262 = vunpack.c.0.s8 %v86
    %v263 = vunpack.c.0.s8 %v87
    %v264 = vunpack.c.0.s8 %v88
    %v265 = vunpack.c.0.s8 %v89
    %v266 = vunpack.c.0.s8 %v90
    %v267 = vunpack.c.0.s8 %v91
    %v268 = vunpack.c.0.s8 %v92
    %v269 = vunpack.c.0.s8 %v93
    %v270 = vunpack.c.0.s8 %v94
    %v271 = vunpack.c.0.s8 %v95
    %v272 = vunpack.c.0.s8 %v96
    %v273 = vunpack.c.0.s8 %v97
    %v274 = vunpack.c.0.s8 %v98
    %v275 = vunpack.c.0.s8 %v99
    %v276 = vunpack.c.0.s8 %v100
    %v277 = vunpack.c.1.s8 %v85
    %v278 = vunpack.c.1.s8 %v86
    %v279 = vunpack.c.1.s8 %v87
    %v280 = vunpack.c.1.s8 %v88
    %v281 = vunpack.c.1.s8 %v89
    %v282 = vunpack.c.1.s8 %v90
    %v283 = vunpack.c.1.s8 %v91
    %v284 = vunpack.c.1.s8 %v92
    %v285 = vunpack.c.1.s8 %v93
    %v286 = vunpack.c.1.s8 %v94
    %v287 = vunpack.c.1.s8 %v95
    %v288 = vunpack.c.1.s8 %v96
    %v289 = vunpack.c.1.s8 %v97
    %v290 = vunpack.c.1.s8 %v98
    %v291 = vunpack.c.1.s8 %v99
    %v292 = vunpack.c.1.s8 %v100
    %v293 = vunpack.c.2.s8 %v85
    %v294 = vunpack.c.2.s8 %v86
    %v295 = vunpack.c.2.s8 %v87
    %v296 = vunpack.c.2.s8 %v88
    %v297 = vunpack.c.2.s8 %v89
    %v298 = vunpack.c.2.s8 %v90
    %v299 = vunpack.c.2.s8 %v91
    %v300 = vunpack.c.2.s8 %v92
    %v301 = vunpack.c.2.s8 %v93
    %v302 = vunpack.c.2.s8 %v94
    %v303 = vunpack.c.2.s8 %v95
    %v304 = vunpack.c.2.s8 %v96
    %v305 = vunpack.c.2.s8 %v97
    %v306 = vunpack.c.2.s8 %v98
    %v307 = vunpack.c.2.s8 %v99
    %v308 = vunpack.c.2.s8 %v100
    %v309 = vunpack.c.3.s8 %v85
    %v310 = vunpack.c.3.s8 %v86
    %v311 = vunpack.c.3.s8 %v87
    %v312 = vunpack.c.3.s8 %v88
    %v313 = vunpack.c.3.s8 %v89
    %v314 = vunpack.c.3.s8 %v90
    %v315 = vunpack.c.3.s8 %v91
    %v316 = vunpack.c.3.s8 %v92
    %v317 = vunpack.c.3.s8 %v93
    %v318 = vunpack.c.3.s8 %v94
    %v319 = vunpack.c.3.s8 %v95
    %v320 = vunpack.c.3.s8 %v96
    %v321 = vunpack.c.3.s8 %v97
    %v322 = vunpack.c.3.s8 %v98
    %v323 = vunpack.c.3.s8 %v99
    %v324 = vunpack.c.3.s8 %v100
    %v325 = vunpack.c.0.s8 %v101
    %v326 = vunpack.c.0.s8 %v102
    %v327 = vunpack.c.0.s8 %v103
    %v328 = vunpack.c.0.s8 %v104
    %v329 = vunpack.c.0.s8 %v105
    %v330 = vunpack.c.0.s8 %v106
    %v331 = vunpack.c.0.s8 %v107
    %v332 = vunpack.c.0.s8 %v108
    %v333 = vunpack.c.0.s8 %v109
    %v334 = vunpack.c.0.s8 %v110
    %v335 = vunpack.c.0.s8 %v111
    %v336 = vunpack.c.0.s8 %v112
    %v337 = vunpack.c.0.s8 %v113
    %v338 = vunpack.c.0.s8 %v114
    %v339 = vunpack.c.0.s8 %v115
    %v340 = vunpack.c.0.s8 %v116
    %v341 = vunpack.c.1.s8 %v101
    %v342 = vunpack.c.1.s8 %v102
    %v343 = vunpack.c.1.s8 %v103
    %v344 = vunpack.c.1.s8 %v104
    %v345 = vunpack.c.1.s8 %v105
    %v346 = vunpack.c.1.s8 %v106
    %v347 = vunpack.c.1.s8 %v107
    %v348 = vunpack.c.1.s8 %v108
    %v349 = vunpack.c.1.s8 %v109
    %v350 = vunpack.c.1.s8 %v110
    %v351 = vunpack.c.1.s8 %v111
    %v352 = vunpack.c.1.s8 %v112
    %v353 = vunpack.c.1.s8 %v113
    %v354 = vunpack.c.1.s8 %v114
    %v355 = vunpack.c.1.s8 %v115
    %v356 = vunpack.c.1.s8 %v116
    %v357 = vunpack.c.2.s8 %v101
    %v358 = vunpack.c.2.s8 %v102
    %v359 = vunpack.c.2.s8 %v103
    %v360 = vunpack.c.2.s8 %v104
    %v361 = vunpack.c.2.s8 %v105
    %v362 = vunpack.c.2.s8 %v106
    %v363 = vunpack.c.2.s8 %v107
    %v364 = vunpack.c.2.s8 %v108
    %v365 = vunpack.c.2.s8 %v109
    %v366 = vunpack.c.2.s8 %v110
    %v367 = vunpack.c.2.s8 %v111
    %v368 = vunpack.c.2.s8 %v112
    %v369 = vunpack.c.2.s8 %v113
    %v370 = vunpack.c.2.s8 %v114
    %v371 = vunpack.c.2.s8 %v115
    %v372 = vunpack.c.2.s8 %v116
    %v373 = vunpack.c.3.s8 %v101
    %v374 = vunpack.c.3.s8 %v102
    %v375 = vunpack.c.3.s8 %v103
    %v376 = vunpack.c.3.s8 %v104
    %v377 = vunpack.c.3.s8 %v105
    %v378 = vunpack.c.3.s8 %v106
    %v379 = vunpack.c.3.s8 %v107
    %v380 = vunpack.c.3.s8 %v108
    %v381 = vunpack.c.3.s8 %v109
    %v382 = vunpack.c.3.s8 %v110
    %v383 = vunpack.c.3.s8 %v111
    %v384 = vunpack.c.3.s8 %v112
    %v385 = vunpack.c.3.s8 %v113
    %v386 = vunpack.c.3.s8 %v114
    %v387 = vunpack.c.3.s8 %v115
    %v388 = vunpack.c.3.s8 %v116
    %v389 = vunpack.c.0.s8 %v117
    %v390 = vunpack.c.0.s8 %v118
    %v391 = vunpack.c.0.s8 %v119
    %v392 = vunpack.c.0.s8 %v120
    %v393 = vunpack.c.0.s8 %v121
    %v394 = vunpack.c.0.s8 %v122
    %v395 = vunpack.c.0.s8 %v123
    %v396 = vunpack.c.0.s8 %v124
    %v397 = vunpack.c.0.s8 %v125
    %v398 = vunpack.c.0.s8 %v126
    %v399 = vunpack.c.0.s8 %v127
    %v400 = vunpack.c.0.s8 %v128
    %v401 = vunpack.c.0.s8 %v129
    %v402 = vunpack.c.0.s8 %v130
    %v403 = vunpack.c.0.s8 %v131
    %v404 = vunpack.c.0.s8 %v132
    %v405 = vunpack.c.1.s8 %v117
    %v406 = vunpack.c.1.s8 %v118
    %v407 = vunpack.c.1.s8 %v119
    %v408 = vunpack.c.1.s8 %v120
    %v409 = vunpack.c.1.s8 %v121
    %v410 = vunpack.c.1.s8 %v122
    %v411 = vunpack.c.1.s8 %v123
    %v412 = vunpack.c.1.s8 %v124
    %v413 = vunpack.c.1.s8 %v125
    %v414 = vunpack.c.1.s8 %v126
    %v415 = vunpack.c.1.s8 %v127
    %v416 = vunpack.c.1.s8 %v128
    %v417 = vunpack.c.1.s8 %v129
    %v418 = vunpack.c.1.s8 %v130
    %v419 = vunpack.c.1.s8 %v131
    %v420 = vunpack.c.1.s8 %v132
    %v421 = vunpack.c.2.s8 %v117
    %v422 = vunpack.c.2.s8 %v118
    %v423 = vunpack.c.2.s8 %v119
    %v424 = vunpack.c.2.s8 %v120
    %v425 = vunpack.c.2.s8 %v121
    %v426 = vunpack.c.2.s8 %v122
    %v427 = vunpack.c.2.s8 %v123
    %v428 = vunpack.c.2.s8 %v124
    %v429 = vunpack.c.2.s8 %v125
    %v430 = vunpack.c.2.s8 %v126
    %v431 = vunpack.c.2.s8 %v127
    %v432 = vunpack.c.2.s8 %v128
    %v433 = vunpack.c.2.s8 %v129
    %v434 = vunpack.c.2.s8 %v130
    %v435 = vunpack.c.2.s8 %v131
    %v436 = vunpack.c.2.s8 %v132
    %v437 = vunpack.c.3.s8 %v117
    %v438 = vunpack.c.3.s8 %v118
    %v439 = vunpack.c.3.s8 %v119
    %v440 = vunpack.c.3.s8 %v120
    %v441 = vunpack.c.3.s8 %v121
    %v442 = vunpack.c.3.s8 %v122
    %v443 = vunpack.c.3.s8 %v123
    %v444 = vunpack.c.3.s8 %v124
    %v445 = vunpack.c.3.s8 %v125
    %v446 = vunpack.c.3.s8 %v126
    %v447 = vunpack.c.3.s8 %v127
    %v448 = vunpack.c.3.s8 %v128
    %v449 = vunpack.c.3.s8 %v129
    %v450 = vunpack.c.3.s8 %v130
    %v451 = vunpack.c.3.s8 %v131
    %v452 = vunpack.c.3.s8 %v132
    %v453 = vunpack.c.0.s8 %v133
    %v454 = vunpack.c.0.s8 %v134
    %v455 = vunpack.c.0.s8 %v135
    %v456 = vunpack.c.0.s8 %v136
    %v457 = vunpack.c.0.s8 %v137
    %v458 = vunpack.c.0.s8 %v138
    %v459 = vunpack.c.0.s8 %v139
    %v460 = vunpack.c.0.s8 %v140
    %v461 = vunpack.c.0.s8 %v141
    %v462 = vunpack.c.0.s8 %v142
    %v463 = vunpack.c.0.s8 %v143
    %v464 = vunpack.c.0.s8 %v144
    %v465 = vunpack.c.0.s8 %v145
    %v466 = vunpack.c.0.s8 %v146
    %v467 = vunpack.c.0.s8 %v147
    %v468 = vunpack.c.0.s8 %v148
    %v469 = vunpack.c.1.s8 %v133
    %v470 = vunpack.c.1.s8 %v134
    %v471 = vunpack.c.1.s8 %v135
    %v472 = vunpack.c.1.s8 %v136
    %v473 = vunpack.c.1.s8 %v137
    %v474 = vunpack.c.1.s8 %v138
    %v475 = vunpack.c.1.s8 %v139
    %v476 = vunpack.c.1.s8 %v140
    %v477 = vunpack.c.1.s8 %v141
    %v478 = vunpack.c.1.s8 %v142
    %v479 = vunpack.c.1.s8 %v143
    %v480 = vunpack.c.1.s8 %v144
    %v481 = vunpack.c.1.s8 %v145
    %v482 = vunpack.c.1.s8 %v146
    %v483 = vunpack.c.1.s8 %v147
    %v484 = vunpack.c.1.s8 %v148
    %v485 = vunpack.c.2.s8 %v133
    %v486 = vunpack.c.2.s8 %v134
    %v487 = vunpack.c.2.s8 %v135
    %v488 = vunpack.c.2.s8 %v136
    %v489 = vunpack.c.2.s8 %v137
    %v490 = vunpack.c.2.s8 %v138
    %v491 = vunpack.c.2.s8 %v139
    %v492 = vunpack.c.2.s8 %v140
    %v493 = vunpack.c.2.s8 %v141
    %v494 = vunpack.c.2.s8 %v142
    %v495 = vunpack.c.2.s8 %v143
    %v496 = vunpack.c.2.s8 %v144
    %v497 = vunpack.c.2.s8 %v145
    %v498 = vunpack.c.2.s8 %v146
    %v499 = vunpack.c.2.s8 %v147
    %v500 = vunpack.c.2.s8 %v148
    %v501 = vunpack.c.3.s8 %v133
    %v502 = vunpack.c.3.s8 %v134
    %v503 = vunpack.c.3.s8 %v135
    %v504 = vunpack.c.3.s8 %v136
    %v505 = vunpack.c.3.s8 %v137
    %v506 = vunpack.c.3.s8 %v138
    %v507 = vunpack.c.3.s8 %v139
    %v508 = vunpack.c.3.s8 %v140
    %v509 = vunpack.c.3.s8 %v141
    %v510 = vunpack.c.3.s8 %v142
    %v511 = vunpack.c.3.s8 %v143
    %v512 = vunpack.c.3.s8 %v144
    %v513 = vunpack.c.3.s8 %v145
    %v514 = vunpack.c.3.s8 %v146
    %v515 = vunpack.c.3.s8 %v147
    %v516 = vunpack.c.3.s8 %v148
    %v517 = vunpack.c.0.s8 %v149
    %v518 = vunpack.c.0.s8 %v150
    %v519 = vunpack.c.0.s8 %v151
    %v520 = vunpack.c.0.s8 %v152
    %v521 = vunpack.c.0.s8 %v153
    %v522 = vunpack.c.0.s8 %v154
    %v523 = vunpack.c.0.s8 %v155
    %v524 = vunpack.c.0.s8 %v156
    %v525 = vunpack.c.0.s8 %v157
    %v526 = vunpack.c.0.s8 %v158
    %v527 = vunpack.c.0.s8 %v159
    %v528 = vunpack.c.0.s8 %v160
    %v529 = vunpack.c.0.s8 %v161
    %v530 = vunpack.c.0.s8 %v162
    %v531 = vunpack.c.0.s8 %v163
    %v532 = vunpack.c.0.s8 %v164
    %v533 = vunpack.c.1.s8 %v149
    %v534 = vunpack.c.1.s8 %v150
    %v535 = vunpack.c.1.s8 %v151
    %v536 = vunpack.c.1.s8 %v152
    %v537 = vunpack.c.1.s8 %v153
    %v538 = vunpack.c.1.s8 %v154
    %v539 = vunpack.c.1.s8 %v155
    %v540 = vunpack.c.1.s8 %v156
    %v541 = vunpack.c.1.s8 %v157
    %v542 = vunpack.c.1.s8 %v158
    %v543 = vunpack.c.1.s8 %v159
    %v544 = vunpack.c.1.s8 %v160
    %v545 = vunpack.c.1.s8 %v161
    %v546 = vunpack.c.1.s8 %v162
    %v547 = vunpack.c.1.s8 %v163
    %v548 = vunpack.c.1.s8 %v164
    %v549 = vunpack.c.2.s8 %v149
    %v550 = vunpack.c.2.s8 %v150
    %v551 = vunpack.c.2.s8 %v151
    %v552 = vunpack.c.2.s8 %v152
    %v553 = vunpack.c.2.s8 %v153
    %v554 = vunpack.c.2.s8 %v154
    %v555 = vunpack.c.2.s8 %v155
    %v556 = vunpack.c.2.s8 %v156
    %v557 = vunpack.c.2.s8 %v157
    %v558 = vunpack.c.2.s8 %v158
    %v559 = vunpack.c.2.s8 %v159
    %v560 = vunpack.c.2.s8 %v160
    %v561 = vunpack.c.2.s8 %v161
    %v562 = vunpack.c.2.s8 %v162
    %v563 = vunpack.c.2.s8 %v163
    %v564 = vunpack.c.2.s8 %v164
    %v565 = vunpack.c.3.s8 %v149
    %v566 = vunpack.c.3.s8 %v150
    %v567 = vunpack.c.3.s8 %v151
    %v568 = vunpack.c.3.s8 %v152
    %v569 = vunpack.c.3.s8 %v153
    %v570 = vunpack.c.3.s8 %v154
    %v571 = vunpack.c.3.s8 %v155
    %v572 = vunpack.c.3.s8 %v156
    %v573 = vunpack.c.3.s8 %v157
    %v574 = vunpack.c.3.s8 %v158
    %v575 = vunpack.c.3.s8 %v159
    %v576 = vunpack.c.3.s8 %v160
    %v577 = vunpack.c.3.s8 %v161
    %v578 = vunpack.c.3.s8 %v162
    %v579 = vunpack.c.3.s8 %v163
    %v580 = vunpack.c.3.s8 %v164
    %v581 = vunpack.c.0.s8 %v165
    %v582 = vunpack.c.0.s8 %v166
    %v583 = vunpack.c.0.s8 %v167
    %v584 = vunpack.c.0.s8 %v168
    %v585 = vunpack.c.0.s8 %v169
    %v586 = vunpack.c.0.s8 %v170
    %v587 = vunpack.c.0.s8 %v171
    %v588 = vunpack.c.0.s8 %v172
    %v589 = vunpack.c.0.s8 %v173
    %v590 = vunpack.c.0.s8 %v174
    %v591 = vunpack.c.0.s8 %v175
    %v592 = vunpack.c.0.s8 %v176
    %v593 = vunpack.c.0.s8 %v177
    %v594 = vunpack.c.0.s8 %v178
    %v595 = vunpack.c.0.s8 %v179
    %v596 = vunpack.c.0.s8 %v180
    %v597 = vunpack.c.1.s8 %v165
    %v598 = vunpack.c.1.s8 %v166
    %v599 = vunpack.c.1.s8 %v167
    %v600 = vunpack.c.1.s8 %v168
    %v601 = vunpack.c.1.s8 %v169
    %v602 = vunpack.c.1.s8 %v170
    %v603 = vunpack.c.1.s8 %v171
    %v604 = vunpack.c.1.s8 %v172
    %v605 = vunpack.c.1.s8 %v173
    %v606 = vunpack.c.1.s8 %v174
    %v607 = vunpack.c.1.s8 %v175
    %v608 = vunpack.c.1.s8 %v176
    %v609 = vunpack.c.1.s8 %v177
    %v610 = vunpack.c.1.s8 %v178
    %v611 = vunpack.c.1.s8 %v179
    %v612 = vunpack.c.1.s8 %v180
    %v613 = vunpack.c.2.s8 %v165
    %v614 = vunpack.c.2.s8 %v166
    %v615 = vunpack.c.2.s8 %v167
    %v616 = vunpack.c.2.s8 %v168
    %v617 = vunpack.c.2.s8 %v169
    %v618 = vunpack.c.2.s8 %v170
    %v619 = vunpack.c.2.s8 %v171
    %v620 = vunpack.c.2.s8 %v172
    %v621 = vunpack.c.2.s8 %v173
    %v622 = vunpack.c.2.s8 %v174
    %v623 = vunpack.c.2.s8 %v175
    %v624 = vunpack.c.2.s8 %v176
    %v625 = vunpack.c.2.s8 %v177
    %v626 = vunpack.c.2.s8 %v178
    %v627 = vunpack.c.2.s8 %v179
    %v628 = vunpack.c.2.s8 %v180
    %v629 = vunpack.c.3.s8 %v165
    %v630 = vunpack.c.3.s8 %v166
    %v631 = vunpack.c.3.s8 %v167
    %v632 = vunpack.c.3.s8 %v168
    %v633 = vunpack.c.3.s8 %v169
    %v634 = vunpack.c.3.s8 %v170
    %v635 = vunpack.c.3.s8 %v171
    %v636 = vunpack.c.3.s8 %v172
    %v637 = vunpack.c.3.s8 %v173
    %v638 = vunpack.c.3.s8 %v174
    %v639 = vunpack.c.3.s8 %v175
    %v640 = vunpack.c.3.s8 %v176
    %v641 = vunpack.c.3.s8 %v177
    %v642 = vunpack.c.3.s8 %v178
    %v643 = vunpack.c.3.s8 %v179
    %v644 = vunpack.c.3.s8 %v180
    %v645 = vunpack.c.0.s8 %v181
    %v646 = vunpack.c.0.s8 %v182
    %v647 = vunpack.c.0.s8 %v183
    %v648 = vunpack.c.0.s8 %v184
    %v649 = vunpack.c.0.s8 %v185
    %v650 = vunpack.c.0.s8 %v186
    %v651 = vunpack.c.0.s8 %v187
    %v652 = vunpack.c.0.s8 %v188
    %v653 = vunpack.c.0.s8 %v189
    %v654 = vunpack.c.0.s8 %v190
    %v655 = vunpack.c.0.s8 %v191
    %v656 = vunpack.c.0.s8 %v192
    %v657 = vunpack.c.0.s8 %v193
    %v658 = vunpack.c.0.s8 %v194
    %v659 = vunpack.c.0.s8 %v195
    %v660 = vunpack.c.0.s8 %v196
    %v661 = vunpack.c.1.s8 %v181
    %v662 = vunpack.c.1.s8 %v182
    %v663 = vunpack.c.1.s8 %v183
    %v664 = vunpack.c.1.s8 %v184
    %v665 = vunpack.c.1.s8 %v185
    %v666 = vunpack.c.1.s8 %v186
    %v667 = vunpack.c.1.s8 %v187
    %v668 = vunpack.c.1.s8 %v188
    %v669 = vunpack.c.1.s8 %v189
    %v670 = vunpack.c.1.s8 %v190
    %v671 = vunpack.c.1.s8 %v191
    %v672 = vunpack.c.1.s8 %v192
    %v673 = vunpack.c.1.s8 %v193
    %v674 = vunpack.c.1.s8 %v194
    %v675 = vunpack.c.1.s8 %v195
    %v676 = vunpack.c.1.s8 %v196
    %v677 = vunpack.c.2.s8 %v181
    %v678 = vunpack.c.2.s8 %v182
    %v679 = vunpack.c.2.s8 %v183
    %v680 = vunpack.c.2.s8 %v184
    %v681 = vunpack.c.2.s8 %v185
    %v682 = vunpack.c.2.s8 %v186
    %v683 = vunpack.c.2.s8 %v187
    %v684 = vunpack.c.2.s8 %v188
    %v685 = vunpack.c.2.s8 %v189
    %v686 = vunpack.c.2.s8 %v190
    %v687 = vunpack.c.2.s8 %v191
    %v688 = vunpack.c.2.s8 %v192
    %v689 = vunpack.c.2.s8 %v193
    %v690 = vunpack.c.2.s8 %v194
    %v691 = vunpack.c.2.s8 %v195
    %v692 = vunpack.c.2.s8 %v196
    %v693 = vunpack.c.3.s8 %v181
    %v694 = vunpack.c.3.s8 %v182
    %v695 = vunpack.c.3.s8 %v183
    %v696 = vunpack.c.3.s8 %v184
    %v697 = vunpack.c.3.s8 %v185
    %v698 = vunpack.c.3.s8 %v186
    %v699 = vunpack.c.3.s8 %v187
    %v700 = vunpack.c.3.s8 %v188
    %v701 = vunpack.c.3.s8 %v189
    %v702 = vunpack.c.3.s8 %v190
    %v703 = vunpack.c.3.s8 %v191
    %v704 = vunpack.c.3.s8 %v192
    %v705 = vunpack.c.3.s8 %v193
    %v706 = vunpack.c.3.s8 %v194
    %v707 = vunpack.c.3.s8 %v195
    %v708 = vunpack.c.3.s8 %v196
    %v709 = vcvt.s32.f32 %v197
    %v710 = vcvt.s32.f32 %v198
    %v711 = vcvt.s32.f32 %v199
    %v712 = vcvt.s32.f32 %v200
    %v713 = vcvt.s32.f32 %v201
    %v714 = vcvt.s32.f32 %v202
    %v715 = vcvt.s32.f32 %v203
    %v716 = vcvt.s32.f32 %v204
    %v717 = vcvt.s32.f32 %v205
    %v718 = vcvt.s32.f32 %v206
    %v719 = vcvt.s32.f32 %v207
    %v720 = vcvt.s32.f32 %v208
    %v721 = vcvt.s32.f32 %v209
    %v722 = vcvt.s32.f32 %v210
    %v723 = vcvt.s32.f32 %v211
    %v724 = vcvt.s32.f32 %v212
    %v725 = vcvt.s32.f32 %v213
    %v726 = vcvt.s32.f32 %v214
    %v727 = vcvt.s32.f32 %v215
    %v728 = vcvt.s32.f32 %v216
    %v729 = vcvt.s32.f32 %v217
    %v730 = vcvt.s32.f32 %v218
    %v731 = vcvt.s32.f32 %v219
    %v732 = vcvt.s32.f32 %v220
    %v733 = vcvt.s32.f32 %v221
    %v734 = vcvt.s32.f32 %v222
    %v735 = vcvt.s32.f32 %v223
    %v736 = vcvt.s32.f32 %v224
    %v737 = vcvt.s32.f32 %v225
    %v738 = vcvt.s32.f32 %v226
    %v739 = vcvt.s32.f32 %v227
    %v740 = vcvt.s32.f32 %v228
    %v741 = vcvt.s32.f32 %v229
    %v742 = vcvt.s32.f32 %v230
    %v743 = vcvt.s32.f32 %v231
    %v744 = vcvt.s32.f32 %v232
    %v745 = vcvt.s32.f32 %v233
    %v746 = vcvt.s32.f32 %v234
    %v747 = vcvt.s32.f32 %v235
    %v748 = vcvt.s32.f32 %v236
    %v749 = vcvt.s32.f32 %v237
    %v750 = vcvt.s32.f32 %v238
    %v751 = vcvt.s32.f32 %v239
    %v752 = vcvt.s32.f32 %v240
    %v753 = vcvt.s32.f32 %v241
    %v754 = vcvt.s32.f32 %v242
    %v755 = vcvt.s32.f32 %v243
    %v756 = vcvt.s32.f32 %v244
    %v757 = vcvt.s32.f32 %v245
    %v758 = vcvt.s32.f32 %v246
    %v759 = vcvt.s32.f32 %v247
    %v760 = vcvt.s32.f32 %v248
    %v761 = vcvt.s32.f32 %v249
    %v762 = vcvt.s32.f32 %v250
    %v763 = vcvt.s32.f32 %v251
    %v764 = vcvt.s32.f32 %v252
    %v765 = vcvt.s32.f32 %v253
    %v766 = vcvt.s32.f32 %v254
    %v767 = vcvt.s32.f32 %v255
    %v768 = vcvt.s32.f32 %v256
    %v769 = vcvt.s32.f32 %v257
    %v770 = vcvt.s32.f32 %v258
    %v771 = vcvt.s32.f32 %v259
    %v772 = vcvt.s32.f32 %v260
    %v773 = vcvt.s32.f32 %v261
    %v774 = vcvt.s32.f32 %v262
    %v775 = vcvt.s32.f32 %v263
    %v776 = vcvt.s32.f32 %v264
    %v777 = vcvt.s32.f32 %v265
    %v778 = vcvt.s32.f32 %v266
    %v779 = vcvt.s32.f32 %v267
    %v780 = vcvt.s32.f32 %v268
    %v781 = vcvt.s32.f32 %v269
    %v782 = vcvt.s32.f32 %v270
    %v783 = vcvt.s32.f32 %v271
    %v784 = vcvt.s32.f32 %v272
    %v785 = vcvt.s32.f32 %v273
    %v786 = vcvt.s32.f32 %v274
    %v787 = vcvt.s32.f32 %v275
    %v788 = vcvt.s32.f32 %v276
    %v789 = vcvt.s32.f32 %v277
    %v790 = vcvt.s32.f32 %v278
    %v791 = vcvt.s32.f32 %v279
    %v792 = vcvt.s32.f32 %v280
    %v793 = vcvt.s32.f32 %v281
    %v794 = vcvt.s32.f32 %v282
    %v795 = vcvt.s32.f32 %v283
    %v796 = vcvt.s32.f32 %v284
    %v797 = vcvt.s32.f32 %v285
    %v798 = vcvt.s32.f32 %v286
    %v799 = vcvt.s32.f32 %v287
    %v800 = vcvt.s32.f32 %v288
    %v801 = vcvt.s32.f32 %v289
    %v802 = vcvt.s32.f32 %v290
    %v803 = vcvt.s32.f32 %v291
    %v804 = vcvt.s32.f32 %v292
    %v805 = vcvt.s32.f32 %v293
    %v806 = vcvt.s32.f32 %v294
    %v807 = vcvt.s32.f32 %v295
    %v808 = vcvt.s32.f32 %v296
    %v809 = vcvt.s32.f32 %v297
    %v810 = vcvt.s32.f32 %v298
    %v811 = vcvt.s32.f32 %v299
    %v812 = vcvt.s32.f32 %v300
    %v813 = vcvt.s32.f32 %v301
    %v814 = vcvt.s32.f32 %v302
    %v815 = vcvt.s32.f32 %v303
    %v816 = vcvt.s32.f32 %v304
    %v817 = vcvt.s32.f32 %v305
    %v818 = vcvt.s32.f32 %v306
    %v819 = vcvt.s32.f32 %v307
    %v820 = vcvt.s32.f32 %v308
    %v821 = vcvt.s32.f32 %v309
    %v822 = vcvt.s32.f32 %v310
    %v823 = vcvt.s32.f32 %v311
    %v824 = vcvt.s32.f32 %v312
    %v825 = vcvt.s32.f32 %v313
    %v826 = vcvt.s32.f32 %v314
    %v827 = vcvt.s32.f32 %v315
    %v828 = vcvt.s32.f32 %v316
    %v829 = vcvt.s32.f32 %v317
    %v830 = vcvt.s32.f32 %v318
    %v831 = vcvt.s32.f32 %v319
    %v832 = vcvt.s32.f32 %v320
    %v833 = vcvt.s32.f32 %v321
    %v834 = vcvt.s32.f32 %v322
    %v835 = vcvt.s32.f32 %v323
    %v836 = vcvt.s32.f32 %v324
    %v837 = vcvt.s32.f32 %v325
    %v838 = vcvt.s32.f32 %v326
    %v839 = vcvt.s32.f32 %v327
    %v840 = vcvt.s32.f32 %v328
    %v841 = vcvt.s32.f32 %v329
    %v842 = vcvt.s32.f32 %v330
    %v843 = vcvt.s32.f32 %v331
    %v844 = vcvt.s32.f32 %v332
    %v845 = vcvt.s32.f32 %v333
    %v846 = vcvt.s32.f32 %v334
    %v847 = vcvt.s32.f32 %v335
    %v848 = vcvt.s32.f32 %v336
    %v849 = vcvt.s32.f32 %v337
    %v850 = vcvt.s32.f32 %v338
    %v851 = vcvt.s32.f32 %v339
    %v852 = vcvt.s32.f32 %v340
    %v853 = vcvt.s32.f32 %v341
    %v854 = vcvt.s32.f32 %v342
    %v855 = vcvt.s32.f32 %v343
    %v856 = vcvt.s32.f32 %v344
    %v857 = vcvt.s32.f32 %v345
    %v858 = vcvt.s32.f32 %v346
    %v859 = vcvt.s32.f32 %v347
    %v860 = vcvt.s32.f32 %v348
    %v861 = vcvt.s32.f32 %v349
    %v862 = vcvt.s32.f32 %v350
    %v863 = vcvt.s32.f32 %v351
    %v864 = vcvt.s32.f32 %v352
    %v865 = vcvt.s32.f32 %v353
    %v866 = vcvt.s32.f32 %v354
    %v867 = vcvt.s32.f32 %v355
    %v868 = vcvt.s32.f32 %v356
    %v869 = vcvt.s32.f32 %v357
    %v870 = vcvt.s32.f32 %v358
    %v871 = vcvt.s32.f32 %v359
    %v872 = vcvt.s32.f32 %v360
    %v873 = vcvt.s32.f32 %v361
    %v874 = vcvt.s32.f32 %v362
    %v875 = vcvt.s32.f32 %v363
    %v876 = vcvt.s32.f32 %v364
    %v877 = vcvt.s32.f32 %v365
    %v878 = vcvt.s32.f32 %v366
    %v879 = vcvt.s32.f32 %v367
    %v880 = vcvt.s32.f32 %v368
    %v881 = vcvt.s32.f32 %v369
    %v882 = vcvt.s32.f32 %v370
    %v883 = vcvt.s32.f32 %v371
    %v884 = vcvt.s32.f32 %v372
    %v885 = vcvt.s32.f32 %v373
    %v886 = vcvt.s32.f32 %v374
    %v887 = vcvt.s32.f32 %v375
    %v888 = vcvt.s32.f32 %v376
    %v889 = vcvt.s32.f32 %v377
    %v890 = vcvt.s32.f32 %v378
    %v891 = vcvt.s32.f32 %v379
    %v892 = vcvt.s32.f32 %v380
    %v893 = vcvt.s32.f32 %v381
    %v894 = vcvt.s32.f32 %v382
    %v895 = vcvt.s32.f32 %v383
    %v896 = vcvt.s32.f32 %v384
    %v897 = vcvt.s32.f32 %v385
    %v898 = vcvt.s32.f32 %v386
    %v899 = vcvt.s32.f32 %v387
    %v900 = vcvt.s32.f32 %v388
    %v901 = vcvt.s32.f32 %v389
    %v902 = vcvt.s32.f32 %v390
    %v903 = vcvt.s32.f32 %v391
    %v904 = vcvt.s32.f32 %v392
    %v905 = vcvt.s32.f32 %v393
    %v906 = vcvt.s32.f32 %v394
    %v907 = vcvt.s32.f32 %v395
    %v908 = vcvt.s32.f32 %v396
    %v909 = vcvt.s32.f32 %v397
    %v910 = vcvt.s32.f32 %v398
    %v911 = vcvt.s32.f32 %v399
    %v912 = vcvt.s32.f32 %v400
    %v913 = vcvt.s32.f32 %v401
    %v914 = vcvt.s32.f32 %v402
    %v915 = vcvt.s32.f32 %v403
    %v916 = vcvt.s32.f32 %v404
    %v917 = vcvt.s32.f32 %v405
    %v918 = vcvt.s32.f32 %v406
    %v919 = vcvt.s32.f32 %v407
    %v920 = vcvt.s32.f32 %v408
    %v921 = vcvt.s32.f32 %v409
    %v922 = vcvt.s32.f32 %v410
    %v923 = vcvt.s32.f32 %v411
    %v924 = vcvt.s32.f32 %v412
    %v925 = vcvt.s32.f32 %v413
    %v926 = vcvt.s32.f32 %v414
    %v927 = vcvt.s32.f32 %v415
    %v928 = vcvt.s32.f32 %v416
    %v929 = vcvt.s32.f32 %v417
    %v930 = vcvt.s32.f32 %v418
    %v931 = vcvt.s32.f32 %v419
    %v932 = vcvt.s32.f32 %v420
    %v933 = vcvt.s32.f32 %v421
    %v934 = vcvt.s32.f32 %v422
    %v935 = vcvt.s32.f32 %v423
    %v936 = vcvt.s32.f32 %v424
    %v937 = vcvt.s32.f32 %v425
    %v938 = vcvt.s32.f32 %v426
    %v939 = vcvt.s32.f32 %v427
    %v940 = vcvt.s32.f32 %v428
    %v941 = vcvt.s32.f32 %v429
    %v942 = vcvt.s32.f32 %v430
    %v943 = vcvt.s32.f32 %v431
    %v944 = vcvt.s32.f32 %v432
    %v945 = vcvt.s32.f32 %v433
    %v946 = vcvt.s32.f32 %v434
    %v947 = vcvt.s32.f32 %v435
    %v948 = vcvt.s32.f32 %v436
    %v949 = vcvt.s32.f32 %v437
    %v950 = vcvt.s32.f32 %v438
    %v951 = vcvt.s32.f32 %v439
    %v952 = vcvt.s32.f32 %v440
    %v953 = vcvt.s32.f32 %v441
    %v954 = vcvt.s32.f32 %v442
    %v955 = vcvt.s32.f32 %v443
    %v956 = vcvt.s32.f32 %v444
    %v957 = vcvt.s32.f32 %v445
    %v958 = vcvt.s32.f32 %v446
    %v959 = vcvt.s32.f32 %v447
    %v960 = vcvt.s32.f32 %v448
    %v961 = vcvt.s32.f32 %v449
    %v962 = vcvt.s32.f32 %v450
    %v963 = vcvt.s32.f32 %v451
    %v964 = vcvt.s32.f32 %v452
    %v965 = vcvt.s32.f32 %v453
    %v966 = vcvt.s32.f32 %v454
    %v967 = vcvt.s32.f32 %v455
    %v968 = vcvt.s32.f32 %v456
    %v969 = vcvt.s32.f32 %v457
    %v970 = vcvt.s32.f32 %v458
    %v971 = vcvt.s32.f32 %v459
    %v972 = vcvt.s32.f32 %v460
    %v973 = vcvt.s32.f32 %v461
    %v974 = vcvt.s32.f32 %v462
    %v975 = vcvt.s32.f32 %v463
    %v976 = vcvt.s32.f32 %v464
    %v977 = vcvt.s32.f32 %v465
    %v978 = vcvt.s32.f32 %v466
    %v979 = vcvt.s32.f32 %v467
    %v980 = vcvt.s32.f32 %v468
    %v981 = vcvt.s32.f32 %v469
    %v982 = vcvt.s32.f32 %v470
    %v983 = vcvt.s32.f32 %v471
    %v984 = vcvt.s32.f32 %v472
    %v985 = vcvt.s32.f32 %v473
    %v986 = vcvt.s32.f32 %v474
    %v987 = vcvt.s32.f32 %v475
    %v988 = vcvt.s32.f32 %v476
    %v989 = vcvt.s32.f32 %v477
    %v990 = vcvt.s32.f32 %v478
    %v991 = vcvt.s32.f32 %v479
    %v992 = vcvt.s32.f32 %v480
    %v993 = vcvt.s32.f32 %v481
    %v994 = vcvt.s32.f32 %v482
    %v995 = vcvt.s32.f32 %v483
    %v996 = vcvt.s32.f32 %v484
    %v997 = vcvt.s32.f32 %v485
    %v998 = vcvt.s32.f32 %v486
    %v999 = vcvt.s32.f32 %v487
    %v1000 = vcvt.s32.f32 %v488
    %v1001 = vcvt.s32.f32 %v489
    %v1002 = vcvt.s32.f32 %v490
    %v1003 = vcvt.s32.f32 %v491
    %v1004 = vcvt.s32.f32 %v492
    %v1005 = vcvt.s32.f32 %v493
    %v1006 = vcvt.s32.f32 %v494
    %v1007 = vcvt.s32.f32 %v495
    %v1008 = vcvt.s32.f32 %v496
    %v1009 = vcvt.s32.f32 %v497
    %v1010 = vcvt.s32.f32 %v498
    %v1011 = vcvt.s32.f32 %v499
    %v1012 = vcvt.s32.f32 %v500
    %v1013 = vcvt.s32.f32 %v501
    %v1014 = vcvt.s32.f32 %v502
    %v1015 = vcvt.s32.f32 %v503
    %v1016 = vcvt.s32.f32 %v504
    %v1017 = vcvt.s32.f32 %v505
    %v1018 = vcvt.s32.f32 %v506
    %v1019 = vcvt.s32.f32 %v507
    %v1020 = vcvt.s32.f32 %v508
    %v1021 = vcvt.s32.f32 %v509
    %v1022 = vcvt.s32.f32 %v510
    %v1023 = vcvt.s32.f32 %v511
    %v1024 = vcvt.s32.f32 %v512
    %v1025 = vcvt.s32.f32 %v513
    %v1026 = vcvt.s32.f32 %v514
    %v1027 = vcvt.s32.f32 %v515
    %v1028 = vcvt.s32.f32 %v516
    %v1029 = vcvt.s32.f32 %v517
    %v1030 = vcvt.s32.f32 %v518
    %v1031 = vcvt.s32.f32 %v519
    %v1032 = vcvt.s32.f32 %v520
    %v1033 = vcvt.s32.f32 %v521
    %v1034 = vcvt.s32.f32 %v522
    %v1035 = vcvt.s32.f32 %v523
    %v1036 = vcvt.s32.f32 %v524
    %v1037 = vcvt.s32.f32 %v525
    %v1038 = vcvt.s32.f32 %v526
    %v1039 = vcvt.s32.f32 %v527
    %v1040 = vcvt.s32.f32 %v528
    %v1041 = vcvt.s32.f32 %v529
    %v1042 = vcvt.s32.f32 %v530
    %v1043 = vcvt.s32.f32 %v531
    %v1044 = vcvt.s32.f32 %v532
    %v1045 = vcvt.s32.f32 %v533
    %v1046 = vcvt.s32.f32 %v534
    %v1047 = vcvt.s32.f32 %v535
    %v1048 = vcvt.s32.f32 %v536
    %v1049 = vcvt.s32.f32 %v537
    %v1050 = vcvt.s32.f32 %v538
    %v1051 = vcvt.s32.f32 %v539
    %v1052 = vcvt.s32.f32 %v540
    %v1053 = vcvt.s32.f32 %v541
    %v1054 = vcvt.s32.f32 %v542
    %v1055 = vcvt.s32.f32 %v543
    %v1056 = vcvt.s32.f32 %v544
    %v1057 = vcvt.s32.f32 %v545
    %v1058 = vcvt.s32.f32 %v546
    %v1059 = vcvt.s32.f32 %v547
    %v1060 = vcvt.s32.f32 %v548
    %v1061 = vcvt.s32.f32 %v549
    %v1062 = vcvt.s32.f32 %v550
    %v1063 = vcvt.s32.f32 %v551
    %v1064 = vcvt.s32.f32 %v552
    %v1065 = vcvt.s32.f32 %v553
    %v1066 = vcvt.s32.f32 %v554
    %v1067 = vcvt.s32.f32 %v555
    %v1068 = vcvt.s32.f32 %v556
    %v1069 = vcvt.s32.f32 %v557
    %v1070 = vcvt.s32.f32 %v558
    %v1071 = vcvt.s32.f32 %v559
    %v1072 = vcvt.s32.f32 %v560
    %v1073 = vcvt.s32.f32 %v561
    %v1074 = vcvt.s32.f32 %v562
    %v1075 = vcvt.s32.f32 %v563
    %v1076 = vcvt.s32.f32 %v564
    %v1077 = vcvt.s32.f32 %v565
    %v1078 = vcvt.s32.f32 %v566
    %v1079 = vcvt.s32.f32 %v567
    %v1080 = vcvt.s32.f32 %v568
    %v1081 = vcvt.s32.f32 %v569
    %v1082 = vcvt.s32.f32 %v570
    %v1083 = vcvt.s32.f32 %v571
    %v1084 = vcvt.s32.f32 %v572
    %v1085 = vcvt.s32.f32 %v573
    %v1086 = vcvt.s32.f32 %v574
    %v1087 = vcvt.s32.f32 %v575
    %v1088 = vcvt.s32.f32 %v576
    %v1089 = vcvt.s32.f32 %v577
    %v1090 = vcvt.s32.f32 %v578
    %v1091 = vcvt.s32.f32 %v579
    %v1092 = vcvt.s32.f32 %v580
    %v1093 = vcvt.s32.f32 %v581
    %v1094 = vcvt.s32.f32 %v582
    %v1095 = vcvt.s32.f32 %v583
    %v1096 = vcvt.s32.f32 %v584
    %v1097 = vcvt.s32.f32 %v585
    %v1098 = vcvt.s32.f32 %v586
    %v1099 = vcvt.s32.f32 %v587
    %v1100 = vcvt.s32.f32 %v588
    %v1101 = vcvt.s32.f32 %v589
    %v1102 = vcvt.s32.f32 %v590
    %v1103 = vcvt.s32.f32 %v591
    %v1104 = vcvt.s32.f32 %v592
    %v1105 = vcvt.s32.f32 %v593
    %v1106 = vcvt.s32.f32 %v594
    %v1107 = vcvt.s32.f32 %v595
    %v1108 = vcvt.s32.f32 %v596
    %v1109 = vcvt.s32.f32 %v597
    %v1110 = vcvt.s32.f32 %v598
    %v1111 = vcvt.s32.f32 %v599
    %v1112 = vcvt.s32.f32 %v600
    %v1113 = vcvt.s32.f32 %v601
    %v1114 = vcvt.s32.f32 %v602
    %v1115 = vcvt.s32.f32 %v603
    %v1116 = vcvt.s32.f32 %v604
    %v1117 = vcvt.s32.f32 %v605
    %v1118 = vcvt.s32.f32 %v606
    %v1119 = vcvt.s32.f32 %v607
    %v1120 = vcvt.s32.f32 %v608
    %v1121 = vcvt.s32.f32 %v609
    %v1122 = vcvt.s32.f32 %v610
    %v1123 = vcvt.s32.f32 %v611
    %v1124 = vcvt.s32.f32 %v612
    %v1125 = vcvt.s32.f32 %v613
    %v1126 = vcvt.s32.f32 %v614
    %v1127 = vcvt.s32.f32 %v615
    %v1128 = vcvt.s32.f32 %v616
    %v1129 = vcvt.s32.f32 %v617
    %v1130 = vcvt.s32.f32 %v618
    %v1131 = vcvt.s32.f32 %v619
    %v1132 = vcvt.s32.f32 %v620
    %v1133 = vcvt.s32.f32 %v621
    %v1134 = vcvt.s32.f32 %v622
    %v1135 = vcvt.s32.f32 %v623
    %v1136 = vcvt.s32.f32 %v624
    %v1137 = vcvt.s32.f32 %v625
    %v1138 = vcvt.s32.f32 %v626
    %v1139 = vcvt.s32.f32 %v627
    %v1140 = vcvt.s32.f32 %v628
    %v1141 = vcvt.s32.f32 %v629
    %v1142 = vcvt.s32.f32 %v630
    %v1143 = vcvt.s32.f32 %v631
    %v1144 = vcvt.s32.f32 %v632
    %v1145 = vcvt.s32.f32 %v633
    %v1146 = vcvt.s32.f32 %v634
    %v1147 = vcvt.s32.f32 %v635
    %v1148 = vcvt.s32.f32 %v636
    %v1149 = vcvt.s32.f32 %v637
    %v1150 = vcvt.s32.f32 %v638
    %v1151 = vcvt.s32.f32 %v639
    %v1152 = vcvt.s32.f32 %v640
    %v1153 = vcvt.s32.f32 %v641
    %v1154 = vcvt.s32.f32 %v642
    %v1155 = vcvt.s32.f32 %v643
    %v1156 = vcvt.s32.f32 %v644
    %v1157 = vcvt.s32.f32 %v645
    %v1158 = vcvt.s32.f32 %v646
    %v1159 = vcvt.s32.f32 %v647
    %v1160 = vcvt.s32.f32 %v648
    %v1161 = vcvt.s32.f32 %v649
    %v1162 = vcvt.s32.f32 %v650
    %v1163 = vcvt.s32.f32 %v651
    %v1164 = vcvt.s32.f32 %v652
    %v1165 = vcvt.s32.f32 %v653
    %v1166 = vcvt.s32.f32 %v654
    %v1167 = vcvt.s32.f32 %v655
    %v1168 = vcvt.s32.f32 %v656
    %v1169 = vcvt.s32.f32 %v657
    %v1170 = vcvt.s32.f32 %v658
    %v1171 = vcvt.s32.f32 %v659
    %v1172 = vcvt.s32.f32 %v660
    %v1173 = vcvt.s32.f32 %v661
    %v1174 = vcvt.s32.f32 %v662
    %v1175 = vcvt.s32.f32 %v663
    %v1176 = vcvt.s32.f32 %v664
    %v1177 = vcvt.s32.f32 %v665
    %v1178 = vcvt.s32.f32 %v666
    %v1179 = vcvt.s32.f32 %v667
    %v1180 = vcvt.s32.f32 %v668
    %v1181 = vcvt.s32.f32 %v669
    %v1182 = vcvt.s32.f32 %v670
    %v1183 = vcvt.s32.f32 %v671
    %v1184 = vcvt.s32.f32 %v672
    %v1185 = vcvt.s32.f32 %v673
    %v1186 = vcvt.s32.f32 %v674
    %v1187 = vcvt.s32.f32 %v675
    %v1188 = vcvt.s32.f32 %v676
    %v1189 = vcvt.s32.f32 %v677
    %v1190 = vcvt.s32.f32 %v678
    %v1191 = vcvt.s32.f32 %v679
    %v1192 = vcvt.s32.f32 %v680
    %v1193 = vcvt.s32.f32 %v681
    %v1194 = vcvt.s32.f32 %v682
    %v1195 = vcvt.s32.f32 %v683
    %v1196 = vcvt.s32.f32 %v684
    %v1197 = vcvt.s32.f32 %v685
    %v1198 = vcvt.s32.f32 %v686
    %v1199 = vcvt.s32.f32 %v687
    %v1200 = vcvt.s32.f32 %v688
    %v1201 = vcvt.s32.f32 %v689
    %v1202 = vcvt.s32.f32 %v690
    %v1203 = vcvt.s32.f32 %v691
    %v1204 = vcvt.s32.f32 %v692
    %v1205 = vcvt.s32.f32 %v693
    %v1206 = vcvt.s32.f32 %v694
    %v1207 = vcvt.s32.f32 %v695
    %v1208 = vcvt.s32.f32 %v696
    %v1209 = vcvt.s32.f32 %v697
    %v1210 = vcvt.s32.f32 %v698
    %v1211 = vcvt.s32.f32 %v699
    %v1212 = vcvt.s32.f32 %v700
    %v1213 = vcvt.s32.f32 %v701
    %v1214 = vcvt.s32.f32 %v702
    %v1215 = vcvt.s32.f32 %v703
    %v1216 = vcvt.s32.f32 %v704
    %v1217 = vcvt.s32.f32 %v705
    %v1218 = vcvt.s32.f32 %v706
    %v1219 = vcvt.s32.f32 %v707
    %v1220 = vcvt.s32.f32 %v708
    %v1223 = vlaneseq
    %v1224 = vshrl.u32 %v1223, 7
    %v1225 = vsub.s32 0, %v1224
    %v1226 = vrot.slane %v66, %v1225
    %v1227 = vlaneseq
    %v1228 = vshrl.u32 %v1227, 7
    %v1229 = vsub.s32 1, %v1228
    %v1230 = vrot.slane %v66, %v1229
    %v1231 = vlaneseq
    %v1232 = vshrl.u32 %v1231, 7
    %v1233 = vsub.s32 2, %v1232
    %v1234 = vrot.slane %v66, %v1233
    %v1235 = vlaneseq
    %v1236 = vshrl.u32 %v1235, 7
    %v1237 = vsub.s32 3, %v1236
    %v1238 = vrot.slane %v66, %v1237
    %v1239 = vlaneseq
    %v1240 = vshrl.u32 %v1239, 7
    %v1241 = vsub.s32 4, %v1240
    %v1242 = vrot.slane %v66, %v1241
    %v1243 = vlaneseq
    %v1244 = vshrl.u32 %v1243, 7
    %v1245 = vsub.s32 5, %v1244
    %v1246 = vrot.slane %v66, %v1245
    %v1247 = vlaneseq
    %v1248 = vshrl.u32 %v1247, 7
    %v1249 = vsub.s32 6, %v1248
    %v1250 = vrot.slane %v66, %v1249
    %v1251 = vlaneseq
    %v1252 = vshrl.u32 %v1251, 7
    %v1253 = vsub.s32 7, %v1252
    %v1254 = vrot.slane %v66, %v1253
    %v1255 = vlaneseq
    %v1256 = vshrl.u32 %v1255, 7
    %v1257 = vsub.s32 0, %v1256
    %v1258 = vrot.slane %v67, %v1257
    %v1259 = vlaneseq
    %v1260 = vshrl.u32 %v1259, 7
    %v1261 = vsub.s32 1, %v1260
    %v1262 = vrot.slane %v67, %v1261
    %v1263 = vlaneseq
    %v1264 = vshrl.u32 %v1263, 7
    %v1265 = vsub.s32 2, %v1264
    %v1266 = vrot.slane %v67, %v1265
    %v1267 = vlaneseq
    %v1268 = vshrl.u32 %v1267, 7
    %v1269 = vsub.s32 3, %v1268
    %v1270 = vrot.slane %v67, %v1269
    %v1271 = vlaneseq
    %v1272 = vshrl.u32 %v1271, 7
    %v1273 = vsub.s32 4, %v1272
    %v1274 = vrot.slane %v67, %v1273
    %v1275 = vlaneseq
    %v1276 = vshrl.u32 %v1275, 7
    %v1277 = vsub.s32 5, %v1276
    %v1278 = vrot.slane %v67, %v1277
    %v1279 = vlaneseq
    %v1280 = vshrl.u32 %v1279, 7
    %v1281 = vsub.s32 6, %v1280
    %v1282 = vrot.slane %v67, %v1281
    %v1283 = vlaneseq
    %v1284 = vshrl.u32 %v1283, 7
    %v1285 = vsub.s32 7, %v1284
    %v1286 = vrot.slane %v67, %v1285
    %v1303 = vmul.f32 %v709, %v1226
    %v1304 = vmul.f32 %v710, %v1230
    %v1305 = vmul.f32 %v711, %v1234
    %v1306 = vmul.f32 %v712, %v1238
    %v1307 = vmul.f32 %v713, %v1242
    %v1308 = vmul.f32 %v714, %v1246
    %v1309 = vmul.f32 %v715, %v1250
    %v1310 = vmul.f32 %v716, %v1254
    %v1311 = vmul.f32 %v717, %v1258
    %v1312 = vmul.f32 %v718, %v1262
    %v1313 = vmul.f32 %v719, %v1266
    %v1314 = vmul.f32 %v720, %v1270
    %v1315 = vmul.f32 %v721, %v1274
    %v1316 = vmul.f32 %v722, %v1278
    %v1317 = vmul.f32 %v723, %v1282
    %v1318 = vmul.f32 %v724, %v1286
    %v1319 = vmul.f32 %v725, %v1226
    %v1320 = vmul.f32 %v726, %v1230
    %v1321 = vmul.f32 %v727, %v1234
    %v1322 = vmul.f32 %v728, %v1238
    %v1323 = vmul.f32 %v729, %v1242
    %v1324 = vmul.f32 %v730, %v1246
    %v1325 = vmul.f32 %v731, %v1250
    %v1326 = vmul.f32 %v732, %v1254
    %v1327 = vmul.f32 %v733, %v1258
    %v1328 = vmul.f32 %v734, %v1262
    %v1329 = vmul.f32 %v735, %v1266
    %v1330 = vmul.f32 %v736, %v1270
    %v1331 = vmul.f32 %v737, %v1274
    %v1332 = vmul.f32 %v738, %v1278
    %v1333 = vmul.f32 %v739, %v1282
    %v1334 = vmul.f32 %v740, %v1286
    %v1335 = vmul.f32 %v741, %v1226
    %v1336 = vmul.f32 %v742, %v1230
    %v1337 = vmul.f32 %v743, %v1234
    %v1338 = vmul.f32 %v744, %v1238
    %v1339 = vmul.f32 %v745, %v1242
    %v1340 = vmul.f32 %v746, %v1246
    %v1341 = vmul.f32 %v747, %v1250
    %v1342 = vmul.f32 %v748, %v1254
    %v1343 = vmul.f32 %v749, %v1258
    %v1344 = vmul.f32 %v750, %v1262
    %v1345 = vmul.f32 %v751, %v1266
    %v1346 = vmul.f32 %v752, %v1270
    %v1347 = vmul.f32 %v753, %v1274
    %v1348 = vmul.f32 %v754, %v1278
    %v1349 = vmul.f32 %v755, %v1282
    %v1350 = vmul.f32 %v756, %v1286
    %v1351 = vmul.f32 %v757, %v1226
    %v1352 = vmul.f32 %v758, %v1230
    %v1353 = vmul.f32 %v759, %v1234
    %v1354 = vmul.f32 %v760, %v1238
    %v1355 = vmul.f32 %v761, %v1242
    %v1356 = vmul.f32 %v762, %v1246
    %v1357 = vmul.f32 %v763, %v1250
    %v1358 = vmul.f32 %v764, %v1254
    %v1359 = vmul.f32 %v765, %v1258
    %v1360 = vmul.f32 %v766, %v1262
    %v1361 = vmul.f32 %v767, %v1266
    %v1362 = vmul.f32 %v768, %v1270
    %v1363 = vmul.f32 %v769, %v1274
    %v1364 = vmul.f32 %v770, %v1278
    %v1365 = vmul.f32 %v771, %v1282
    %v1366 = vmul.f32 %v772, %v1286
    %v1367 = vmul.f32 %v773, %v1226
    %v1368 = vmul.f32 %v774, %v1230
    %v1369 = vmul.f32 %v775, %v1234
    %v1370 = vmul.f32 %v776, %v1238
    %v1371 = vmul.f32 %v777, %v1242
    %v1372 = vmul.f32 %v778, %v1246
    %v1373 = vmul.f32 %v779, %v1250
    %v1374 = vmul.f32 %v780, %v1254
    %v1375 = vmul.f32 %v781, %v1258
    %v1376 = vmul.f32 %v782, %v1262
    %v1377 = vmul.f32 %v783, %v1266
    %v1378 = vmul.f32 %v784, %v1270
    %v1379 = vmul.f32 %v785, %v1274
    %v1380 = vmul.f32 %v786, %v1278
    %v1381 = vmul.f32 %v787, %v1282
    %v1382 = vmul.f32 %v788, %v1286
    %v1383 = vmul.f32 %v789, %v1226
    %v1384 = vmul.f32 %v790, %v1230
    %v1385 = vmul.f32 %v791, %v1234
    %v1386 = vmul.f32 %v792, %v1238
    %v1387 = vmul.f32 %v793, %v1242
    %v1388 = vmul.f32 %v794, %v1246
    %v1389 = vmul.f32 %v795, %v1250
    %v1390 = vmul.f32 %v796, %v1254
    %v1391 = vmul.f32 %v797, %v1258
    %v1392 = vmul.f32 %v798, %v1262
    %v1393 = vmul.f32 %v799, %v1266
    %v1394 = vmul.f32 %v800, %v1270
    %v1395 = vmul.f32 %v801, %v1274
    %v1396 = vmul.f32 %v802, %v1278
    %v1397 = vmul.f32 %v803, %v1282
    %v1398 = vmul.f32 %v804, %v1286
    %v1399 = vmul.f32 %v805, %v1226
    %v1400 = vmul.f32 %v806, %v1230
    %v1401 = vmul.f32 %v807, %v1234
    %v1402 = vmul.f32 %v808, %v1238
    %v1403 = vmul.f32 %v809, %v1242
    %v1404 = vmul.f32 %v810, %v1246
    %v1405 = vmul.f32 %v811, %v1250
    %v1406 = vmul.f32 %v812, %v1254
    %v1407 = vmul.f32 %v813, %v1258
    %v1408 = vmul.f32 %v814, %v1262
    %v1409 = vmul.f32 %v815, %v1266
    %v1410 = vmul.f32 %v816, %v1270
    %v1411 = vmul.f32 %v817, %v1274
    %v1412 = vmul.f32 %v818, %v1278
    %v1413 = vmul.f32 %v819, %v1282
    %v1414 = vmul.f32 %v820, %v1286
    %v1415 = vmul.f32 %v821, %v1226
    %v1416 = vmul.f32 %v822, %v1230
    %v1417 = vmul.f32 %v823, %v1234
    %v1418 = vmul.f32 %v824, %v1238
    %v1419 = vmul.f32 %v825, %v1242
    %v1420 = vmul.f32 %v826, %v1246
    %v1421 = vmul.f32 %v827, %v1250
    %v1422 = vmul.f32 %v828, %v1254
    %v1423 = vmul.f32 %v829, %v1258
    %v1424 = vmul.f32 %v830, %v1262
    %v1425 = vmul.f32 %v831, %v1266
    %v1426 = vmul.f32 %v832, %v1270
    %v1427 = vmul.f32 %v833, %v1274
    %v1428 = vmul.f32 %v834, %v1278
    %v1429 = vmul.f32 %v835, %v1282
    %v1430 = vmul.f32 %v836, %v1286
    %v1431 = vmul.f32 %v837, %v1226
    %v1432 = vmul.f32 %v838, %v1230
    %v1433 = vmul.f32 %v839, %v1234
    %v1434 = vmul.f32 %v840, %v1238
    %v1435 = vmul.f32 %v841, %v1242
    %v1436 = vmul.f32 %v842, %v1246
    %v1437 = vmul.f32 %v843, %v1250
    %v1438 = vmul.f32 %v844, %v1254
    %v1439 = vmul.f32 %v845, %v1258
    %v1440 = vmul.f32 %v846, %v1262
    %v1441 = vmul.f32 %v847, %v1266
    %v1442 = vmul.f32 %v848, %v1270
    %v1443 = vmul.f32 %v849, %v1274
    %v1444 = vmul.f32 %v850, %v1278
    %v1445 = vmul.f32 %v851, %v1282
    %v1446 = vmul.f32 %v852, %v1286
    %v1447 = vmul.f32 %v853, %v1226
    %v1448 = vmul.f32 %v854, %v1230
    %v1449 = vmul.f32 %v855, %v1234
    %v1450 = vmul.f32 %v856, %v1238
    %v1451 = vmul.f32 %v857, %v1242
    %v1452 = vmul.f32 %v858, %v1246
    %v1453 = vmul.f32 %v859, %v1250
    %v1454 = vmul.f32 %v860, %v1254
    %v1455 = vmul.f32 %v861, %v1258
    %v1456 = vmul.f32 %v862, %v1262
    %v1457 = vmul.f32 %v863, %v1266
    %v1458 = vmul.f32 %v864, %v1270
    %v1459 = vmul.f32 %v865, %v1274
    %v1460 = vmul.f32 %v866, %v1278
    %v1461 = vmul.f32 %v867, %v1282
    %v1462 = vmul.f32 %v868, %v1286
    %v1463 = vmul.f32 %v869, %v1226
    %v1464 = vmul.f32 %v870, %v1230
    %v1465 = vmul.f32 %v871, %v1234
    %v1466 = vmul.f32 %v872, %v1238
    %v1467 = vmul.f32 %v873, %v1242
    %v1468 = vmul.f32 %v874, %v1246
    %v1469 = vmul.f32 %v875, %v1250
    %v1470 = vmul.f32 %v876, %v1254
    %v1471 = vmul.f32 %v877, %v1258
    %v1472 = vmul.f32 %v878, %v1262
    %v1473 = vmul.f32 %v879, %v1266
    %v1474 = vmul.f32 %v880, %v1270
    %v1475 = vmul.f32 %v881, %v1274
    %v1476 = vmul.f32 %v882, %v1278
    %v1477 = vmul.f32 %v883, %v1282
    %v1478 = vmul.f32 %v884, %v1286
    %v1479 = vmul.f32 %v885, %v1226
    %v1480 = vmul.f32 %v886, %v1230
    %v1481 = vmul.f32 %v887, %v1234
    %v1482 = vmul.f32 %v888, %v1238
    %v1483 = vmul.f32 %v889, %v1242
    %v1484 = vmul.f32 %v890, %v1246
    %v1485 = vmul.f32 %v891, %v1250
    %v1486 = vmul.f32 %v892, %v1254
    %v1487 = vmul.f32 %v893, %v1258
    %v1488 = vmul.f32 %v894, %v1262
    %v1489 = vmul.f32 %v895, %v1266
    %v1490 = vmul.f32 %v896, %v1270
    %v1491 = vmul.f32 %v897, %v1274
    %v1492 = vmul.f32 %v898, %v1278
    %v1493 = vmul.f32 %v899, %v1282
    %v1494 = vmul.f32 %v900, %v1286
    %v1495 = vmul.f32 %v901, %v1226
    %v1496 = vmul.f32 %v902, %v1230
    %v1497 = vmul.f32 %v903, %v1234
    %v1498 = vmul.f32 %v904, %v1238
    %v1499 = vmul.f32 %v905, %v1242
    %v1500 = vmul.f32 %v906, %v1246
    %v1501 = vmul.f32 %v907, %v1250
    %v1502 = vmul.f32 %v908, %v1254
    %v1503 = vmul.f32 %v909, %v1258
    %v1504 = vmul.f32 %v910, %v1262
    %v1505 = vmul.f32 %v911, %v1266
    %v1506 = vmul.f32 %v912, %v1270
    %v1507 = vmul.f32 %v913, %v1274
    %v1508 = vmul.f32 %v914, %v1278
    %v1509 = vmul.f32 %v915, %v1282
    %v1510 = vmul.f32 %v916, %v1286
    %v1511 = vmul.f32 %v917, %v1226
    %v1512 = vmul.f32 %v918, %v1230
    %v1513 = vmul.f32 %v919, %v1234
    %v1514 = vmul.f32 %v920, %v1238
    %v1515 = vmul.f32 %v921, %v1242
    %v1516 = vmul.f32 %v922, %v1246
    %v1517 = vmul.f32 %v923, %v1250
    %v1518 = vmul.f32 %v924, %v1254
    %v1519 = vmul.f32 %v925, %v1258
    %v1520 = vmul.f32 %v926, %v1262
    %v1521 = vmul.f32 %v927, %v1266
    %v1522 = vmul.f32 %v928, %v1270
    %v1523 = vmul.f32 %v929, %v1274
    %v1524 = vmul.f32 %v930, %v1278
    %v1525 = vmul.f32 %v931, %v1282
    %v1526 = vmul.f32 %v932, %v1286
    %v1527 = vmul.f32 %v933, %v1226
    %v1528 = vmul.f32 %v934, %v1230
    %v1529 = vmul.f32 %v935, %v1234
    %v1530 = vmul.f32 %v936, %v1238
    %v1531 = vmul.f32 %v937, %v1242
    %v1532 = vmul.f32 %v938, %v1246
    %v1533 = vmul.f32 %v939, %v1250
    %v1534 = vmul.f32 %v940, %v1254
    %v1535 = vmul.f32 %v941, %v1258
    %v1536 = vmul.f32 %v942, %v1262
    %v1537 = vmul.f32 %v943, %v1266
    %v1538 = vmul.f32 %v944, %v1270
    %v1539 = vmul.f32 %v945, %v1274
    %v1540 = vmul.f32 %v946, %v1278
    %v1541 = vmul.f32 %v947, %v1282
    %v1542 = vmul.f32 %v948, %v1286
    %v1543 = vmul.f32 %v949, %v1226
    %v1544 = vmul.f32 %v950, %v1230
    %v1545 = vmul.f32 %v951, %v1234
    %v1546 = vmul.f32 %v952, %v1238
    %v1547 = vmul.f32 %v953, %v1242
    %v1548 = vmul.f32 %v954, %v1246
    %v1549 = vmul.f32 %v955, %v1250
    %v1550 = vmul.f32 %v956, %v1254
    %v1551 = vmul.f32 %v957, %v1258
    %v1552 = vmul.f32 %v958, %v1262
    %v1553 = vmul.f32 %v959, %v1266
    %v1554 = vmul.f32 %v960, %v1270
    %v1555 = vmul.f32 %v961, %v1274
    %v1556 = vmul.f32 %v962, %v1278
    %v1557 = vmul.f32 %v963, %v1282
    %v1558 = vmul.f32 %v964, %v1286
    %v1559 = vmul.f32 %v965, %v1226
    %v1560 = vmul.f32 %v966, %v1230
    %v1561 = vmul.f32 %v967, %v1234
    %v1562 = vmul.f32 %v968, %v1238
    %v1563 = vmul.f32 %v969, %v1242
    %v1564 = vmul.f32 %v970, %v1246
    %v1565 = vmul.f32 %v971, %v1250
    %v1566 = vmul.f32 %v972, %v1254
    %v1567 = vmul.f32 %v973, %v1258
    %v1568 = vmul.f32 %v974, %v1262
    %v1569 = vmul.f32 %v975, %v1266
    %v1570 = vmul.f32 %v976, %v1270
    %v1571 = vmul.f32 %v977, %v1274
    %v1572 = vmul.f32 %v978, %v1278
    %v1573 = vmul.f32 %v979, %v1282
    %v1574 = vmul.f32 %v980, %v1286
    %v1575 = vmul.f32 %v981, %v1226
    %v1576 = vmul.f32 %v982, %v1230
    %v1577 = vmul.f32 %v983, %v1234
    %v1578 = vmul.f32 %v984, %v1238
    %v1579 = vmul.f32 %v985, %v1242
    %v1580 = vmul.f32 %v986, %v1246
    %v1581 = vmul.f32 %v987, %v1250
    %v1582 = vmul.f32 %v988, %v1254
    %v1583 = vmul.f32 %v989, %v1258
    %v1584 = vmul.f32 %v990, %v1262
    %v1585 = vmul.f32 %v991, %v1266
    %v1586 = vmul.f32 %v992, %v1270
    %v1587 = vmul.f32 %v993, %v1274
    %v1588 = vmul.f32 %v994, %v1278
    %v1589 = vmul.f32 %v995, %v1282
    %v1590 = vmul.f32 %v996, %v1286
    %v1591 = vmul.f32 %v997, %v1226
    %v1592 = vmul.f32 %v998, %v1230
    %v1593 = vmul.f32 %v999, %v1234
    %v1594 = vmul.f32 %v1000, %v1238
    %v1595 = vmul.f32 %v1001, %v1242
    %v1596 = vmul.f32 %v1002, %v1246
    %v1597 = vmul.f32 %v1003, %v1250
    %v1598 = vmul.f32 %v1004, %v1254
    %v1599 = vmul.f32 %v1005, %v1258
    %v1600 = vmul.f32 %v1006, %v1262
    %v1601 = vmul.f32 %v1007, %v1266
    %v1602 = vmul.f32 %v1008, %v1270
    %v1603 = vmul.f32 %v1009, %v1274
    %v1604 = vmul.f32 %v1010, %v1278
    %v1605 = vmul.f32 %v1011, %v1282
    %v1606 = vmul.f32 %v1012, %v1286
    %v1607 = vmul.f32 %v1013, %v1226
    %v1608 = vmul.f32 %v1014, %v1230
    %v1609 = vmul.f32 %v1015, %v1234
    %v1610 = vmul.f32 %v1016, %v1238
    %v1611 = vmul.f32 %v1017, %v1242
    %v1612 = vmul.f32 %v1018, %v1246
    %v1613 = vmul.f32 %v1019, %v1250
    %v1614 = vmul.f32 %v1020, %v1254
    %v1615 = vmul.f32 %v1021, %v1258
    %v1616 = vmul.f32 %v1022, %v1262
    %v1617 = vmul.f32 %v1023, %v1266
    %v1618 = vmul.f32 %v1024, %v1270
    %v1619 = vmul.f32 %v1025, %v1274
    %v1620 = vmul.f32 %v1026, %v1278
    %v1621 = vmul.f32 %v1027, %v1282
    %v1622 = vmul.f32 %v1028, %v1286
    %v1623 = vmul.f32 %v1029, %v1226
    %v1624 = vmul.f32 %v1030, %v1230
    %v1625 = vmul.f32 %v1031, %v1234
    %v1626 = vmul.f32 %v1032, %v1238
    %v1627 = vmul.f32 %v1033, %v1242
    %v1628 = vmul.f32 %v1034, %v1246
    %v1629 = vmul.f32 %v1035, %v1250
    %v1630 = vmul.f32 %v1036, %v1254
    %v1631 = vmul.f32 %v1037, %v1258
    %v1632 = vmul.f32 %v1038, %v1262
    %v1633 = vmul.f32 %v1039, %v1266
    %v1634 = vmul.f32 %v1040, %v1270
    %v1635 = vmul.f32 %v1041, %v1274
    %v1636 = vmul.f32 %v1042, %v1278
    %v1637 = vmul.f32 %v1043, %v1282
    %v1638 = vmul.f32 %v1044, %v1286
    %v1639 = vmul.f32 %v1045, %v1226
    %v1640 = vmul.f32 %v1046, %v1230
    %v1641 = vmul.f32 %v1047, %v1234
    %v1642 = vmul.f32 %v1048, %v1238
    %v1643 = vmul.f32 %v1049, %v1242
    %v1644 = vmul.f32 %v1050, %v1246
    %v1645 = vmul.f32 %v1051, %v1250
    %v1646 = vmul.f32 %v1052, %v1254
    %v1647 = vmul.f32 %v1053, %v1258
    %v1648 = vmul.f32 %v1054, %v1262
    %v1649 = vmul.f32 %v1055, %v1266
    %v1650 = vmul.f32 %v1056, %v1270
    %v1651 = vmul.f32 %v1057, %v1274
    %v1652 = vmul.f32 %v1058, %v1278
    %v1653 = vmul.f32 %v1059, %v1282
    %v1654 = vmul.f32 %v1060, %v1286
    %v1655 = vmul.f32 %v1061, %v1226
    %v1656 = vmul.f32 %v1062, %v1230
    %v1657 = vmul.f32 %v1063, %v1234
    %v1658 = vmul.f32 %v1064, %v1238
    %v1659 = vmul.f32 %v1065, %v1242
    %v1660 = vmul.f32 %v1066, %v1246
    %v1661 = vmul.f32 %v1067, %v1250
    %v1662 = vmul.f32 %v1068, %v1254
    %v1663 = vmul.f32 %v1069, %v1258
    %v1664 = vmul.f32 %v1070, %v1262
    %v1665 = vmul.f32 %v1071, %v1266
    %v1666 = vmul.f32 %v1072, %v1270
    %v1667 = vmul.f32 %v1073, %v1274
    %v1668 = vmul.f32 %v1074, %v1278
    %v1669 = vmul.f32 %v1075, %v1282
    %v1670 = vmul.f32 %v1076, %v1286
    %v1671 = vmul.f32 %v1077, %v1226
    %v1672 = vmul.f32 %v1078, %v1230
    %v1673 = vmul.f32 %v1079, %v1234
    %v1674 = vmul.f32 %v1080, %v1238
    %v1675 = vmul.f32 %v1081, %v1242
    %v1676 = vmul.f32 %v1082, %v1246
    %v1677 = vmul.f32 %v1083, %v1250
    %v1678 = vmul.f32 %v1084, %v1254
    %v1679 = vmul.f32 %v1085, %v1258
    %v1680 = vmul.f32 %v1086, %v1262
    %v1681 = vmul.f32 %v1087, %v1266
    %v1682 = vmul.f32 %v1088, %v1270
    %v1683 = vmul.f32 %v1089, %v1274
    %v1684 = vmul.f32 %v1090, %v1278
    %v1685 = vmul.f32 %v1091, %v1282
    %v1686 = vmul.f32 %v1092, %v1286
    %v1687 = vmul.f32 %v1093, %v1226
    %v1688 = vmul.f32 %v1094, %v1230
    %v1689 = vmul.f32 %v1095, %v1234
    %v1690 = vmul.f32 %v1096, %v1238
    %v1691 = vmul.f32 %v1097, %v1242
    %v1692 = vmul.f32 %v1098, %v1246
    %v1693 = vmul.f32 %v1099, %v1250
    %v1694 = vmul.f32 %v1100, %v1254
    %v1695 = vmul.f32 %v1101, %v1258
    %v1696 = vmul.f32 %v1102, %v1262
    %v1697 = vmul.f32 %v1103, %v1266
    %v1698 = vmul.f32 %v1104, %v1270
    %v1699 = vmul.f32 %v1105, %v1274
    %v1700 = vmul.f32 %v1106, %v1278
    %v1701 = vmul.f32 %v1107, %v1282
    %v1702 = vmul.f32 %v1108, %v1286
    %v1703 = vmul.f32 %v1109, %v1226
    %v1704 = vmul.f32 %v1110, %v1230
    %v1705 = vmul.f32 %v1111, %v1234
    %v1706 = vmul.f32 %v1112, %v1238
    %v1707 = vmul.f32 %v1113, %v1242
    %v1708 = vmul.f32 %v1114, %v1246
    %v1709 = vmul.f32 %v1115, %v1250
    %v1710 = vmul.f32 %v1116, %v1254
    %v1711 = vmul.f32 %v1117, %v1258
    %v1712 = vmul.f32 %v1118, %v1262
    %v1713 = vmul.f32 %v1119, %v1266
    %v1714 = vmul.f32 %v1120, %v1270
    %v1715 = vmul.f32 %v1121, %v1274
    %v1716 = vmul.f32 %v1122, %v1278
    %v1717 = vmul.f32 %v1123, %v1282
    %v1718 = vmul.f32 %v1124, %v1286
    %v1719 = vmul.f32 %v1125, %v1226
    %v1720 = vmul.f32 %v1126, %v1230
    %v1721 = vmul.f32 %v1127, %v1234
    %v1722 = vmul.f32 %v1128, %v1238
    %v1723 = vmul.f32 %v1129, %v1242
    %v1724 = vmul.f32 %v1130, %v1246
    %v1725 = vmul.f32 %v1131, %v1250
    %v1726 = vmul.f32 %v1132, %v1254
    %v1727 = vmul.f32 %v1133, %v1258
    %v1728 = vmul.f32 %v1134, %v1262
    %v1729 = vmul.f32 %v1135, %v1266
    %v1730 = vmul.f32 %v1136, %v1270
    %v1731 = vmul.f32 %v1137, %v1274
    %v1732 = vmul.f32 %v1138, %v1278
    %v1733 = vmul.f32 %v1139, %v1282
    %v1734 = vmul.f32 %v1140, %v1286
    %v1735 = vmul.f32 %v1141, %v1226
    %v1736 = vmul.f32 %v1142, %v1230
    %v1737 = vmul.f32 %v1143, %v1234
    %v1738 = vmul.f32 %v1144, %v1238
    %v1739 = vmul.f32 %v1145, %v1242
    %v1740 = vmul.f32 %v1146, %v1246
    %v1741 = vmul.f32 %v1147, %v1250
    %v1742 = vmul.f32 %v1148, %v1254
    %v1743 = vmul.f32 %v1149, %v1258
    %v1744 = vmul.f32 %v1150, %v1262
    %v1745 = vmul.f32 %v1151, %v1266
    %v1746 = vmul.f32 %v1152, %v1270
    %v1747 = vmul.f32 %v1153, %v1274
    %v1748 = vmul.f32 %v1154, %v1278
    %v1749 = vmul.f32 %v1155, %v1282
    %v1750 = vmul.f32 %v1156, %v1286
    %v1751 = vmul.f32 %v1157, %v1226
    %v1752 = vmul.f32 %v1158, %v1230
    %v1753 = vmul.f32 %v1159, %v1234
    %v1754 = vmul.f32 %v1160, %v1238
    %v1755 = vmul.f32 %v1161, %v1242
    %v1756 = vmul.f32 %v1162, %v1246
    %v1757 = vmul.f32 %v1163, %v1250
    %v1758 = vmul.f32 %v1164, %v1254
    %v1759 = vmul.f32 %v1165, %v1258
    %v1760 = vmul.f32 %v1166, %v1262
    %v1761 = vmul.f32 %v1167, %v1266
    %v1762 = vmul.f32 %v1168, %v1270
    %v1763 = vmul.f32 %v1169, %v1274
    %v1764 = vmul.f32 %v1170, %v1278
    %v1765 = vmul.f32 %v1171, %v1282
    %v1766 = vmul.f32 %v1172, %v1286
    %v1767 = vmul.f32 %v1173, %v1226
    %v1768 = vmul.f32 %v1174, %v1230
    %v1769 = vmul.f32 %v1175, %v1234
    %v1770 = vmul.f32 %v1176, %v1238
    %v1771 = vmul.f32 %v1177, %v1242
    %v1772 = vmul.f32 %v1178, %v1246
    %v1773 = vmul.f32 %v1179, %v1250
    %v1774 = vmul.f32 %v1180, %v1254
    %v1775 = vmul.f32 %v1181, %v1258
    %v1776 = vmul.f32 %v1182, %v1262
    %v1777 = vmul.f32 %v1183, %v1266
    %v1778 = vmul.f32 %v1184, %v1270
    %v1779 = vmul.f32 %v1185, %v1274
    %v1780 = vmul.f32 %v1186, %v1278
    %v1781 = vmul.f32 %v1187, %v1282
    %v1782 = vmul.f32 %v1188, %v1286
    %v1783 = vmul.f32 %v1189, %v1226
    %v1784 = vmul.f32 %v1190, %v1230
    %v1785 = vmul.f32 %v1191, %v1234
    %v1786 = vmul.f32 %v1192, %v1238
    %v1787 = vmul.f32 %v1193, %v1242
    %v1788 = vmul.f32 %v1194, %v1246
    %v1789 = vmul.f32 %v1195, %v1250
    %v1790 = vmul.f32 %v1196, %v1254
    %v1791 = vmul.f32 %v1197, %v1258
    %v1792 = vmul.f32 %v1198, %v1262
    %v1793 = vmul.f32 %v1199, %v1266
    %v1794 = vmul.f32 %v1200, %v1270
    %v1795 = vmul.f32 %v1201, %v1274
    %v1796 = vmul.f32 %v1202, %v1278
    %v1797 = vmul.f32 %v1203, %v1282
    %v1798 = vmul.f32 %v1204, %v1286
    %v1799 = vmul.f32 %v1205, %v1226
    %v1800 = vmul.f32 %v1206, %v1230
    %v1801 = vmul.f32 %v1207, %v1234
    %v1802 = vmul.f32 %v1208, %v1238
    %v1803 = vmul.f32 %v1209, %v1242
    %v1804 = vmul.f32 %v1210, %v1246
    %v1805 = vmul.f32 %v1211, %v1250
    %v1806 = vmul.f32 %v1212, %v1254
    %v1807 = vmul.f32 %v1213, %v1258
    %v1808 = vmul.f32 %v1214, %v1262
    %v1809 = vmul.f32 %v1215, %v1266
    %v1810 = vmul.f32 %v1216, %v1270
    %v1811 = vmul.f32 %v1217, %v1274
    %v1812 = vmul.f32 %v1218, %v1278
    %v1813 = vmul.f32 %v1219, %v1282
    %v1814 = vmul.f32 %v1220, %v1286
    %v1815 = vpack.c.bf16 %v1319, %v1303
    %v1816 = vpack.c.bf16 %v1320, %v1304
    %v1817 = vpack.c.bf16 %v1321, %v1305
    %v1818 = vpack.c.bf16 %v1322, %v1306
    %v1819 = vpack.c.bf16 %v1323, %v1307
    %v1820 = vpack.c.bf16 %v1324, %v1308
    %v1821 = vpack.c.bf16 %v1325, %v1309
    %v1822 = vpack.c.bf16 %v1326, %v1310
    %v1823 = vpack.c.bf16 %v1327, %v1311
    %v1824 = vpack.c.bf16 %v1328, %v1312
    %v1825 = vpack.c.bf16 %v1329, %v1313
    %v1826 = vpack.c.bf16 %v1330, %v1314
    %v1827 = vpack.c.bf16 %v1331, %v1315
    %v1828 = vpack.c.bf16 %v1332, %v1316
    %v1829 = vpack.c.bf16 %v1333, %v1317
    %v1830 = vpack.c.bf16 %v1334, %v1318
    %v1831 = vpack.c.bf16 %v1351, %v1335
    %v1832 = vpack.c.bf16 %v1352, %v1336
    %v1833 = vpack.c.bf16 %v1353, %v1337
    %v1834 = vpack.c.bf16 %v1354, %v1338
    %v1835 = vpack.c.bf16 %v1355, %v1339
    %v1836 = vpack.c.bf16 %v1356, %v1340
    %v1837 = vpack.c.bf16 %v1357, %v1341
    %v1838 = vpack.c.bf16 %v1358, %v1342
    %v1839 = vpack.c.bf16 %v1359, %v1343
    %v1840 = vpack.c.bf16 %v1360, %v1344
    %v1841 = vpack.c.bf16 %v1361, %v1345
    %v1842 = vpack.c.bf16 %v1362, %v1346
    %v1843 = vpack.c.bf16 %v1363, %v1347
    %v1844 = vpack.c.bf16 %v1364, %v1348
    %v1845 = vpack.c.bf16 %v1365, %v1349
    %v1846 = vpack.c.bf16 %v1366, %v1350
    %v1847 = vpack.c.bf16 %v1383, %v1367
    %v1848 = vpack.c.bf16 %v1384, %v1368
    %v1849 = vpack.c.bf16 %v1385, %v1369
    %v1850 = vpack.c.bf16 %v1386, %v1370
    %v1851 = vpack.c.bf16 %v1387, %v1371
    %v1852 = vpack.c.bf16 %v1388, %v1372
    %v1853 = vpack.c.bf16 %v1389, %v1373
    %v1854 = vpack.c.bf16 %v1390, %v1374
    %v1855 = vpack.c.bf16 %v1391, %v1375
    %v1856 = vpack.c.bf16 %v1392, %v1376
    %v1857 = vpack.c.bf16 %v1393, %v1377
    %v1858 = vpack.c.bf16 %v1394, %v1378
    %v1859 = vpack.c.bf16 %v1395, %v1379
    %v1860 = vpack.c.bf16 %v1396, %v1380
    %v1861 = vpack.c.bf16 %v1397, %v1381
    %v1862 = vpack.c.bf16 %v1398, %v1382
    %v1863 = vpack.c.bf16 %v1415, %v1399
    %v1864 = vpack.c.bf16 %v1416, %v1400
    %v1865 = vpack.c.bf16 %v1417, %v1401
    %v1866 = vpack.c.bf16 %v1418, %v1402
    %v1867 = vpack.c.bf16 %v1419, %v1403
    %v1868 = vpack.c.bf16 %v1420, %v1404
    %v1869 = vpack.c.bf16 %v1421, %v1405
    %v1870 = vpack.c.bf16 %v1422, %v1406
    %v1871 = vpack.c.bf16 %v1423, %v1407
    %v1872 = vpack.c.bf16 %v1424, %v1408
    %v1873 = vpack.c.bf16 %v1425, %v1409
    %v1874 = vpack.c.bf16 %v1426, %v1410
    %v1875 = vpack.c.bf16 %v1427, %v1411
    %v1876 = vpack.c.bf16 %v1428, %v1412
    %v1877 = vpack.c.bf16 %v1429, %v1413
    %v1878 = vpack.c.bf16 %v1430, %v1414
    %v1879 = vpack.c.bf16 %v1447, %v1431
    %v1880 = vpack.c.bf16 %v1448, %v1432
    %v1881 = vpack.c.bf16 %v1449, %v1433
    %v1882 = vpack.c.bf16 %v1450, %v1434
    %v1883 = vpack.c.bf16 %v1451, %v1435
    %v1884 = vpack.c.bf16 %v1452, %v1436
    %v1885 = vpack.c.bf16 %v1453, %v1437
    %v1886 = vpack.c.bf16 %v1454, %v1438
    %v1887 = vpack.c.bf16 %v1455, %v1439
    %v1888 = vpack.c.bf16 %v1456, %v1440
    %v1889 = vpack.c.bf16 %v1457, %v1441
    %v1890 = vpack.c.bf16 %v1458, %v1442
    %v1891 = vpack.c.bf16 %v1459, %v1443
    %v1892 = vpack.c.bf16 %v1460, %v1444
    %v1893 = vpack.c.bf16 %v1461, %v1445
    %v1894 = vpack.c.bf16 %v1462, %v1446
    %v1895 = vpack.c.bf16 %v1479, %v1463
    %v1896 = vpack.c.bf16 %v1480, %v1464
    %v1897 = vpack.c.bf16 %v1481, %v1465
    %v1898 = vpack.c.bf16 %v1482, %v1466
    %v1899 = vpack.c.bf16 %v1483, %v1467
    %v1900 = vpack.c.bf16 %v1484, %v1468
    %v1901 = vpack.c.bf16 %v1485, %v1469
    %v1902 = vpack.c.bf16 %v1486, %v1470
    %v1903 = vpack.c.bf16 %v1487, %v1471
    %v1904 = vpack.c.bf16 %v1488, %v1472
    %v1905 = vpack.c.bf16 %v1489, %v1473
    %v1906 = vpack.c.bf16 %v1490, %v1474
    %v1907 = vpack.c.bf16 %v1491, %v1475
    %v1908 = vpack.c.bf16 %v1492, %v1476
    %v1909 = vpack.c.bf16 %v1493, %v1477
    %v1910 = vpack.c.bf16 %v1494, %v1478
    %v1911 = vpack.c.bf16 %v1511, %v1495
    %v1912 = vpack.c.bf16 %v1512, %v1496
    %v1913 = vpack.c.bf16 %v1513, %v1497
    %v1914 = vpack.c.bf16 %v1514, %v1498
    %v1915 = vpack.c.bf16 %v1515, %v1499
    %v1916 = vpack.c.bf16 %v1516, %v1500
    %v1917 = vpack.c.bf16 %v1517, %v1501
    %v1918 = vpack.c.bf16 %v1518, %v1502
    %v1919 = vpack.c.bf16 %v1519, %v1503
    %v1920 = vpack.c.bf16 %v1520, %v1504
    %v1921 = vpack.c.bf16 %v1521, %v1505
    %v1922 = vpack.c.bf16 %v1522, %v1506
    %v1923 = vpack.c.bf16 %v1523, %v1507
    %v1924 = vpack.c.bf16 %v1524, %v1508
    %v1925 = vpack.c.bf16 %v1525, %v1509
    %v1926 = vpack.c.bf16 %v1526, %v1510
    %v1927 = vpack.c.bf16 %v1543, %v1527
    %v1928 = vpack.c.bf16 %v1544, %v1528
    %v1929 = vpack.c.bf16 %v1545, %v1529
    %v1930 = vpack.c.bf16 %v1546, %v1530
    %v1931 = vpack.c.bf16 %v1547, %v1531
    %v1932 = vpack.c.bf16 %v1548, %v1532
    %v1933 = vpack.c.bf16 %v1549, %v1533
    %v1934 = vpack.c.bf16 %v1550, %v1534
    %v1935 = vpack.c.bf16 %v1551, %v1535
    %v1936 = vpack.c.bf16 %v1552, %v1536
    %v1937 = vpack.c.bf16 %v1553, %v1537
    %v1938 = vpack.c.bf16 %v1554, %v1538
    %v1939 = vpack.c.bf16 %v1555, %v1539
    %v1940 = vpack.c.bf16 %v1556, %v1540
    %v1941 = vpack.c.bf16 %v1557, %v1541
    %v1942 = vpack.c.bf16 %v1558, %v1542
    %v1943 = vpack.c.bf16 %v1575, %v1559
    %v1944 = vpack.c.bf16 %v1576, %v1560
    %v1945 = vpack.c.bf16 %v1577, %v1561
    %v1946 = vpack.c.bf16 %v1578, %v1562
    %v1947 = vpack.c.bf16 %v1579, %v1563
    %v1948 = vpack.c.bf16 %v1580, %v1564
    %v1949 = vpack.c.bf16 %v1581, %v1565
    %v1950 = vpack.c.bf16 %v1582, %v1566
    %v1951 = vpack.c.bf16 %v1583, %v1567
    %v1952 = vpack.c.bf16 %v1584, %v1568
    %v1953 = vpack.c.bf16 %v1585, %v1569
    %v1954 = vpack.c.bf16 %v1586, %v1570
    %v1955 = vpack.c.bf16 %v1587, %v1571
    %v1956 = vpack.c.bf16 %v1588, %v1572
    %v1957 = vpack.c.bf16 %v1589, %v1573
    %v1958 = vpack.c.bf16 %v1590, %v1574
    %v1959 = vpack.c.bf16 %v1607, %v1591
    %v1960 = vpack.c.bf16 %v1608, %v1592
    %v1961 = vpack.c.bf16 %v1609, %v1593
    %v1962 = vpack.c.bf16 %v1610, %v1594
    %v1963 = vpack.c.bf16 %v1611, %v1595
    %v1964 = vpack.c.bf16 %v1612, %v1596
    %v1965 = vpack.c.bf16 %v1613, %v1597
    %v1966 = vpack.c.bf16 %v1614, %v1598
    %v1967 = vpack.c.bf16 %v1615, %v1599
    %v1968 = vpack.c.bf16 %v1616, %v1600
    %v1969 = vpack.c.bf16 %v1617, %v1601
    %v1970 = vpack.c.bf16 %v1618, %v1602
    %v1971 = vpack.c.bf16 %v1619, %v1603
    %v1972 = vpack.c.bf16 %v1620, %v1604
    %v1973 = vpack.c.bf16 %v1621, %v1605
    %v1974 = vpack.c.bf16 %v1622, %v1606
    %v1975 = vpack.c.bf16 %v1639, %v1623
    %v1976 = vpack.c.bf16 %v1640, %v1624
    %v1977 = vpack.c.bf16 %v1641, %v1625
    %v1978 = vpack.c.bf16 %v1642, %v1626
    %v1979 = vpack.c.bf16 %v1643, %v1627
    %v1980 = vpack.c.bf16 %v1644, %v1628
    %v1981 = vpack.c.bf16 %v1645, %v1629
    %v1982 = vpack.c.bf16 %v1646, %v1630
    %v1983 = vpack.c.bf16 %v1647, %v1631
    %v1984 = vpack.c.bf16 %v1648, %v1632
    %v1985 = vpack.c.bf16 %v1649, %v1633
    %v1986 = vpack.c.bf16 %v1650, %v1634
    %v1987 = vpack.c.bf16 %v1651, %v1635
    %v1988 = vpack.c.bf16 %v1652, %v1636
    %v1989 = vpack.c.bf16 %v1653, %v1637
    %v1990 = vpack.c.bf16 %v1654, %v1638
    %v1991 = vpack.c.bf16 %v1671, %v1655
    %v1992 = vpack.c.bf16 %v1672, %v1656
    %v1993 = vpack.c.bf16 %v1673, %v1657
    %v1994 = vpack.c.bf16 %v1674, %v1658
    %v1995 = vpack.c.bf16 %v1675, %v1659
    %v1996 = vpack.c.bf16 %v1676, %v1660
    %v1997 = vpack.c.bf16 %v1677, %v1661
    %v1998 = vpack.c.bf16 %v1678, %v1662
    %v1999 = vpack.c.bf16 %v1679, %v1663
    %v2000 = vpack.c.bf16 %v1680, %v1664
    %v2001 = vpack.c.bf16 %v1681, %v1665
    %v2002 = vpack.c.bf16 %v1682, %v1666
    %v2003 = vpack.c.bf16 %v1683, %v1667
    %v2004 = vpack.c.bf16 %v1684, %v1668
    %v2005 = vpack.c.bf16 %v1685, %v1669
    %v2006 = vpack.c.bf16 %v1686, %v1670
    %v2007 = vpack.c.bf16 %v1703, %v1687
    %v2008 = vpack.c.bf16 %v1704, %v1688
    %v2009 = vpack.c.bf16 %v1705, %v1689
    %v2010 = vpack.c.bf16 %v1706, %v1690
    %v2011 = vpack.c.bf16 %v1707, %v1691
    %v2012 = vpack.c.bf16 %v1708, %v1692
    %v2013 = vpack.c.bf16 %v1709, %v1693
    %v2014 = vpack.c.bf16 %v1710, %v1694
    %v2015 = vpack.c.bf16 %v1711, %v1695
    %v2016 = vpack.c.bf16 %v1712, %v1696
    %v2017 = vpack.c.bf16 %v1713, %v1697
    %v2018 = vpack.c.bf16 %v1714, %v1698
    %v2019 = vpack.c.bf16 %v1715, %v1699
    %v2020 = vpack.c.bf16 %v1716, %v1700
    %v2021 = vpack.c.bf16 %v1717, %v1701
    %v2022 = vpack.c.bf16 %v1718, %v1702
    %v2023 = vpack.c.bf16 %v1735, %v1719
    %v2024 = vpack.c.bf16 %v1736, %v1720
    %v2025 = vpack.c.bf16 %v1737, %v1721
    %v2026 = vpack.c.bf16 %v1738, %v1722
    %v2027 = vpack.c.bf16 %v1739, %v1723
    %v2028 = vpack.c.bf16 %v1740, %v1724
    %v2029 = vpack.c.bf16 %v1741, %v1725
    %v2030 = vpack.c.bf16 %v1742, %v1726
    %v2031 = vpack.c.bf16 %v1743, %v1727
    %v2032 = vpack.c.bf16 %v1744, %v1728
    %v2033 = vpack.c.bf16 %v1745, %v1729
    %v2034 = vpack.c.bf16 %v1746, %v1730
    %v2035 = vpack.c.bf16 %v1747, %v1731
    %v2036 = vpack.c.bf16 %v1748, %v1732
    %v2037 = vpack.c.bf16 %v1749, %v1733
    %v2038 = vpack.c.bf16 %v1750, %v1734
    %v2039 = vpack.c.bf16 %v1767, %v1751
    %v2040 = vpack.c.bf16 %v1768, %v1752
    %v2041 = vpack.c.bf16 %v1769, %v1753
    %v2042 = vpack.c.bf16 %v1770, %v1754
    %v2043 = vpack.c.bf16 %v1771, %v1755
    %v2044 = vpack.c.bf16 %v1772, %v1756
    %v2045 = vpack.c.bf16 %v1773, %v1757
    %v2046 = vpack.c.bf16 %v1774, %v1758
    %v2047 = vpack.c.bf16 %v1775, %v1759
    %v2048 = vpack.c.bf16 %v1776, %v1760
    %v2049 = vpack.c.bf16 %v1777, %v1761
    %v2050 = vpack.c.bf16 %v1778, %v1762
    %v2051 = vpack.c.bf16 %v1779, %v1763
    %v2052 = vpack.c.bf16 %v1780, %v1764
    %v2053 = vpack.c.bf16 %v1781, %v1765
    %v2054 = vpack.c.bf16 %v1782, %v1766
    %v2055 = vpack.c.bf16 %v1799, %v1783
    %v2056 = vpack.c.bf16 %v1800, %v1784
    %v2057 = vpack.c.bf16 %v1801, %v1785
    %v2058 = vpack.c.bf16 %v1802, %v1786
    %v2059 = vpack.c.bf16 %v1803, %v1787
    %v2060 = vpack.c.bf16 %v1804, %v1788
    %v2061 = vpack.c.bf16 %v1805, %v1789
    %v2062 = vpack.c.bf16 %v1806, %v1790
    %v2063 = vpack.c.bf16 %v1807, %v1791
    %v2064 = vpack.c.bf16 %v1808, %v1792
    %v2065 = vpack.c.bf16 %v1809, %v1793
    %v2066 = vpack.c.bf16 %v1810, %v1794
    %v2067 = vpack.c.bf16 %v1811, %v1795
    %v2068 = vpack.c.bf16 %v1812, %v1796
    %v2069 = vpack.c.bf16 %v1813, %v1797
    %v2070 = vpack.c.bf16 %v1814, %v1798
    %v2071 = vld [vmem:[#allocation7] sm:$0xff]
    %v2072 = vld [vmem:[#allocation7 + $0x8] sm:$0xff]
    %v2073 = vld [vmem:[#allocation7 + $0x10] sm:$0xff]
    %v2074 = vld [vmem:[#allocation7 + $0x18] sm:$0xff]
    %v2075 = vld [vmem:[#allocation7 + $0x20] sm:$0xff]
    %v2076 = vld [vmem:[#allocation7 + $0x28] sm:$0xff]
    %v2077 = vld [vmem:[#allocation7 + $0x30] sm:$0xff]
    %v2078 = vld [vmem:[#allocation7 + $0x38] sm:$0xff]
    %v2079 = vld [vmem:[#allocation7 + $0x40] sm:$0xff]
    %v2080 = vld [vmem:[#allocation7 + $0x48] sm:$0xff]
    %v2081 = vld [vmem:[#allocation7 + $0x50] sm:$0xff]
    %v2082 = vld [vmem:[#allocation7 + $0x58] sm:$0xff]
    %v2083 = vld [vmem:[#allocation7 + $0x60] sm:$0xff]
    %v2084 = vld [vmem:[#allocation7 + $0x68] sm:$0xff]
    %v2085 = vld [vmem:[#allocation7 + $0x70] sm:$0xff]
    %v2086 = vld [vmem:[#allocation7 + $0x78] sm:$0xff]
    %v2087 = vld [vmem:[#allocation7 + $0x80] sm:$0xff]
    %v2088 = vld [vmem:[#allocation7 + $0x88] sm:$0xff]
    %v2089 = vld [vmem:[#allocation7 + $0x90] sm:$0xff]
    %v2090 = vld [vmem:[#allocation7 + $0x98] sm:$0xff]
    %v2091 = vld [vmem:[#allocation7 + $0xa0] sm:$0xff]
    %v2092 = vld [vmem:[#allocation7 + $0xa8] sm:$0xff]
    %v2093 = vld [vmem:[#allocation7 + $0xb0] sm:$0xff]
    %v2094 = vld [vmem:[#allocation7 + $0xb8] sm:$0xff]
    %v2095 = vld [vmem:[#allocation7 + $0xc0] sm:$0xff]
    %v2096 = vld [vmem:[#allocation7 + $0xc8] sm:$0xff]
    %v2097 = vld [vmem:[#allocation7 + $0xd0] sm:$0xff]
    %v2098 = vld [vmem:[#allocation7 + $0xd8] sm:$0xff]
    %v2099 = vld [vmem:[#allocation7 + $0xe0] sm:$0xff]
    %v2100 = vld [vmem:[#allocation7 + $0xe8] sm:$0xff]
    %v2101 = vld [vmem:[#allocation7 + $0xf0] sm:$0xff]
    %v2102 = vld [vmem:[#allocation7 + $0xf8] sm:$0xff]
    %v2103 = vld [vmem:[#allocation7 + $0x100] sm:$0xff]
    %v2104 = vld [vmem:[#allocation7 + $0x108] sm:$0xff]
    %v2105 = vld [vmem:[#allocation7 + $0x110] sm:$0xff]
    %v2106 = vld [vmem:[#allocation7 + $0x118] sm:$0xff]
    %v2107 = vld [vmem:[#allocation7 + $0x120] sm:$0xff]
    %v2108 = vld [vmem:[#allocation7 + $0x128] sm:$0xff]
    %v2109 = vld [vmem:[#allocation7 + $0x130] sm:$0xff]
    %v2110 = vld [vmem:[#allocation7 + $0x138] sm:$0xff]
    %v2111 = vld [vmem:[#allocation7 + $0x140] sm:$0xff]
    %v2112 = vld [vmem:[#allocation7 + $0x148] sm:$0xff]
    %v2113 = vld [vmem:[#allocation7 + $0x150] sm:$0xff]
    %v2114 = vld [vmem:[#allocation7 + $0x158] sm:$0xff]
    %v2115 = vld [vmem:[#allocation7 + $0x160] sm:$0xff]
    %v2116 = vld [vmem:[#allocation7 + $0x168] sm:$0xff]
    %v2117 = vld [vmem:[#allocation7 + $0x170] sm:$0xff]
    %v2118 = vld [vmem:[#allocation7 + $0x178] sm:$0xff]
    %v2119 = vld [vmem:[#allocation7 + $0x180] sm:$0xff]
    %v2120 = vld [vmem:[#allocation7 + $0x188] sm:$0xff]
    %v2121 = vld [vmem:[#allocation7 + $0x190] sm:$0xff]
    %v2122 = vld [vmem:[#allocation7 + $0x198] sm:$0xff]
    %v2123 = vld [vmem:[#allocation7 + $0x1a0] sm:$0xff]
    %v2124 = vld [vmem:[#allocation7 + $0x1a8] sm:$0xff]
    %v2125 = vld [vmem:[#allocation7 + $0x1b0] sm:$0xff]
    %v2126 = vld [vmem:[#allocation7 + $0x1b8] sm:$0xff]
    %v2127 = vld [vmem:[#allocation7 + $0x1c0] sm:$0xff]
    %v2128 = vld [vmem:[#allocation7 + $0x1c8] sm:$0xff]
    %v2129 = vld [vmem:[#allocation7 + $0x1d0] sm:$0xff]
    %v2130 = vld [vmem:[#allocation7 + $0x1d8] sm:$0xff]
    %v2131 = vld [vmem:[#allocation7 + $0x1e0] sm:$0xff]
    %v2132 = vld [vmem:[#allocation7 + $0x1e8] sm:$0xff]
    %v2133 = vld [vmem:[#allocation7 + $0x1f0] sm:$0xff]
    %v2134 = vld [vmem:[#allocation7 + $0x1f8] sm:$0xff]
    %v2135 = vunpack.c.0.s8 %v2071
    %v2136 = vunpack.c.1.s8 %v2071
    %v2137 = vunpack.c.2.s8 %v2071
    %v2138 = vunpack.c.3.s8 %v2071
    %v2139 = vunpack.c.0.s8 %v2072
    %v2140 = vunpack.c.1.s8 %v2072
    %v2141 = vunpack.c.2.s8 %v2072
    %v2142 = vunpack.c.3.s8 %v2072
    %v2143 = vunpack.c.0.s8 %v2073
    %v2144 = vunpack.c.1.s8 %v2073
    %v2145 = vunpack.c.2.s8 %v2073
    %v2146 = vunpack.c.3.s8 %v2073
    %v2147 = vunpack.c.0.s8 %v2074
    %v2148 = vunpack.c.1.s8 %v2074
    %v2149 = vunpack.c.2.s8 %v2074
    %v2150 = vunpack.c.3.s8 %v2074
    %v2151 = vunpack.c.0.s8 %v2075
    %v2152 = vunpack.c.1.s8 %v2075
    %v2153 = vunpack.c.2.s8 %v2075
    %v2154 = vunpack.c.3.s8 %v2075
    %v2155 = vunpack.c.0.s8 %v2076
    %v2156 = vunpack.c.1.s8 %v2076
    %v2157 = vunpack.c.2.s8 %v2076
    %v2158 = vunpack.c.3.s8 %v2076
    %v2159 = vunpack.c.0.s8 %v2077
    %v2160 = vunpack.c.1.s8 %v2077
    %v2161 = vunpack.c.2.s8 %v2077
    %v2162 = vunpack.c.3.s8 %v2077
    %v2163 = vunpack.c.0.s8 %v2078
    %v2164 = vunpack.c.1.s8 %v2078
    %v2165 = vunpack.c.2.s8 %v2078
    %v2166 = vunpack.c.3.s8 %v2078
    %v2167 = vunpack.c.0.s8 %v2079
    %v2168 = vunpack.c.1.s8 %v2079
    %v2169 = vunpack.c.2.s8 %v2079
    %v2170 = vunpack.c.3.s8 %v2079
    %v2171 = vunpack.c.0.s8 %v2080
    %v2172 = vunpack.c.1.s8 %v2080
    %v2173 = vunpack.c.2.s8 %v2080
    %v2174 = vunpack.c.3.s8 %v2080
    %v2175 = vunpack.c.0.s8 %v2081
    %v2176 = vunpack.c.1.s8 %v2081
    %v2177 = vunpack.c.2.s8 %v2081
    %v2178 = vunpack.c.3.s8 %v2081
    %v2179 = vunpack.c.0.s8 %v2082
    %v2180 = vunpack.c.1.s8 %v2082
    %v2181 = vunpack.c.2.s8 %v2082
    %v2182 = vunpack.c.3.s8 %v2082
    %v2183 = vunpack.c.0.s8 %v2083
    %v2184 = vunpack.c.1.s8 %v2083
    %v2185 = vunpack.c.2.s8 %v2083
    %v2186 = vunpack.c.3.s8 %v2083
    %v2187 = vunpack.c.0.s8 %v2084
    %v2188 = vunpack.c.1.s8 %v2084
    %v2189 = vunpack.c.2.s8 %v2084
    %v2190 = vunpack.c.3.s8 %v2084
    %v2191 = vunpack.c.0.s8 %v2085
    %v2192 = vunpack.c.1.s8 %v2085
    %v2193 = vunpack.c.2.s8 %v2085
    %v2194 = vunpack.c.3.s8 %v2085
    %v2195 = vunpack.c.0.s8 %v2086
    %v2196 = vunpack.c.1.s8 %v2086
    %v2197 = vunpack.c.2.s8 %v2086
    %v2198 = vunpack.c.3.s8 %v2086
    %v2199 = vunpack.c.0.s8 %v2087
    %v2200 = vunpack.c.1.s8 %v2087
    %v2201 = vunpack.c.2.s8 %v2087
    %v2202 = vunpack.c.3.s8 %v2087
    %v2203 = vunpack.c.0.s8 %v2088
    %v2204 = vunpack.c.1.s8 %v2088
    %v2205 = vunpack.c.2.s8 %v2088
    %v2206 = vunpack.c.3.s8 %v2088
    %v2207 = vunpack.c.0.s8 %v2089
    %v2208 = vunpack.c.1.s8 %v2089
    %v2209 = vunpack.c.2.s8 %v2089
    %v2210 = vunpack.c.3.s8 %v2089
    %v2211 = vunpack.c.0.s8 %v2090
    %v2212 = vunpack.c.1.s8 %v2090
    %v2213 = vunpack.c.2.s8 %v2090
    %v2214 = vunpack.c.3.s8 %v2090
    %v2215 = vunpack.c.0.s8 %v2091
    %v2216 = vunpack.c.1.s8 %v2091
    %v2217 = vunpack.c.2.s8 %v2091
    %v2218 = vunpack.c.3.s8 %v2091
    %v2219 = vunpack.c.0.s8 %v2092
    %v2220 = vunpack.c.1.s8 %v2092
    %v2221 = vunpack.c.2.s8 %v2092
    %v2222 = vunpack.c.3.s8 %v2092
    %v2223 = vunpack.c.0.s8 %v2093
    %v2224 = vunpack.c.1.s8 %v2093
    %v2225 = vunpack.c.2.s8 %v2093
    %v2226 = vunpack.c.3.s8 %v2093
    %v2227 = vunpack.c.0.s8 %v2094
    %v2228 = vunpack.c.1.s8 %v2094
    %v2229 = vunpack.c.2.s8 %v2094
    %v2230 = vunpack.c.3.s8 %v2094
    %v2231 = vunpack.c.0.s8 %v2095
    %v2232 = vunpack.c.1.s8 %v2095
    %v2233 = vunpack.c.2.s8 %v2095
    %v2234 = vunpack.c.3.s8 %v2095
    %v2235 = vunpack.c.0.s8 %v2096
    %v2236 = vunpack.c.1.s8 %v2096
    %v2237 = vunpack.c.2.s8 %v2096
    %v2238 = vunpack.c.3.s8 %v2096
    %v2239 = vunpack.c.0.s8 %v2097
    %v2240 = vunpack.c.1.s8 %v2097
    %v2241 = vunpack.c.2.s8 %v2097
    %v2242 = vunpack.c.3.s8 %v2097
    %v2243 = vunpack.c.0.s8 %v2098
    %v2244 = vunpack.c.1.s8 %v2098
    %v2245 = vunpack.c.2.s8 %v2098
    %v2246 = vunpack.c.3.s8 %v2098
    %v2247 = vunpack.c.0.s8 %v2099
    %v2248 = vunpack.c.1.s8 %v2099
    %v2249 = vunpack.c.2.s8 %v2099
    %v2250 = vunpack.c.3.s8 %v2099
    %v2251 = vunpack.c.0.s8 %v2100
    %v2252 = vunpack.c.1.s8 %v2100
    %v2253 = vunpack.c.2.s8 %v2100
    %v2254 = vunpack.c.3.s8 %v2100
    %v2255 = vunpack.c.0.s8 %v2101
    %v2256 = vunpack.c.1.s8 %v2101
    %v2257 = vunpack.c.2.s8 %v2101
    %v2258 = vunpack.c.3.s8 %v2101
    %v2259 = vunpack.c.0.s8 %v2102
    %v2260 = vunpack.c.1.s8 %v2102
    %v2261 = vunpack.c.2.s8 %v2102
    %v2262 = vunpack.c.3.s8 %v2102
    %v2263 = vunpack.c.0.s8 %v2103
    %v2264 = vunpack.c.1.s8 %v2103
    %v2265 = vunpack.c.2.s8 %v2103
    %v2266 = vunpack.c.3.s8 %v2103
    %v2267 = vunpack.c.0.s8 %v2104
    %v2268 = vunpack.c.1.s8 %v2104
    %v2269 = vunpack.c.2.s8 %v2104
    %v2270 = vunpack.c.3.s8 %v2104
    %v2271 = vunpack.c.0.s8 %v2105
    %v2272 = vunpack.c.1.s8 %v2105
    %v2273 = vunpack.c.2.s8 %v2105
    %v2274 = vunpack.c.3.s8 %v2105
    %v2275 = vunpack.c.0.s8 %v2106
    %v2276 = vunpack.c.1.s8 %v2106
    %v2277 = vunpack.c.2.s8 %v2106
    %v2278 = vunpack.c.3.s8 %v2106
    %v2279 = vunpack.c.0.s8 %v2107
    %v2280 = vunpack.c.1.s8 %v2107
    %v2281 = vunpack.c.2.s8 %v2107
    %v2282 = vunpack.c.3.s8 %v2107
    %v2283 = vunpack.c.0.s8 %v2108
    %v2284 = vunpack.c.1.s8 %v2108
    %v2285 = vunpack.c.2.s8 %v2108
    %v2286 = vunpack.c.3.s8 %v2108
    %v2287 = vunpack.c.0.s8 %v2109
    %v2288 = vunpack.c.1.s8 %v2109
    %v2289 = vunpack.c.2.s8 %v2109
    %v2290 = vunpack.c.3.s8 %v2109
    %v2291 = vunpack.c.0.s8 %v2110
    %v2292 = vunpack.c.1.s8 %v2110
    %v2293 = vunpack.c.2.s8 %v2110
    %v2294 = vunpack.c.3.s8 %v2110
    %v2295 = vunpack.c.0.s8 %v2111
    %v2296 = vunpack.c.1.s8 %v2111
    %v2297 = vunpack.c.2.s8 %v2111
    %v2298 = vunpack.c.3.s8 %v2111
    %v2299 = vunpack.c.0.s8 %v2112
    %v2300 = vunpack.c.1.s8 %v2112
    %v2301 = vunpack.c.2.s8 %v2112
    %v2302 = vunpack.c.3.s8 %v2112
    %v2303 = vunpack.c.0.s8 %v2113
    %v2304 = vunpack.c.1.s8 %v2113
    %v2305 = vunpack.c.2.s8 %v2113
    %v2306 = vunpack.c.3.s8 %v2113
    %v2307 = vunpack.c.0.s8 %v2114
    %v2308 = vunpack.c.1.s8 %v2114
    %v2309 = vunpack.c.2.s8 %v2114
    %v2310 = vunpack.c.3.s8 %v2114
    %v2311 = vunpack.c.0.s8 %v2115
    %v2312 = vunpack.c.1.s8 %v2115
    %v2313 = vunpack.c.2.s8 %v2115
    %v2314 = vunpack.c.3.s8 %v2115
    %v2315 = vunpack.c.0.s8 %v2116
    %v2316 = vunpack.c.1.s8 %v2116
    %v2317 = vunpack.c.2.s8 %v2116
    %v2318 = vunpack.c.3.s8 %v2116
    %v2319 = vunpack.c.0.s8 %v2117
    %v2320 = vunpack.c.1.s8 %v2117
    %v2321 = vunpack.c.2.s8 %v2117
    %v2322 = vunpack.c.3.s8 %v2117
    %v2323 = vunpack.c.0.s8 %v2118
    %v2324 = vunpack.c.1.s8 %v2118
    %v2325 = vunpack.c.2.s8 %v2118
    %v2326 = vunpack.c.3.s8 %v2118
    %v2327 = vunpack.c.0.s8 %v2119
    %v2328 = vunpack.c.1.s8 %v2119
    %v2329 = vunpack.c.2.s8 %v2119
    %v2330 = vunpack.c.3.s8 %v2119
    %v2331 = vunpack.c.0.s8 %v2120
    %v2332 = vunpack.c.1.s8 %v2120
    %v2333 = vunpack.c.2.s8 %v2120
    %v2334 = vunpack.c.3.s8 %v2120
    %v2335 = vunpack.c.0.s8 %v2121
    %v2336 = vunpack.c.1.s8 %v2121
    %v2337 = vunpack.c.2.s8 %v2121
    %v2338 = vunpack.c.3.s8 %v2121
    %v2339 = vunpack.c.0.s8 %v2122
    %v2340 = vunpack.c.1.s8 %v2122
    %v2341 = vunpack.c.2.s8 %v2122
    %v2342 = vunpack.c.3.s8 %v2122
    %v2343 = vunpack.c.0.s8 %v2123
    %v2344 = vunpack.c.1.s8 %v2123
    %v2345 = vunpack.c.2.s8 %v2123
    %v2346 = vunpack.c.3.s8 %v2123
    %v2347 = vunpack.c.0.s8 %v2124
    %v2348 = vunpack.c.1.s8 %v2124
    %v2349 = vunpack.c.2.s8 %v2124
    %v2350 = vunpack.c.3.s8 %v2124
    %v2351 = vunpack.c.0.s8 %v2125
    %v2352 = vunpack.c.1.s8 %v2125
    %v2353 = vunpack.c.2.s8 %v2125
    %v2354 = vunpack.c.3.s8 %v2125
    %v2355 = vunpack.c.0.s8 %v2126
    %v2356 = vunpack.c.1.s8 %v2126
    %v2357 = vunpack.c.2.s8 %v2126
    %v2358 = vunpack.c.3.s8 %v2126
    %v2359 = vunpack.c.0.s8 %v2127
    %v2360 = vunpack.c.1.s8 %v2127
    %v2361 = vunpack.c.2.s8 %v2127
    %v2362 = vunpack.c.3.s8 %v2127
    %v2363 = vunpack.c.0.s8 %v2128
    %v2364 = vunpack.c.1.s8 %v2128
    %v2365 = vunpack.c.2.s8 %v2128
    %v2366 = vunpack.c.3.s8 %v2128
    %v2367 = vunpack.c.0.s8 %v2129
    %v2368 = vunpack.c.1.s8 %v2129
    %v2369 = vunpack.c.2.s8 %v2129
    %v2370 = vunpack.c.3.s8 %v2129
    %v2371 = vunpack.c.0.s8 %v2130
    %v2372 = vunpack.c.1.s8 %v2130
    %v2373 = vunpack.c.2.s8 %v2130
    %v2374 = vunpack.c.3.s8 %v2130
    %v2375 = vunpack.c.0.s8 %v2131
    %v2376 = vunpack.c.1.s8 %v2131
    %v2377 = vunpack.c.2.s8 %v2131
    %v2378 = vunpack.c.3.s8 %v2131
    %v2379 = vunpack.c.0.s8 %v2132
    %v2380 = vunpack.c.1.s8 %v2132
    %v2381 = vunpack.c.2.s8 %v2132
    %v2382 = vunpack.c.3.s8 %v2132
    %v2383 = vunpack.c.0.s8 %v2133
    %v2384 = vunpack.c.1.s8 %v2133
    %v2385 = vunpack.c.2.s8 %v2133
    %v2386 = vunpack.c.3.s8 %v2133
    %v2387 = vunpack.c.0.s8 %v2134
    %v2388 = vunpack.c.1.s8 %v2134
    %v2389 = vunpack.c.2.s8 %v2134
    %v2390 = vunpack.c.3.s8 %v2134
    %v2391 = vcvt.s32.f32 %v2135
    %v2392 = vcvt.s32.f32 %v2136
    %v2393 = vcvt.s32.f32 %v2137
    %v2394 = vcvt.s32.f32 %v2138
    %v2395 = vcvt.s32.f32 %v2139
    %v2396 = vcvt.s32.f32 %v2140
    %v2397 = vcvt.s32.f32 %v2141
    %v2398 = vcvt.s32.f32 %v2142
    %v2399 = vcvt.s32.f32 %v2143
    %v2400 = vcvt.s32.f32 %v2144
    %v2401 = vcvt.s32.f32 %v2145
    %v2402 = vcvt.s32.f32 %v2146
    %v2403 = vcvt.s32.f32 %v2147
    %v2404 = vcvt.s32.f32 %v2148
    %v2405 = vcvt.s32.f32 %v2149
    %v2406 = vcvt.s32.f32 %v2150
    %v2407 = vcvt.s32.f32 %v2151
    %v2408 = vcvt.s32.f32 %v2152
    %v2409 = vcvt.s32.f32 %v2153
    %v2410 = vcvt.s32.f32 %v2154
    %v2411 = vcvt.s32.f32 %v2155
    %v2412 = vcvt.s32.f32 %v2156
    %v2413 = vcvt.s32.f32 %v2157
    %v2414 = vcvt.s32.f32 %v2158
    %v2415 = vcvt.s32.f32 %v2159
    %v2416 = vcvt.s32.f32 %v2160
    %v2417 = vcvt.s32.f32 %v2161
    %v2418 = vcvt.s32.f32 %v2162
    %v2419 = vcvt.s32.f32 %v2163
    %v2420 = vcvt.s32.f32 %v2164
    %v2421 = vcvt.s32.f32 %v2165
    %v2422 = vcvt.s32.f32 %v2166
    %v2423 = vcvt.s32.f32 %v2167
    %v2424 = vcvt.s32.f32 %v2168
    %v2425 = vcvt.s32.f32 %v2169
    %v2426 = vcvt.s32.f32 %v2170
    %v2427 = vcvt.s32.f32 %v2171
    %v2428 = vcvt.s32.f32 %v2172
    %v2429 = vcvt.s32.f32 %v2173
    %v2430 = vcvt.s32.f32 %v2174
    %v2431 = vcvt.s32.f32 %v2175
    %v2432 = vcvt.s32.f32 %v2176
    %v2433 = vcvt.s32.f32 %v2177
    %v2434 = vcvt.s32.f32 %v2178
    %v2435 = vcvt.s32.f32 %v2179
    %v2436 = vcvt.s32.f32 %v2180
    %v2437 = vcvt.s32.f32 %v2181
    %v2438 = vcvt.s32.f32 %v2182
    %v2439 = vcvt.s32.f32 %v2183
    %v2440 = vcvt.s32.f32 %v2184
    %v2441 = vcvt.s32.f32 %v2185
    %v2442 = vcvt.s32.f32 %v2186
    %v2443 = vcvt.s32.f32 %v2187
    %v2444 = vcvt.s32.f32 %v2188
    %v2445 = vcvt.s32.f32 %v2189
    %v2446 = vcvt.s32.f32 %v2190
    %v2447 = vcvt.s32.f32 %v2191
    %v2448 = vcvt.s32.f32 %v2192
    %v2449 = vcvt.s32.f32 %v2193
    %v2450 = vcvt.s32.f32 %v2194
    %v2451 = vcvt.s32.f32 %v2195
    %v2452 = vcvt.s32.f32 %v2196
    %v2453 = vcvt.s32.f32 %v2197
    %v2454 = vcvt.s32.f32 %v2198
    %v2455 = vcvt.s32.f32 %v2199
    %v2456 = vcvt.s32.f32 %v2200
    %v2457 = vcvt.s32.f32 %v2201
    %v2458 = vcvt.s32.f32 %v2202
    %v2459 = vcvt.s32.f32 %v2203
    %v2460 = vcvt.s32.f32 %v2204
    %v2461 = vcvt.s32.f32 %v2205
    %v2462 = vcvt.s32.f32 %v2206
    %v2463 = vcvt.s32.f32 %v2207
    %v2464 = vcvt.s32.f32 %v2208
    %v2465 = vcvt.s32.f32 %v2209
    %v2466 = vcvt.s32.f32 %v2210
    %v2467 = vcvt.s32.f32 %v2211
    %v2468 = vcvt.s32.f32 %v2212
    %v2469 = vcvt.s32.f32 %v2213
    %v2470 = vcvt.s32.f32 %v2214
    %v2471 = vcvt.s32.f32 %v2215
    %v2472 = vcvt.s32.f32 %v2216
    %v2473 = vcvt.s32.f32 %v2217
    %v2474 = vcvt.s32.f32 %v2218
    %v2475 = vcvt.s32.f32 %v2219
    %v2476 = vcvt.s32.f32 %v2220
    %v2477 = vcvt.s32.f32 %v2221
    %v2478 = vcvt.s32.f32 %v2222
    %v2479 = vcvt.s32.f32 %v2223
    %v2480 = vcvt.s32.f32 %v2224
    %v2481 = vcvt.s32.f32 %v2225
    %v2482 = vcvt.s32.f32 %v2226
    %v2483 = vcvt.s32.f32 %v2227
    %v2484 = vcvt.s32.f32 %v2228
    %v2485 = vcvt.s32.f32 %v2229
    %v2486 = vcvt.s32.f32 %v2230
    %v2487 = vcvt.s32.f32 %v2231
    %v2488 = vcvt.s32.f32 %v2232
    %v2489 = vcvt.s32.f32 %v2233
    %v2490 = vcvt.s32.f32 %v2234
    %v2491 = vcvt.s32.f32 %v2235
    %v2492 = vcvt.s32.f32 %v2236
    %v2493 = vcvt.s32.f32 %v2237
    %v2494 = vcvt.s32.f32 %v2238
    %v2495 = vcvt.s32.f32 %v2239
    %v2496 = vcvt.s32.f32 %v2240
    %v2497 = vcvt.s32.f32 %v2241
    %v2498 = vcvt.s32.f32 %v2242
    %v2499 = vcvt.s32.f32 %v2243
    %v2500 = vcvt.s32.f32 %v2244
    %v2501 = vcvt.s32.f32 %v2245
    %v2502 = vcvt.s32.f32 %v2246
    %v2503 = vcvt.s32.f32 %v2247
    %v2504 = vcvt.s32.f32 %v2248
    %v2505 = vcvt.s32.f32 %v2249
    %v2506 = vcvt.s32.f32 %v2250
    %v2507 = vcvt.s32.f32 %v2251
    %v2508 = vcvt.s32.f32 %v2252
    %v2509 = vcvt.s32.f32 %v2253
    %v2510 = vcvt.s32.f32 %v2254
    %v2511 = vcvt.s32.f32 %v2255
    %v2512 = vcvt.s32.f32 %v2256
    %v2513 = vcvt.s32.f32 %v2257
    %v2514 = vcvt.s32.f32 %v2258
    %v2515 = vcvt.s32.f32 %v2259
    %v2516 = vcvt.s32.f32 %v2260
    %v2517 = vcvt.s32.f32 %v2261
    %v2518 = vcvt.s32.f32 %v2262
    %v2519 = vcvt.s32.f32 %v2263
    %v2520 = vcvt.s32.f32 %v2264
    %v2521 = vcvt.s32.f32 %v2265
    %v2522 = vcvt.s32.f32 %v2266
    %v2523 = vcvt.s32.f32 %v2267
    %v2524 = vcvt.s32.f32 %v2268
    %v2525 = vcvt.s32.f32 %v2269
    %v2526 = vcvt.s32.f32 %v2270
    %v2527 = vcvt.s32.f32 %v2271
    %v2528 = vcvt.s32.f32 %v2272
    %v2529 = vcvt.s32.f32 %v2273
    %v2530 = vcvt.s32.f32 %v2274
    %v2531 = vcvt.s32.f32 %v2275
    %v2532 = vcvt.s32.f32 %v2276
    %v2533 = vcvt.s32.f32 %v2277
    %v2534 = vcvt.s32.f32 %v2278
    %v2535 = vcvt.s32.f32 %v2279
    %v2536 = vcvt.s32.f32 %v2280
    %v2537 = vcvt.s32.f32 %v2281
    %v2538 = vcvt.s32.f32 %v2282
    %v2539 = vcvt.s32.f32 %v2283
    %v2540 = vcvt.s32.f32 %v2284
    %v2541 = vcvt.s32.f32 %v2285
    %v2542 = vcvt.s32.f32 %v2286
    %v2543 = vcvt.s32.f32 %v2287
    %v2544 = vcvt.s32.f32 %v2288
    %v2545 = vcvt.s32.f32 %v2289
    %v2546 = vcvt.s32.f32 %v2290
    %v2547 = vcvt.s32.f32 %v2291
    %v2548 = vcvt.s32.f32 %v2292
    %v2549 = vcvt.s32.f32 %v2293
    %v2550 = vcvt.s32.f32 %v2294
    %v2551 = vcvt.s32.f32 %v2295
    %v2552 = vcvt.s32.f32 %v2296
    %v2553 = vcvt.s32.f32 %v2297
    %v2554 = vcvt.s32.f32 %v2298
    %v2555 = vcvt.s32.f32 %v2299
    %v2556 = vcvt.s32.f32 %v2300
    %v2557 = vcvt.s32.f32 %v2301
    %v2558 = vcvt.s32.f32 %v2302
    %v2559 = vcvt.s32.f32 %v2303
    %v2560 = vcvt.s32.f32 %v2304
    %v2561 = vcvt.s32.f32 %v2305
    %v2562 = vcvt.s32.f32 %v2306
    %v2563 = vcvt.s32.f32 %v2307
    %v2564 = vcvt.s32.f32 %v2308
    %v2565 = vcvt.s32.f32 %v2309
    %v2566 = vcvt.s32.f32 %v2310
    %v2567 = vcvt.s32.f32 %v2311
    %v2568 = vcvt.s32.f32 %v2312
    %v2569 = vcvt.s32.f32 %v2313
    %v2570 = vcvt.s32.f32 %v2314
    %v2571 = vcvt.s32.f32 %v2315
    %v2572 = vcvt.s32.f32 %v2316
    %v2573 = vcvt.s32.f32 %v2317
    %v2574 = vcvt.s32.f32 %v2318
    %v2575 = vcvt.s32.f32 %v2319
    %v2576 = vcvt.s32.f32 %v2320
    %v2577 = vcvt.s32.f32 %v2321
    %v2578 = vcvt.s32.f32 %v2322
    %v2579 = vcvt.s32.f32 %v2323
    %v2580 = vcvt.s32.f32 %v2324
    %v2581 = vcvt.s32.f32 %v2325
    %v2582 = vcvt.s32.f32 %v2326
    %v2583 = vcvt.s32.f32 %v2327
    %v2584 = vcvt.s32.f32 %v2328
    %v2585 = vcvt.s32.f32 %v2329
    %v2586 = vcvt.s32.f32 %v2330
    %v2587 = vcvt.s32.f32 %v2331
    %v2588 = vcvt.s32.f32 %v2332
    %v2589 = vcvt.s32.f32 %v2333
    %v2590 = vcvt.s32.f32 %v2334
    %v2591 = vcvt.s32.f32 %v2335
    %v2592 = vcvt.s32.f32 %v2336
    %v2593 = vcvt.s32.f32 %v2337
    %v2594 = vcvt.s32.f32 %v2338
    %v2595 = vcvt.s32.f32 %v2339
    %v2596 = vcvt.s32.f32 %v2340
    %v2597 = vcvt.s32.f32 %v2341
    %v2598 = vcvt.s32.f32 %v2342
    %v2599 = vcvt.s32.f32 %v2343
    %v2600 = vcvt.s32.f32 %v2344
    %v2601 = vcvt.s32.f32 %v2345
    %v2602 = vcvt.s32.f32 %v2346
    %v2603 = vcvt.s32.f32 %v2347
    %v2604 = vcvt.s32.f32 %v2348
    %v2605 = vcvt.s32.f32 %v2349
    %v2606 = vcvt.s32.f32 %v2350
    %v2607 = vcvt.s32.f32 %v2351
    %v2608 = vcvt.s32.f32 %v2352
    %v2609 = vcvt.s32.f32 %v2353
    %v2610 = vcvt.s32.f32 %v2354
    %v2611 = vcvt.s32.f32 %v2355
    %v2612 = vcvt.s32.f32 %v2356
    %v2613 = vcvt.s32.f32 %v2357
    %v2614 = vcvt.s32.f32 %v2358
    %v2615 = vcvt.s32.f32 %v2359
    %v2616 = vcvt.s32.f32 %v2360
    %v2617 = vcvt.s32.f32 %v2361
    %v2618 = vcvt.s32.f32 %v2362
    %v2619 = vcvt.s32.f32 %v2363
    %v2620 = vcvt.s32.f32 %v2364
    %v2621 = vcvt.s32.f32 %v2365
    %v2622 = vcvt.s32.f32 %v2366
    %v2623 = vcvt.s32.f32 %v2367
    %v2624 = vcvt.s32.f32 %v2368
    %v2625 = vcvt.s32.f32 %v2369
    %v2626 = vcvt.s32.f32 %v2370
    %v2627 = vcvt.s32.f32 %v2371
    %v2628 = vcvt.s32.f32 %v2372
    %v2629 = vcvt.s32.f32 %v2373
    %v2630 = vcvt.s32.f32 %v2374
    %v2631 = vcvt.s32.f32 %v2375
    %v2632 = vcvt.s32.f32 %v2376
    %v2633 = vcvt.s32.f32 %v2377
    %v2634 = vcvt.s32.f32 %v2378
    %v2635 = vcvt.s32.f32 %v2379
    %v2636 = vcvt.s32.f32 %v2380
    %v2637 = vcvt.s32.f32 %v2381
    %v2638 = vcvt.s32.f32 %v2382
    %v2639 = vcvt.s32.f32 %v2383
    %v2640 = vcvt.s32.f32 %v2384
    %v2641 = vcvt.s32.f32 %v2385
    %v2642 = vcvt.s32.f32 %v2386
    %v2643 = vcvt.s32.f32 %v2387
    %v2644 = vcvt.s32.f32 %v2388
    %v2645 = vcvt.s32.f32 %v2389
    %v2646 = vcvt.s32.f32 %v2390
    %v2648 = vlaneseq
    %v2649 = vshrl.u32 %v2648, 7
    %v2650 = vsub.s32 0, %v2649
    %v2651 = vrot.slane %v68, %v2650
    %v2653 = vmul.f32 %v2391, %v2651
    %v2654 = vmul.f32 %v2392, %v2651
    %v2655 = vmul.f32 %v2393, %v2651
    %v2656 = vmul.f32 %v2394, %v2651
    %v2657 = vmul.f32 %v2395, %v2651
    %v2658 = vmul.f32 %v2396, %v2651
    %v2659 = vmul.f32 %v2397, %v2651
    %v2660 = vmul.f32 %v2398, %v2651
    %v2661 = vmul.f32 %v2399, %v2651
    %v2662 = vmul.f32 %v2400, %v2651
    %v2663 = vmul.f32 %v2401, %v2651
    %v2664 = vmul.f32 %v2402, %v2651
    %v2665 = vmul.f32 %v2403, %v2651
    %v2666 = vmul.f32 %v2404, %v2651
    %v2667 = vmul.f32 %v2405, %v2651
    %v2668 = vmul.f32 %v2406, %v2651
    %v2669 = vmul.f32 %v2407, %v2651
    %v2670 = vmul.f32 %v2408, %v2651
    %v2671 = vmul.f32 %v2409, %v2651
    %v2672 = vmul.f32 %v2410, %v2651
    %v2673 = vmul.f32 %v2411, %v2651
    %v2674 = vmul.f32 %v2412, %v2651
    %v2675 = vmul.f32 %v2413, %v2651
    %v2676 = vmul.f32 %v2414, %v2651
    %v2677 = vmul.f32 %v2415, %v2651
    %v2678 = vmul.f32 %v2416, %v2651
    %v2679 = vmul.f32 %v2417, %v2651
    %v2680 = vmul.f32 %v2418, %v2651
    %v2681 = vmul.f32 %v2419, %v2651
    %v2682 = vmul.f32 %v2420, %v2651
    %v2683 = vmul.f32 %v2421, %v2651
    %v2684 = vmul.f32 %v2422, %v2651
    %v2685 = vmul.f32 %v2423, %v2651
    %v2686 = vmul.f32 %v2424, %v2651
    %v2687 = vmul.f32 %v2425, %v2651
    %v2688 = vmul.f32 %v2426, %v2651
    %v2689 = vmul.f32 %v2427, %v2651
    %v2690 = vmul.f32 %v2428, %v2651
    %v2691 = vmul.f32 %v2429, %v2651
    %v2692 = vmul.f32 %v2430, %v2651
    %v2693 = vmul.f32 %v2431, %v2651
    %v2694 = vmul.f32 %v2432, %v2651
    %v2695 = vmul.f32 %v2433, %v2651
    %v2696 = vmul.f32 %v2434, %v2651
    %v2697 = vmul.f32 %v2435, %v2651
    %v2698 = vmul.f32 %v2436, %v2651
    %v2699 = vmul.f32 %v2437, %v2651
    %v2700 = vmul.f32 %v2438, %v2651
    %v2701 = vmul.f32 %v2439, %v2651
    %v2702 = vmul.f32 %v2440, %v2651
    %v2703 = vmul.f32 %v2441, %v2651
    %v2704 = vmul.f32 %v2442, %v2651
    %v2705 = vmul.f32 %v2443, %v2651
    %v2706 = vmul.f32 %v2444, %v2651
    %v2707 = vmul.f32 %v2445, %v2651
    %v2708 = vmul.f32 %v2446, %v2651
    %v2709 = vmul.f32 %v2447, %v2651
    %v2710 = vmul.f32 %v2448, %v2651
    %v2711 = vmul.f32 %v2449, %v2651
    %v2712 = vmul.f32 %v2450, %v2651
    %v2713 = vmul.f32 %v2451, %v2651
    %v2714 = vmul.f32 %v2452, %v2651
    %v2715 = vmul.f32 %v2453, %v2651
    %v2716 = vmul.f32 %v2454, %v2651
    %v2717 = vmul.f32 %v2455, %v2651
    %v2718 = vmul.f32 %v2456, %v2651
    %v2719 = vmul.f32 %v2457, %v2651
    %v2720 = vmul.f32 %v2458, %v2651
    %v2721 = vmul.f32 %v2459, %v2651
    %v2722 = vmul.f32 %v2460, %v2651
    %v2723 = vmul.f32 %v2461, %v2651
    %v2724 = vmul.f32 %v2462, %v2651
    %v2725 = vmul.f32 %v2463, %v2651
    %v2726 = vmul.f32 %v2464, %v2651
    %v2727 = vmul.f32 %v2465, %v2651
    %v2728 = vmul.f32 %v2466, %v2651
    %v2729 = vmul.f32 %v2467, %v2651
    %v2730 = vmul.f32 %v2468, %v2651
    %v2731 = vmul.f32 %v2469, %v2651
    %v2732 = vmul.f32 %v2470, %v2651
    %v2733 = vmul.f32 %v2471, %v2651
    %v2734 = vmul.f32 %v2472, %v2651
    %v2735 = vmul.f32 %v2473, %v2651
    %v2736 = vmul.f32 %v2474, %v2651
    %v2737 = vmul.f32 %v2475, %v2651
    %v2738 = vmul.f32 %v2476, %v2651
    %v2739 = vmul.f32 %v2477, %v2651
    %v2740 = vmul.f32 %v2478, %v2651
    %v2741 = vmul.f32 %v2479, %v2651
    %v2742 = vmul.f32 %v2480, %v2651
    %v2743 = vmul.f32 %v2481, %v2651
    %v2744 = vmul.f32 %v2482, %v2651
    %v2745 = vmul.f32 %v2483, %v2651
    %v2746 = vmul.f32 %v2484, %v2651
    %v2747 = vmul.f32 %v2485, %v2651
    %v2748 = vmul.f32 %v2486, %v2651
    %v2749 = vmul.f32 %v2487, %v2651
    %v2750 = vmul.f32 %v2488, %v2651
    %v2751 = vmul.f32 %v2489, %v2651
    %v2752 = vmul.f32 %v2490, %v2651
    %v2753 = vmul.f32 %v2491, %v2651
    %v2754 = vmul.f32 %v2492, %v2651
    %v2755 = vmul.f32 %v2493, %v2651
    %v2756 = vmul.f32 %v2494, %v2651
    %v2757 = vmul.f32 %v2495, %v2651
    %v2758 = vmul.f32 %v2496, %v2651
    %v2759 = vmul.f32 %v2497, %v2651
    %v2760 = vmul.f32 %v2498, %v2651
    %v2761 = vmul.f32 %v2499, %v2651
    %v2762 = vmul.f32 %v2500, %v2651
    %v2763 = vmul.f32 %v2501, %v2651
    %v2764 = vmul.f32 %v2502, %v2651
    %v2765 = vmul.f32 %v2503, %v2651
    %v2766 = vmul.f32 %v2504, %v2651
    %v2767 = vmul.f32 %v2505, %v2651
    %v2768 = vmul.f32 %v2506, %v2651
    %v2769 = vmul.f32 %v2507, %v2651
    %v2770 = vmul.f32 %v2508, %v2651
    %v2771 = vmul.f32 %v2509, %v2651
    %v2772 = vmul.f32 %v2510, %v2651
    %v2773 = vmul.f32 %v2511, %v2651
    %v2774 = vmul.f32 %v2512, %v2651
    %v2775 = vmul.f32 %v2513, %v2651
    %v2776 = vmul.f32 %v2514, %v2651
    %v2777 = vmul.f32 %v2515, %v2651
    %v2778 = vmul.f32 %v2516, %v2651
    %v2779 = vmul.f32 %v2517, %v2651
    %v2780 = vmul.f32 %v2518, %v2651
    %v2781 = vmul.f32 %v2519, %v2651
    %v2782 = vmul.f32 %v2520, %v2651
    %v2783 = vmul.f32 %v2521, %v2651
    %v2784 = vmul.f32 %v2522, %v2651
    %v2785 = vmul.f32 %v2523, %v2651
    %v2786 = vmul.f32 %v2524, %v2651
    %v2787 = vmul.f32 %v2525, %v2651
    %v2788 = vmul.f32 %v2526, %v2651
    %v2789 = vmul.f32 %v2527, %v2651
    %v2790 = vmul.f32 %v2528, %v2651
    %v2791 = vmul.f32 %v2529, %v2651
    %v2792 = vmul.f32 %v2530, %v2651
    %v2793 = vmul.f32 %v2531, %v2651
    %v2794 = vmul.f32 %v2532, %v2651
    %v2795 = vmul.f32 %v2533, %v2651
    %v2796 = vmul.f32 %v2534, %v2651
    %v2797 = vmul.f32 %v2535, %v2651
    %v2798 = vmul.f32 %v2536, %v2651
    %v2799 = vmul.f32 %v2537, %v2651
    %v2800 = vmul.f32 %v2538, %v2651
    %v2801 = vmul.f32 %v2539, %v2651
    %v2802 = vmul.f32 %v2540, %v2651
    %v2803 = vmul.f32 %v2541, %v2651
    %v2804 = vmul.f32 %v2542, %v2651
    %v2805 = vmul.f32 %v2543, %v2651
    %v2806 = vmul.f32 %v2544, %v2651
    %v2807 = vmul.f32 %v2545, %v2651
    %v2808 = vmul.f32 %v2546, %v2651
    %v2809 = vmul.f32 %v2547, %v2651
    %v2810 = vmul.f32 %v2548, %v2651
    %v2811 = vmul.f32 %v2549, %v2651
    %v2812 = vmul.f32 %v2550, %v2651
    %v2813 = vmul.f32 %v2551, %v2651
    %v2814 = vmul.f32 %v2552, %v2651
    %v2815 = vmul.f32 %v2553, %v2651
    %v2816 = vmul.f32 %v2554, %v2651
    %v2817 = vmul.f32 %v2555, %v2651
    %v2818 = vmul.f32 %v2556, %v2651
    %v2819 = vmul.f32 %v2557, %v2651
    %v2820 = vmul.f32 %v2558, %v2651
    %v2821 = vmul.f32 %v2559, %v2651
    %v2822 = vmul.f32 %v2560, %v2651
    %v2823 = vmul.f32 %v2561, %v2651
    %v2824 = vmul.f32 %v2562, %v2651
    %v2825 = vmul.f32 %v2563, %v2651
    %v2826 = vmul.f32 %v2564, %v2651
    %v2827 = vmul.f32 %v2565, %v2651
    %v2828 = vmul.f32 %v2566, %v2651
    %v2829 = vmul.f32 %v2567, %v2651
    %v2830 = vmul.f32 %v2568, %v2651
    %v2831 = vmul.f32 %v2569, %v2651
    %v2832 = vmul.f32 %v2570, %v2651
    %v2833 = vmul.f32 %v2571, %v2651
    %v2834 = vmul.f32 %v2572, %v2651
    %v2835 = vmul.f32 %v2573, %v2651
    %v2836 = vmul.f32 %v2574, %v2651
    %v2837 = vmul.f32 %v2575, %v2651
    %v2838 = vmul.f32 %v2576, %v2651
    %v2839 = vmul.f32 %v2577, %v2651
    %v2840 = vmul.f32 %v2578, %v2651
    %v2841 = vmul.f32 %v2579, %v2651
    %v2842 = vmul.f32 %v2580, %v2651
    %v2843 = vmul.f32 %v2581, %v2651
    %v2844 = vmul.f32 %v2582, %v2651
    %v2845 = vmul.f32 %v2583, %v2651
    %v2846 = vmul.f32 %v2584, %v2651
    %v2847 = vmul.f32 %v2585, %v2651
    %v2848 = vmul.f32 %v2586, %v2651
    %v2849 = vmul.f32 %v2587, %v2651
    %v2850 = vmul.f32 %v2588, %v2651
    %v2851 = vmul.f32 %v2589, %v2651
    %v2852 = vmul.f32 %v2590, %v2651
    %v2853 = vmul.f32 %v2591, %v2651
    %v2854 = vmul.f32 %v2592, %v2651
    %v2855 = vmul.f32 %v2593, %v2651
    %v2856 = vmul.f32 %v2594, %v2651
    %v2857 = vmul.f32 %v2595, %v2651
    %v2858 = vmul.f32 %v2596, %v2651
    %v2859 = vmul.f32 %v2597, %v2651
    %v2860 = vmul.f32 %v2598, %v2651
    %v2861 = vmul.f32 %v2599, %v2651
    %v2862 = vmul.f32 %v2600, %v2651
    %v2863 = vmul.f32 %v2601, %v2651
    %v2864 = vmul.f32 %v2602, %v2651
    %v2865 = vmul.f32 %v2603, %v2651
    %v2866 = vmul.f32 %v2604, %v2651
    %v2867 = vmul.f32 %v2605, %v2651
    %v2868 = vmul.f32 %v2606, %v2651
    %v2869 = vmul.f32 %v2607, %v2651
    %v2870 = vmul.f32 %v2608, %v2651
    %v2871 = vmul.f32 %v2609, %v2651
    %v2872 = vmul.f32 %v2610, %v2651
    %v2873 = vmul.f32 %v2611, %v2651
    %v2874 = vmul.f32 %v2612, %v2651
    %v2875 = vmul.f32 %v2613, %v2651
    %v2876 = vmul.f32 %v2614, %v2651
    %v2877 = vmul.f32 %v2615, %v2651
    %v2878 = vmul.f32 %v2616, %v2651
    %v2879 = vmul.f32 %v2617, %v2651
    %v2880 = vmul.f32 %v2618, %v2651
    %v2881 = vmul.f32 %v2619, %v2651
    %v2882 = vmul.f32 %v2620, %v2651
    %v2883 = vmul.f32 %v2621, %v2651
    %v2884 = vmul.f32 %v2622, %v2651
    %v2885 = vmul.f32 %v2623, %v2651
    %v2886 = vmul.f32 %v2624, %v2651
    %v2887 = vmul.f32 %v2625, %v2651
    %v2888 = vmul.f32 %v2626, %v2651
    %v2889 = vmul.f32 %v2627, %v2651
    %v2890 = vmul.f32 %v2628, %v2651
    %v2891 = vmul.f32 %v2629, %v2651
    %v2892 = vmul.f32 %v2630, %v2651
    %v2893 = vmul.f32 %v2631, %v2651
    %v2894 = vmul.f32 %v2632, %v2651
    %v2895 = vmul.f32 %v2633, %v2651
    %v2896 = vmul.f32 %v2634, %v2651
    %v2897 = vmul.f32 %v2635, %v2651
    %v2898 = vmul.f32 %v2636, %v2651
    %v2899 = vmul.f32 %v2637, %v2651
    %v2900 = vmul.f32 %v2638, %v2651
    %v2901 = vmul.f32 %v2639, %v2651
    %v2902 = vmul.f32 %v2640, %v2651
    %v2903 = vmul.f32 %v2641, %v2651
    %v2904 = vmul.f32 %v2642, %v2651
    %v2905 = vmul.f32 %v2643, %v2651
    %v2906 = vmul.f32 %v2644, %v2651
    %v2907 = vmul.f32 %v2645, %v2651
    %v2908 = vmul.f32 %v2646, %v2651
    %v2909 = vpack.c.bf16 %v2654, %v2653
    %v2910 = vpack.c.bf16 %v2656, %v2655
    %v2911 = vpack.c.bf16 %v2658, %v2657
    %v2912 = vpack.c.bf16 %v2660, %v2659
    %v2913 = vpack.c.bf16 %v2662, %v2661
    %v2914 = vpack.c.bf16 %v2664, %v2663
    %v2915 = vpack.c.bf16 %v2666, %v2665
    %v2916 = vpack.c.bf16 %v2668, %v2667
    %v2917 = vpack.c.bf16 %v2670, %v2669
    %v2918 = vpack.c.bf16 %v2672, %v2671
    %v2919 = vpack.c.bf16 %v2674, %v2673
    %v2920 = vpack.c.bf16 %v2676, %v2675
    %v2921 = vpack.c.bf16 %v2678, %v2677
    %v2922 = vpack.c.bf16 %v2680, %v2679
    %v2923 = vpack.c.bf16 %v2682, %v2681
    %v2924 = vpack.c.bf16 %v2684, %v2683
    %v2925 = vpack.c.bf16 %v2686, %v2685
    %v2926 = vpack.c.bf16 %v2688, %v2687
    %v2927 = vpack.c.bf16 %v2690, %v2689
    %v2928 = vpack.c.bf16 %v2692, %v2691
    %v2929 = vpack.c.bf16 %v2694, %v2693
    %v2930 = vpack.c.bf16 %v2696, %v2695
    %v2931 = vpack.c.bf16 %v2698, %v2697
    %v2932 = vpack.c.bf16 %v2700, %v2699
    %v2933 = vpack.c.bf16 %v2702, %v2701
    %v2934 = vpack.c.bf16 %v2704, %v2703
    %v2935 = vpack.c.bf16 %v2706, %v2705
    %v2936 = vpack.c.bf16 %v2708, %v2707
    %v2937 = vpack.c.bf16 %v2710, %v2709
    %v2938 = vpack.c.bf16 %v2712, %v2711
    %v2939 = vpack.c.bf16 %v2714, %v2713
    %v2940 = vpack.c.bf16 %v2716, %v2715
    %v2941 = vpack.c.bf16 %v2718, %v2717
    %v2942 = vpack.c.bf16 %v2720, %v2719
    %v2943 = vpack.c.bf16 %v2722, %v2721
    %v2944 = vpack.c.bf16 %v2724, %v2723
    %v2945 = vpack.c.bf16 %v2726, %v2725
    %v2946 = vpack.c.bf16 %v2728, %v2727
    %v2947 = vpack.c.bf16 %v2730, %v2729
    %v2948 = vpack.c.bf16 %v2732, %v2731
    %v2949 = vpack.c.bf16 %v2734, %v2733
    %v2950 = vpack.c.bf16 %v2736, %v2735
    %v2951 = vpack.c.bf16 %v2738, %v2737
    %v2952 = vpack.c.bf16 %v2740, %v2739
    %v2953 = vpack.c.bf16 %v2742, %v2741
    %v2954 = vpack.c.bf16 %v2744, %v2743
    %v2955 = vpack.c.bf16 %v2746, %v2745
    %v2956 = vpack.c.bf16 %v2748, %v2747
    %v2957 = vpack.c.bf16 %v2750, %v2749
    %v2958 = vpack.c.bf16 %v2752, %v2751
    %v2959 = vpack.c.bf16 %v2754, %v2753
    %v2960 = vpack.c.bf16 %v2756, %v2755
    %v2961 = vpack.c.bf16 %v2758, %v2757
    %v2962 = vpack.c.bf16 %v2760, %v2759
    %v2963 = vpack.c.bf16 %v2762, %v2761
    %v2964 = vpack.c.bf16 %v2764, %v2763
    %v2965 = vpack.c.bf16 %v2766, %v2765
    %v2966 = vpack.c.bf16 %v2768, %v2767
    %v2967 = vpack.c.bf16 %v2770, %v2769
    %v2968 = vpack.c.bf16 %v2772, %v2771
    %v2969 = vpack.c.bf16 %v2774, %v2773
    %v2970 = vpack.c.bf16 %v2776, %v2775
    %v2971 = vpack.c.bf16 %v2778, %v2777
    %v2972 = vpack.c.bf16 %v2780, %v2779
    %v2973 = vpack.c.bf16 %v2782, %v2781
    %v2974 = vpack.c.bf16 %v2784, %v2783
    %v2975 = vpack.c.bf16 %v2786, %v2785
    %v2976 = vpack.c.bf16 %v2788, %v2787
    %v2977 = vpack.c.bf16 %v2790, %v2789
    %v2978 = vpack.c.bf16 %v2792, %v2791
    %v2979 = vpack.c.bf16 %v2794, %v2793
    %v2980 = vpack.c.bf16 %v2796, %v2795
    %v2981 = vpack.c.bf16 %v2798, %v2797
    %v2982 = vpack.c.bf16 %v2800, %v2799
    %v2983 = vpack.c.bf16 %v2802, %v2801
    %v2984 = vpack.c.bf16 %v2804, %v2803
    %v2985 = vpack.c.bf16 %v2806, %v2805
    %v2986 = vpack.c.bf16 %v2808, %v2807
    %v2987 = vpack.c.bf16 %v2810, %v2809
    %v2988 = vpack.c.bf16 %v2812, %v2811
    %v2989 = vpack.c.bf16 %v2814, %v2813
    %v2990 = vpack.c.bf16 %v2816, %v2815
    %v2991 = vpack.c.bf16 %v2818, %v2817
    %v2992 = vpack.c.bf16 %v2820, %v2819
    %v2993 = vpack.c.bf16 %v2822, %v2821
    %v2994 = vpack.c.bf16 %v2824, %v2823
    %v2995 = vpack.c.bf16 %v2826, %v2825
    %v2996 = vpack.c.bf16 %v2828, %v2827
    %v2997 = vpack.c.bf16 %v2830, %v2829
    %v2998 = vpack.c.bf16 %v2832, %v2831
    %v2999 = vpack.c.bf16 %v2834, %v2833
    %v3000 = vpack.c.bf16 %v2836, %v2835
    %v3001 = vpack.c.bf16 %v2838, %v2837
    %v3002 = vpack.c.bf16 %v2840, %v2839
    %v3003 = vpack.c.bf16 %v2842, %v2841
    %v3004 = vpack.c.bf16 %v2844, %v2843
    %v3005 = vpack.c.bf16 %v2846, %v2845
    %v3006 = vpack.c.bf16 %v2848, %v2847
    %v3007 = vpack.c.bf16 %v2850, %v2849
    %v3008 = vpack.c.bf16 %v2852, %v2851
    %v3009 = vpack.c.bf16 %v2854, %v2853
    %v3010 = vpack.c.bf16 %v2856, %v2855
    %v3011 = vpack.c.bf16 %v2858, %v2857
    %v3012 = vpack.c.bf16 %v2860, %v2859
    %v3013 = vpack.c.bf16 %v2862, %v2861
    %v3014 = vpack.c.bf16 %v2864, %v2863
    %v3015 = vpack.c.bf16 %v2866, %v2865
    %v3016 = vpack.c.bf16 %v2868, %v2867
    %v3017 = vpack.c.bf16 %v2870, %v2869
    %v3018 = vpack.c.bf16 %v2872, %v2871
    %v3019 = vpack.c.bf16 %v2874, %v2873
    %v3020 = vpack.c.bf16 %v2876, %v2875
    %v3021 = vpack.c.bf16 %v2878, %v2877
    %v3022 = vpack.c.bf16 %v2880, %v2879
    %v3023 = vpack.c.bf16 %v2882, %v2881
    %v3024 = vpack.c.bf16 %v2884, %v2883
    %v3025 = vpack.c.bf16 %v2886, %v2885
    %v3026 = vpack.c.bf16 %v2888, %v2887
    %v3027 = vpack.c.bf16 %v2890, %v2889
    %v3028 = vpack.c.bf16 %v2892, %v2891
    %v3029 = vpack.c.bf16 %v2894, %v2893
    %v3030 = vpack.c.bf16 %v2896, %v2895
    %v3031 = vpack.c.bf16 %v2898, %v2897
    %v3032 = vpack.c.bf16 %v2900, %v2899
    %v3033 = vpack.c.bf16 %v2902, %v2901
    %v3034 = vpack.c.bf16 %v2904, %v2903
    %v3035 = vpack.c.bf16 %v2906, %v2905
    %v3036 = vpack.c.bf16 %v2908, %v2907
    %v3037 = vld [vmem:[%s0] sm:$0x1f]
    %v3038 = vld [vmem:[%s1] sm:$0xf]
    %v3039 = vld [vmem:[%s1 + $0x4] sm:$0xf]
    %v3040 = vld [vmem:[#allocation2] sm:$0xff]
    %v3041 = vld [vmem:[#allocation2 + $0x8] sm:$0xff]
    %v3042 = vld [vmem:[#allocation2 + $0x10] sm:$0xff]
    %v3043 = vld [vmem:[#allocation2 + $0x18] sm:$0xff]
    %v3044 = vld [vmem:[#allocation2 + $0x20] sm:$0xff]
    %v3045 = vld [vmem:[#allocation2 + $0x28] sm:$0xff]
    %v3046 = vld [vmem:[#allocation2 + $0x30] sm:$0xff]
    %v3047 = vld [vmem:[#allocation2 + $0x38] sm:$0xff]
    %v3048 = vld [vmem:[#allocation2 + $0x40] sm:$0xff]
    %v3049 = vld [vmem:[#allocation2 + $0x48] sm:$0xff]
    %v3050 = vld [vmem:[#allocation2 + $0x50] sm:$0xff]
    %v3051 = vld [vmem:[#allocation2 + $0x58] sm:$0xff]
    %v3052 = vld [vmem:[#allocation2 + $0x60] sm:$0xff]
    %v3053 = vld [vmem:[#allocation2 + $0x68] sm:$0xff]
    %v3054 = vld [vmem:[#allocation2 + $0x70] sm:$0xff]
    %v3055 = vld [vmem:[#allocation2 + $0x78] sm:$0xff]
    %v3056 = vld [vmem:[%s5] sm:$0x1]
    %v3057 = vld [vmem:[%s5 + $0x1] sm:$0x3]
    %v3058 = vld [vmem:[%s5 + $0x3] sm:$0xff]
    %v3059 = vld [vmem:[%s5 + $0xb] sm:$0xff]
    %v3060 = vld [vmem:[%s5 + $0x13] sm:$0x1]
    %v3061 = vpack.c.bf16 %v3037, %v3037
    %v3063 = vlaneseq
    %v3064 = vshrl.u32 %v3063, 7
    %v3065 = vsub.s32 0, %v3064
    %v3066 = vrot.slane %v3056, %v3065
    %v3070 = vunpack.c.l.b16 %v3038
    %v3071 = vunpack.c.l.b16 %v3039
    %v3072 = vpack.c.b16 %v3071, %v3070
    %vm3073 = vcmask 121856
    %v3075 = vsel %vm3073, %v3061, 0
    %vm3077 = vcmask 1046528
    %vm3078 = vcmask 1047552
    %v3079 = vsel %vm3077, 4294967295, 65535
    %v3080 = vsel %vm3078, %v3079, 0
    %v3082 = vand.u32 %v3072, %v3080
    %3084 = vmatprep.subr.bf16.mxu0 0
    %3085 = vmatpush1.bf16.msra.mxu0 %v3082
    %3086 = vmatprep.subr.bf16.mxu0 0
    %3087 = vmatpush1.bf16.msra.mxu0 0
    %3088 = vmatprep.subr.bf16.mxu0 0
    %3089 = vmatpush1.bf16.msra.mxu0 0
    %3090 = vmatprep.subr.bf16.mxu0 0
    %3091 = vmatpush1.bf16.msra.mxu0 0
    %3092 = vmatprep.subr.bf16.mxu0 0
    %3093 = vmatpush1.bf16.msra.mxu0 0
    %3094 = vmatprep.subr.bf16.mxu0 0
    %3095 = vmatpush1.bf16.msra.mxu0 0
    %3096 = vmatprep.subr.bf16.mxu0 0
    %3097 = vmatpush1.bf16.msra.mxu0 0
    %3098 = vmatprep.subr.bf16.mxu0 0
    %3099 = vmatpush1.bf16.msra.mxu0 0
    %3100 = vmatprep.subr.bf16.mxu0 0
    %3101 = vmatpush1.bf16.msra.mxu0 0
    %3102 = vmatprep.subr.bf16.mxu0 0
    %3103 = vmatpush1.bf16.msra.mxu0 0
    %3104 = vmatprep.subr.bf16.mxu0 0
    %3105 = vmatpush1.bf16.msra.mxu0 0
    %3106 = vmatprep.subr.bf16.mxu0 0
    %3107 = vmatpush1.bf16.msra.mxu0 0
    %3108 = vmatprep.subr.bf16.mxu0 0
    %3109 = vmatpush1.bf16.msra.mxu0 0
    %3110 = vmatprep.subr.bf16.mxu0 0
    %3111 = vmatpush1.bf16.msra.mxu0 0
    %3112 = vmatprep.subr.bf16.mxu0 0
    %3113 = vmatpush1.bf16.msra.mxu0 0
    %3114 = vmatprep.subr.bf16.mxu0 0
    %3115 = vmatpush1.bf16.msra.mxu0 0
    %3116 = vmatprep.mubr.bf16.mxu0 0
    %3117 = vmatmul.mubr.bf16.gmra.mrb[0].mxu0 %v3075
    %v3118 = vpop.f32.mrb[0].mxu0
    %v3119 = vadd.f32 %v3066, %v3118
    %v3120 = vpop.f32.mrb[0].mxu0
    %v3121 = vpop.f32.mrb[0].mxu0
    %v3122 = vpop.f32.mrb[0].mxu0
    %3123 = vdwg.mxu0
    %v3124 = vmax.f32 %v3119, 0.0
    %v3125 = vpack.c.bf16 %v3124, %v3124
    %v3127 = vlaneseq
    %v3128 = vshrl.u32 %v3127, 7
    %v3129 = vsub.s32 0, %v3128
    %v3130 = vrot.slane %v3057, %v3129
    %v3131 = vlaneseq
    %v3132 = vshrl.u32 %v3131, 7
    %v3133 = vsub.s32 1, %v3132
    %v3134 = vrot.slane %v3057, %v3133
    %v3153 = vunpack.c.l.b16 %v3040
    %v3154 = vunpack.c.h.b16 %v3040
    %v3155 = vunpack.c.l.b16 %v3041
    %v3156 = vunpack.c.h.b16 %v3041
    %v3157 = vunpack.c.l.b16 %v3042
    %v3158 = vunpack.c.h.b16 %v3042
    %v3159 = vunpack.c.l.b16 %v3043
    %v3160 = vunpack.c.h.b16 %v3043
    %v3161 = vunpack.c.l.b16 %v3044
    %v3162 = vunpack.c.h.b16 %v3044
    %v3163 = vunpack.c.l.b16 %v3045
    %v3164 = vunpack.c.h.b16 %v3045
    %v3165 = vunpack.c.l.b16 %v3046
    %v3166 = vunpack.c.h.b16 %v3046
    %v3167 = vunpack.c.l.b16 %v3047
    %v3168 = vunpack.c.h.b16 %v3047
    %v3169 = vunpack.c.l.b16 %v3048
    %v3170 = vunpack.c.h.b16 %v3048
    %v3171 = vunpack.c.l.b16 %v3049
    %v3172 = vunpack.c.h.b16 %v3049
    %v3173 = vunpack.c.l.b16 %v3050
    %v3174 = vunpack.c.h.b16 %v3050
    %v3175 = vunpack.c.l.b16 %v3051
    %v3176 = vunpack.c.h.b16 %v3051
    %v3177 = vunpack.c.l.b16 %v3052
    %v3178 = vunpack.c.h.b16 %v3052
    %v3179 = vunpack.c.l.b16 %v3053
    %v3180 = vunpack.c.h.b16 %v3053
    %v3181 = vunpack.c.l.b16 %v3054
    %v3182 = vunpack.c.h.b16 %v3054
    %v3183 = vunpack.c.l.b16 %v3055
    %v3184 = vunpack.c.h.b16 %v3055
    %v3185 = vpack.c.b16 %v3155, %v3153
    %v3186 = vpack.c.b16 %v3156, %v3154
    %v3187 = vpack.c.b16 %v3159, %v3157
    %v3188 = vpack.c.b16 %v3160, %v3158
    %v3189 = vpack.c.b16 %v3163, %v3161
    %v3190 = vpack.c.b16 %v3164, %v3162
    %v3191 = vpack.c.b16 %v3167, %v3165
    %v3192 = vpack.c.b16 %v3168, %v3166
    %v3193 = vpack.c.b16 %v3171, %v3169
    %v3194 = vpack.c.b16 %v3172, %v3170
    %v3195 = vpack.c.b16 %v3175, %v3173
    %v3196 = vpack.c.b16 %v3176, %v3174
    %v3197 = vpack.c.b16 %v3179, %v3177
    %v3198 = vpack.c.b16 %v3180, %v3178
    %v3199 = vpack.c.b16 %v3183, %v3181
    %v3200 = vpack.c.b16 %v3184, %v3182
    %3217 = vmatprep.subr.bf16.mxu0 %v3186
    %3218 = vmatpush1.bf16.msra.mxu0 %v3185
    %3219 = vmatprep.subr.bf16.mxu0 %v3188
    %3220 = vmatpush1.bf16.msra.mxu0 %v3187
    %3221 = vmatprep.subr.bf16.mxu0 %v3190
    %3222 = vmatpush1.bf16.msra.mxu0 %v3189
    %3223 = vmatprep.subr.bf16.mxu0 %v3192
    %3224 = vmatpush1.bf16.msra.mxu0 %v3191
    %3225 = vmatprep.subr.bf16.mxu0 %v3194
    %3226 = vmatpush1.bf16.msra.mxu0 %v3193
    %3227 = vmatprep.subr.bf16.mxu0 %v3196
    %3228 = vmatpush1.bf16.msra.mxu0 %v3195
    %3229 = vmatprep.subr.bf16.mxu0 %v3198
    %3230 = vmatpush1.bf16.msra.mxu0 %v3197
    %3231 = vmatprep.subr.bf16.mxu0 %v3200
    %3232 = vmatpush1.bf16.msra.mxu0 %v3199
    %3233 = vmatprep.subr.bf16.mxu0 0
    %3234 = vmatpush1.bf16.msra.mxu0 0
    %3235 = vmatprep.subr.bf16.mxu0 0
    %3236 = vmatpush1.bf16.msra.mxu0 0
    %3237 = vmatprep.subr.bf16.mxu0 0
    %3238 = vmatpush1.bf16.msra.mxu0 0
    %3239 = vmatprep.subr.bf16.mxu0 0
    %3240 = vmatpush1.bf16.msra.mxu0 0
    %3241 = vmatprep.subr.bf16.mxu0 0
    %3242 = vmatpush1.bf16.msra.mxu0 0
    %3243 = vmatprep.subr.bf16.mxu0 0
    %3244 = vmatpush1.bf16.msra.mxu0 0
    %3245 = vmatprep.subr.bf16.mxu0 0
    %3246 = vmatpush1.bf16.msra.mxu0 0
    %3247 = vmatprep.subr.bf16.mxu0 0
    %3248 = vmatpush1.bf16.msra.mxu0 0
    %3249 = vmatprep.mubr.bf16.mxu0 0
    %3250 = vmatmul.mubr.bf16.gmra.mrb[0].mxu0 %v3125
    %v3251 = vpop.f32.mrb[0].mxu0
    %v3252 = vadd.f32 %v3130, %v3251
    %v3253 = vpop.f32.mrb[0].mxu0
    %v3254 = vadd.f32 %v3134, %v3253
    %v3255 = vpop.f32.mrb[0].mxu0
    %v3256 = vpop.f32.mrb[0].mxu0
    %3257 = vdwg.mxu0
    %v3258 = vmax.f32 %v3252, 0.0
    %v3259 = vmax.f32 %v3254, 0.0
    %v3260 = vpack.c.bf16 %v3258, %v3258
    %v3261 = vpack.c.bf16 %v3259, %v3259
    %v3264 = vlaneseq
    %v3265 = vshrl.u32 %v3264, 7
    %v3266 = vsub.s32 0, %v3265
    %v3267 = vrot.slane %v3058, %v3266
    %v3268 = vlaneseq
    %v3269 = vshrl.u32 %v3268, 7
    %v3270 = vsub.s32 1, %v3269
    %v3271 = vrot.slane %v3058, %v3270
    %v3272 = vlaneseq
    %v3273 = vshrl.u32 %v3272, 7
    %v3274 = vsub.s32 2, %v3273
    %v3275 = vrot.slane %v3058, %v3274
    %v3276 = vlaneseq
    %v3277 = vshrl.u32 %v3276, 7
    %v3278 = vsub.s32 3, %v3277
    %v3279 = vrot.slane %v3058, %v3278
    %v3280 = vlaneseq
    %v3281 = vshrl.u32 %v3280, 7
    %v3282 = vsub.s32 4, %v3281
    %v3283 = vrot.slane %v3058, %v3282
    %v3284 = vlaneseq
    %v3285 = vshrl.u32 %v3284, 7
    %v3286 = vsub.s32 5, %v3285
    %v3287 = vrot.slane %v3058, %v3286
    %v3288 = vlaneseq
    %v3289 = vshrl.u32 %v3288, 7
    %v3290 = vsub.s32 6, %v3289
    %v3291 = vrot.slane %v3058, %v3290
    %v3292 = vlaneseq
    %v3293 = vshrl.u32 %v3292, 7
    %v3294 = vsub.s32 7, %v3293
    %v3295 = vrot.slane %v3058, %v3294
    %v3296 = vlaneseq
    %v3297 = vshrl.u32 %v3296, 7
    %v3298 = vsub.s32 0, %v3297
    %v3299 = vrot.slane %v3059, %v3298
    %v3300 = vlaneseq
    %v3301 = vshrl.u32 %v3300, 7
    %v3302 = vsub.s32 1, %v3301
    %v3303 = vrot.slane %v3059, %v3302
    %v3304 = vlaneseq
    %v3305 = vshrl.u32 %v3304, 7
    %v3306 = vsub.s32 2, %v3305
    %v3307 = vrot.slane %v3059, %v3306
    %v3308 = vlaneseq
    %v3309 = vshrl.u32 %v3308, 7
    %v3310 = vsub.s32 3, %v3309
    %v3311 = vrot.slane %v3059, %v3310
    %v3312 = vlaneseq
    %v3313 = vshrl.u32 %v3312, 7
    %v3314 = vsub.s32 4, %v3313
    %v3315 = vrot.slane %v3059, %v3314
    %v3316 = vlaneseq
    %v3317 = vshrl.u32 %v3316, 7
    %v3318 = vsub.s32 5, %v3317
    %v3319 = vrot.slane %v3059, %v3318
    %v3320 = vlaneseq
    %v3321 = vshrl.u32 %v3320, 7
    %v3322 = vsub.s32 6, %v3321
    %v3323 = vrot.slane %v3059, %v3322
    %v3324 = vlaneseq
    %v3325 = vshrl.u32 %v3324, 7
    %v3326 = vsub.s32 7, %v3325
    %v3327 = vrot.slane %v3059, %v3326
    %3344 = vmatprep.subr.bf16.mxu0 %v1816
    %3345 = vmatpush1.bf16.msra.mxu0 %v1815
    %3346 = vmatprep.subr.bf16.mxu0 %v1832
    %3347 = vmatpush1.bf16.msra.mxu0 %v1831
    %3348 = vmatprep.subr.bf16.mxu0 %v1848
    %3349 = vmatpush1.bf16.msra.mxu0 %v1847
    %3350 = vmatprep.subr.bf16.mxu0 %v1864
    %3351 = vmatpush1.bf16.msra.mxu0 %v1863
    %3352 = vmatprep.subr.bf16.mxu0 %v1880
    %3353 = vmatpush1.bf16.msra.mxu0 %v1879
    %3354 = vmatprep.subr.bf16.mxu0 %v1896
    %3355 = vmatpush1.bf16.msra.mxu0 %v1895
    %3356 = vmatprep.subr.bf16.mxu0 %v1912
    %3357 = vmatpush1.bf16.msra.mxu0 %v1911
    %3358 = vmatprep.subr.bf16.mxu0 %v1928
    %3359 = vmatpush1.bf16.msra.mxu0 %v1927
    %3360 = vmatprep.subr.bf16.mxu0 %v1944
    %3361 = vmatpush1.bf16.msra.mxu0 %v1943
    %3362 = vmatprep.subr.bf16.mxu0 %v1960
    %3363 = vmatpush1.bf16.msra.mxu0 %v1959
    %3364 = vmatprep.subr.bf16.mxu0 %v1976
    %3365 = vmatpush1.bf16.msra.mxu0 %v1975
    %3366 = vmatprep.subr.bf16.mxu0 %v1992
    %3367 = vmatpush1.bf16.msra.mxu0 %v1991
    %3368 = vmatprep.subr.bf16.mxu0 %v2008
    %3369 = vmatpush1.bf16.msra.mxu0 %v2007
    %3370 = vmatprep.subr.bf16.mxu0 %v2024
    %3371 = vmatpush1.bf16.msra.mxu0 %v2023
    %3372 = vmatprep.subr.bf16.mxu0 %v2040
    %3373 = vmatpush1.bf16.msra.mxu0 %v2039
    %3374 = vmatprep.subr.bf16.mxu0 %v2056
    %3375 = vmatpush1.bf16.msra.mxu0 %v2055
    %3376 = vmatprep.mubr.bf16.mxu0 %v3261
    %3377 = vmatmul.mubr.bf16.gmra.mrb[0].mxu0 %v3260
    %v3378 = vpop.f32.mrb[0].mxu0
    %v3379 = vadd.f32 %v3267, %v3378
    %v3380 = vpop.f32.mrb[0].mxu0
    %v3381 = vadd.f32 %v3271, %v3380
    %v3382 = vpop.f32.mrb[0].mxu0
    %v3383 = vpop.f32.mrb[0].mxu0
    %3384 = vdwg.mxu0
    %3385 = vmatprep.subr.bf16.mxu0 %v1818
    %3386 = vmatpush1.bf16.msra.mxu0 %v1817
    %3387 = vmatprep.subr.bf16.mxu0 %v1834
    %3388 = vmatpush1.bf16.msra.mxu0 %v1833
    %3389 = vmatprep.subr.bf16.mxu0 %v1850
    %3390 = vmatpush1.bf16.msra.mxu0 %v1849
    %3391 = vmatprep.subr.bf16.mxu0 %v1866
    %3392 = vmatpush1.bf16.msra.mxu0 %v1865
    %3393 = vmatprep.subr.bf16.mxu0 %v1882
    %3394 = vmatpush1.bf16.msra.mxu0 %v1881
    %3395 = vmatprep.subr.bf16.mxu0 %v1898
    %3396 = vmatpush1.bf16.msra.mxu0 %v1897
    %3397 = vmatprep.subr.bf16.mxu0 %v1914
    %3398 = vmatpush1.bf16.msra.mxu0 %v1913
    %3399 = vmatprep.subr.bf16.mxu0 %v1930
    %3400 = vmatpush1.bf16.msra.mxu0 %v1929
    %3401 = vmatprep.subr.bf16.mxu0 %v1946
    %3402 = vmatpush1.bf16.msra.mxu0 %v1945
    %3403 = vmatprep.subr.bf16.mxu0 %v1962
    %3404 = vmatpush1.bf16.msra.mxu0 %v1961
    %3405 = vmatprep.subr.bf16.mxu0 %v1978
    %3406 = vmatpush1.bf16.msra.mxu0 %v1977
    %3407 = vmatprep.subr.bf16.mxu0 %v1994
    %3408 = vmatpush1.bf16.msra.mxu0 %v1993
    %3409 = vmatprep.subr.bf16.mxu0 %v2010
    %3410 = vmatpush1.bf16.msra.mxu0 %v2009
    %3411 = vmatprep.subr.bf16.mxu0 %v2026
    %3412 = vmatpush1.bf16.msra.mxu0 %v2025
    %3413 = vmatprep.subr.bf16.mxu0 %v2042
    %3414 = vmatpush1.bf16.msra.mxu0 %v2041
    %3415 = vmatprep.subr.bf16.mxu0 %v2058
    %3416 = vmatpush1.bf16.msra.mxu0 %v2057
    %3417 = vmatprep.mubr.bf16.mxu0 %v3261
    %3418 = vmatmul.mubr.bf16.gmra.mrb[0].mxu0 %v3260
    %v3419 = vpop.f32.mrb[0].mxu0
    %v3420 = vadd.f32 %v3275, %v3419
    %v3421 = vpop.f32.mrb[0].mxu0
    %v3422 = vadd.f32 %v3279, %v3421
    %v3423 = vpop.f32.mrb[0].mxu0
    %v3424 = vpop.f32.mrb[0].mxu0
    %3425 = vdwg.mxu0
    %3426 = vmatprep.subr.bf16.mxu0 %v1820
    %3427 = vmatpush1.bf16.msra.mxu0 %v1819
    %3428 = vmatprep.subr.bf16.mxu0 %v1836
    %3429 = vmatpush1.bf16.msra.mxu0 %v1835
    %3430 = vmatprep.subr.bf16.mxu0 %v1852
    %3431 = vmatpush1.bf16.msra.mxu0 %v1851
    %3432 = vmatprep.subr.bf16.mxu0 %v1868
    %3433 = vmatpush1.bf16.msra.mxu0 %v1867
    %3434 = vmatprep.subr.bf16.mxu0 %v1884
    %3435 = vmatpush1.bf16.msra.mxu0 %v1883
    %3436 = vmatprep.subr.bf16.mxu0 %v1900
    %3437 = vmatpush1.bf16.msra.mxu0 %v1899
    %3438 = vmatprep.subr.bf16.mxu0 %v1916
    %3439 = vmatpush1.bf16.msra.mxu0 %v1915
    %3440 = vmatprep.subr.bf16.mxu0 %v1932
    %3441 = vmatpush1.bf16.msra.mxu0 %v1931
    %3442 = vmatprep.subr.bf16.mxu0 %v1948
    %3443 = vmatpush1.bf16.msra.mxu0 %v1947
    %3444 = vmatprep.subr.bf16.mxu0 %v1964
    %3445 = vmatpush1.bf16.msra.mxu0 %v1963
    %3446 = vmatprep.subr.bf16.mxu0 %v1980
    %3447 = vmatpush1.bf16.msra.mxu0 %v1979
    %3448 = vmatprep.subr.bf16.mxu0 %v1996
    %3449 = vmatpush1.bf16.msra.mxu0 %v1995
    %3450 = vmatprep.subr.bf16.mxu0 %v2012
    %3451 = vmatpush1.bf16.msra.mxu0 %v2011
    %3452 = vmatprep.subr.bf16.mxu0 %v2028
    %3453 = vmatpush1.bf16.msra.mxu0 %v2027
    %3454 = vmatprep.subr.bf16.mxu0 %v2044
    %3455 = vmatpush1.bf16.msra.mxu0 %v2043
    %3456 = vmatprep.subr.bf16.mxu0 %v2060
    %3457 = vmatpush1.bf16.msra.mxu0 %v2059
    %3458 = vmatprep.mubr.bf16.mxu0 %v3261
    %3459 = vmatmul.mubr.bf16.gmra.mrb[0].mxu0 %v3260
    %v3460 = vpop.f32.mrb[0].mxu0
    %v3461 = vadd.f32 %v3283, %v3460
    %v3462 = vpop.f32.mrb[0].mxu0
    %v3463 = vadd.f32 %v3287, %v3462
    %v3464 = vpop.f32.mrb[0].mxu0
    %v3465 = vpop.f32.mrb[0].mxu0
    %3466 = vdwg.mxu0
    %3467 = vmatprep.subr.bf16.mxu0 %v1822
    %3468 = vmatpush1.bf16.msra.mxu0 %v1821
    %3469 = vmatprep.subr.bf16.mxu0 %v1838
    %3470 = vmatpush1.bf16.msra.mxu0 %v1837
    %3471 = vmatprep.subr.bf16.mxu0 %v1854
    %3472 = vmatpush1.bf16.msra.mxu0 %v1853
    %3473 = vmatprep.subr.bf16.mxu0 %v1870
    %3474 = vmatpush1.bf16.msra.mxu0 %v1869
    %3475 = vmatprep.subr.bf16.mxu0 %v1886
    %3476 = vmatpush1.bf16.msra.mxu0 %v1885
    %3477 = vmatprep.subr.bf16.mxu0 %v1902
    %3478 = vmatpush1.bf16.msra.mxu0 %v1901
    %3479 = vmatprep.subr.bf16.mxu0 %v1918
    %3480 = vmatpush1.bf16.msra.mxu0 %v1917
    %3481 = vmatprep.subr.bf16.mxu0 %v1934
    %3482 = vmatpush1.bf16.msra.mxu0 %v1933
    %3483 = vmatprep.subr.bf16.mxu0 %v1950
    %3484 = vmatpush1.bf16.msra.mxu0 %v1949
    %3485 = vmatprep.subr.bf16.mxu0 %v1966
    %3486 = vmatpush1.bf16.msra.mxu0 %v1965
    %3487 = vmatprep.subr.bf16.mxu0 %v1982
    %3488 = vmatpush1.bf16.msra.mxu0 %v1981
    %3489 = vmatprep.subr.bf16.mxu0 %v1998
    %3490 = vmatpush1.bf16.msra.mxu0 %v1997
    %3491 = vmatprep.subr.bf16.mxu0 %v2014
    %3492 = vmatpush1.bf16.msra.mxu0 %v2013
    %3493 = vmatprep.subr.bf16.mxu0 %v2030
    %3494 = vmatpush1.bf16.msra.mxu0 %v2029
    %3495 = vmatprep.subr.bf16.mxu0 %v2046
    %3496 = vmatpush1.bf16.msra.mxu0 %v2045
    %3497 = vmatprep.subr.bf16.mxu0 %v2062
    %3498 = vmatpush1.bf16.msra.mxu0 %v2061
    %3499 = vmatprep.mubr.bf16.mxu0 %v3261
    %3500 = vmatmul.mubr.bf16.gmra.mrb[0].mxu0 %v3260
    %v3501 = vpop.f32.mrb[0].mxu0
    %v3502 = vadd.f32 %v3291, %v3501
    %v3503 = vpop.f32.mrb[0].mxu0
    %v3504 = vadd.f32 %v3295, %v3503
    %v3505 = vpop.f32.mrb[0].mxu0
    %v3506 = vpop.f32.mrb[0].mxu0
    %3507 = vdwg.mxu0
    %3508 = vmatprep.subr.bf16.mxu0 %v1824
    %3509 = vmatpush1.bf16.msra.mxu0 %v1823
    %3510 = vmatprep.subr.bf16.mxu0 %v1840
    %3511 = vmatpush1.bf16.msra.mxu0 %v1839
    %3512 = vmatprep.subr.bf16.mxu0 %v1856
    %3513 = vmatpush1.bf16.msra.mxu0 %v1855
    %3514 = vmatprep.subr.bf16.mxu0 %v1872
    %3515 = vmatpush1.bf16.msra.mxu0 %v1871
    %3516 = vmatprep.subr.bf16.mxu0 %v1888
    %3517 = vmatpush1.bf16.msra.mxu0 %v1887
    %3518 = vmatprep.subr.bf16.mxu0 %v1904
    %3519 = vmatpush1.bf16.msra.mxu0 %v1903
    %3520 = vmatprep.subr.bf16.mxu0 %v1920
    %3521 = vmatpush1.bf16.msra.mxu0 %v1919
    %3522 = vmatprep.subr.bf16.mxu0 %v1936
    %3523 = vmatpush1.bf16.msra.mxu0 %v1935
    %3524 = vmatprep.subr.bf16.mxu0 %v1952
    %3525 = vmatpush1.bf16.msra.mxu0 %v1951
    %3526 = vmatprep.subr.bf16.mxu0 %v1968
    %3527 = vmatpush1.bf16.msra.mxu0 %v1967
    %3528 = vmatprep.subr.bf16.mxu0 %v1984
    %3529 = vmatpush1.bf16.msra.mxu0 %v1983
    %3530 = vmatprep.subr.bf16.mxu0 %v2000
    %3531 = vmatpush1.bf16.msra.mxu0 %v1999
    %3532 = vmatprep.subr.bf16.mxu0 %v2016
    %3533 = vmatpush1.bf16.msra.mxu0 %v2015
    %3534 = vmatprep.subr.bf16.mxu0 %v2032
    %3535 = vmatpush1.bf16.msra.mxu0 %v2031
    %3536 = vmatprep.subr.bf16.mxu0 %v2048
    %3537 = vmatpush1.bf16.msra.mxu0 %v2047
    %3538 = vmatprep.subr.bf16.mxu0 %v2064
    %3539 = vmatpush1.bf16.msra.mxu0 %v2063
    %3540 = vmatprep.mubr.bf16.mxu0 %v3261
    %3541 = vmatmul.mubr.bf16.gmra.mrb[0].mxu0 %v3260
    %v3542 = vpop.f32.mrb[0].mxu0
    %v3543 = vadd.f32 %v3299, %v3542
    %v3544 = vpop.f32.mrb[0].mxu0
    %v3545 = vadd.f32 %v3303, %v3544
    %v3546 = vpop.f32.mrb[0].mxu0
    %v3547 = vpop.f32.mrb[0].mxu0
    %3548 = vdwg.mxu0
    %3549 = vmatprep.subr.bf16.mxu0 %v1826
    %3550 = vmatpush1.bf16.msra.mxu0 %v1825
    %3551 = vmatprep.subr.bf16.mxu0 %v1842
    %3552 = vmatpush1.bf16.msra.mxu0 %v1841
    %3553 = vmatprep.subr.bf16.mxu0 %v1858
    %3554 = vmatpush1.bf16.msra.mxu0 %v1857
    %3555 = vmatprep.subr.bf16.mxu0 %v1874
    %3556 = vmatpush1.bf16.msra.mxu0 %v1873
    %3557 = vmatprep.subr.bf16.mxu0 %v1890
    %3558 = vmatpush1.bf16.msra.mxu0 %v1889
    %3559 = vmatprep.subr.bf16.mxu0 %v1906
    %3560 = vmatpush1.bf16.msra.mxu0 %v1905
    %3561 = vmatprep.subr.bf16.mxu0 %v1922
    %3562 = vmatpush1.bf16.msra.mxu0 %v1921
    %3563 = vmatprep.subr.bf16.mxu0 %v1938
    %3564 = vmatpush1.bf16.msra.mxu0 %v1937
    %3565 = vmatprep.subr.bf16.mxu0 %v1954
    %3566 = vmatpush1.bf16.msra.mxu0 %v1953
    %3567 = vmatprep.subr.bf16.mxu0 %v1970
    %3568 = vmatpush1.bf16.msra.mxu0 %v1969
    %3569 = vmatprep.subr.bf16.mxu0 %v1986
    %3570 = vmatpush1.bf16.msra.mxu0 %v1985
    %3571 = vmatprep.subr.bf16.mxu0 %v2002
    %3572 = vmatpush1.bf16.msra.mxu0 %v2001
    %3573 = vmatprep.subr.bf16.mxu0 %v2018
    %3574 = vmatpush1.bf16.msra.mxu0 %v2017
    %3575 = vmatprep.subr.bf16.mxu0 %v2034
    %3576 = vmatpush1.bf16.msra.mxu0 %v2033
    %3577 = vmatprep.subr.bf16.mxu0 %v2050
    %3578 = vmatpush1.bf16.msra.mxu0 %v2049
    %3579 = vmatprep.subr.bf16.mxu0 %v2066
    %3580 = vmatpush1.bf16.msra.mxu0 %v2065
    %3581 = vmatprep.mubr.bf16.mxu0 %v3261
    %3582 = vmatmul.mubr.bf16.gmra.mrb[0].mxu0 %v3260
    %v3583 = vpop.f32.mrb[0].mxu0
    %v3584 = vadd.f32 %v3307, %v3583
    %v3585 = vpop.f32.mrb[0].mxu0
    %v3586 = vadd.f32 %v3311, %v3585
    %v3587 = vpop.f32.mrb[0].mxu0
    %v3588 = vpop.f32.mrb[0].mxu0
    %3589 = vdwg.mxu0
    %3590 = vmatprep.subr.bf16.mxu0 %v1828
    %3591 = vmatpush1.bf16.msra.mxu0 %v1827
    %3592 = vmatprep.subr.bf16.mxu0 %v1844
    %3593 = vmatpush1.bf16.msra.mxu0 %v1843
    %3594 = vmatprep.subr.bf16.mxu0 %v1860
    %3595 = vmatpush1.bf16.msra.mxu0 %v1859
    %3596 = vmatprep.subr.bf16.mxu0 %v1876
    %3597 = vmatpush1.bf16.msra.mxu0 %v1875
    %3598 = vmatprep.subr.bf16.mxu0 %v1892
    %3599 = vmatpush1.bf16.msra.mxu0 %v1891
    %3600 = vmatprep.subr.bf16.mxu0 %v1908
    %3601 = vmatpush1.bf16.msra.mxu0 %v1907
    %3602 = vmatprep.subr.bf16.mxu0 %v1924
    %3603 = vmatpush1.bf16.msra.mxu0 %v1923
    %3604 = vmatprep.subr.bf16.mxu0 %v1940
    %3605 = vmatpush1.bf16.msra.mxu0 %v1939
    %3606 = vmatprep.subr.bf16.mxu0 %v1956
    %3607 = vmatpush1.bf16.msra.mxu0 %v1955
    %3608 = vmatprep.subr.bf16.mxu0 %v1972
    %3609 = vmatpush1.bf16.msra.mxu0 %v1971
    %3610 = vmatprep.subr.bf16.mxu0 %v1988
    %3611 = vmatpush1.bf16.msra.mxu0 %v1987
    %3612 = vmatprep.subr.bf16.mxu0 %v2004
    %3613 = vmatpush1.bf16.msra.mxu0 %v2003
    %3614 = vmatprep.subr.bf16.mxu0 %v2020
    %3615 = vmatpush1.bf16.msra.mxu0 %v2019
    %3616 = vmatprep.subr.bf16.mxu0 %v2036
    %3617 = vmatpush1.bf16.msra.mxu0 %v2035
    %3618 = vmatprep.subr.bf16.mxu0 %v2052
    %3619 = vmatpush1.bf16.msra.mxu0 %v2051
    %3620 = vmatprep.subr.bf16.mxu0 %v2068
    %3621 = vmatpush1.bf16.msra.mxu0 %v2067
    %3622 = vmatprep.mubr.bf16.mxu0 %v3261
    %3623 = vmatmul.mubr.bf16.gmra.mrb[0].mxu0 %v3260
    %v3624 = vpop.f32.mrb[0].mxu0
    %v3625 = vadd.f32 %v3315, %v3624
    %v3626 = vpop.f32.mrb[0].mxu0
    %v3627 = vadd.f32 %v3319, %v3626
    %v3628 = vpop.f32.mrb[0].mxu0
    %v3629 = vpop.f32.mrb[0].mxu0
    %3630 = vdwg.mxu0
    %3631 = vmatprep.subr.bf16.mxu0 %v1830
    %3632 = vmatpush1.bf16.msra.mxu0 %v1829
    %3633 = vmatprep.subr.bf16.mxu0 %v1846
    %3634 = vmatpush1.bf16.msra.mxu0 %v1845
    %3635 = vmatprep.subr.bf16.mxu0 %v1862
    %3636 = vmatpush1.bf16.msra.mxu0 %v1861
    %3637 = vmatprep.subr.bf16.mxu0 %v1878
    %3638 = vmatpush1.bf16.msra.mxu0 %v1877
    %3639 = vmatprep.subr.bf16.mxu0 %v1894
    %3640 = vmatpush1.bf16.msra.mxu0 %v1893
    %3641 = vmatprep.subr.bf16.mxu0 %v1910
    %3642 = vmatpush1.bf16.msra.mxu0 %v1909
    %3643 = vmatprep.subr.bf16.mxu0 %v1926
    %3644 = vmatpush1.bf16.msra.mxu0 %v1925
    %3645 = vmatprep.subr.bf16.mxu0 %v1942
    %3646 = vmatpush1.bf16.msra.mxu0 %v1941
    %3647 = vmatprep.subr.bf16.mxu0 %v1958
    %3648 = vmatpush1.bf16.msra.mxu0 %v1957
    %3649 = vmatprep.subr.bf16.mxu0 %v1974
    %3650 = vmatpush1.bf16.msra.mxu0 %v1973
    %3651 = vmatprep.subr.bf16.mxu0 %v1990
    %3652 = vmatpush1.bf16.msra.mxu0 %v1989
    %3653 = vmatprep.subr.bf16.mxu0 %v2006
    %3654 = vmatpush1.bf16.msra.mxu0 %v2005
    %3655 = vmatprep.subr.bf16.mxu0 %v2022
    %3656 = vmatpush1.bf16.msra.mxu0 %v2021
    %3657 = vmatprep.subr.bf16.mxu0 %v2038
    %3658 = vmatpush1.bf16.msra.mxu0 %v2037
    %3659 = vmatprep.subr.bf16.mxu0 %v2054
    %3660 = vmatpush1.bf16.msra.mxu0 %v2053
    %3661 = vmatprep.subr.bf16.mxu0 %v2070
    %3662 = vmatpush1.bf16.msra.mxu0 %v2069
    %3663 = vmatprep.mubr.bf16.mxu0 %v3261
    %3664 = vmatmul.mubr.bf16.gmra.mrb[0].mxu0 %v3260
    %v3665 = vpop.f32.mrb[0].mxu0
    %v3666 = vadd.f32 %v3323, %v3665
    %v3667 = vpop.f32.mrb[0].mxu0
    %v3668 = vadd.f32 %v3327, %v3667
    %v3669 = vpop.f32.mrb[0].mxu0
    %v3670 = vpop.f32.mrb[0].mxu0
    %3671 = vdwg.mxu0
    %v3672 = vpack.c.bf16 %v3379, %v3379
    %v3673 = vpack.c.bf16 %v3381, %v3381
    %v3674 = vpack.c.bf16 %v3420, %v3420
    %v3675 = vpack.c.bf16 %v3422, %v3422
    %v3676 = vpack.c.bf16 %v3461, %v3461
    %v3677 = vpack.c.bf16 %v3463, %v3463
    %v3678 = vpack.c.bf16 %v3502, %v3502
    %v3679 = vpack.c.bf16 %v3504, %v3504
    %v3680 = vpack.c.bf16 %v3543, %v3543
    %v3681 = vpack.c.bf16 %v3545, %v3545
    %v3682 = vpack.c.bf16 %v3584, %v3584
    %v3683 = vpack.c.bf16 %v3586, %v3586
    %v3684 = vpack.c.bf16 %v3625, %v3625
    %v3685 = vpack.c.bf16 %v3627, %v3627
    %v3686 = vpack.c.bf16 %v3666, %v3666
    %v3687 = vpack.c.bf16 %v3668, %v3668
    %v3688 = vmax.bf16 %v3672, 0
    %v3689 = vmax.bf16 %v3673, 0
    %v3690 = vmax.bf16 %v3674, 0
    %v3691 = vmax.bf16 %v3675, 0
    %v3692 = vmax.bf16 %v3676, 0
    %v3693 = vmax.bf16 %v3677, 0
    %v3694 = vmax.bf16 %v3678, 0
    %v3695 = vmax.bf16 %v3679, 0
    %v3696 = vmax.bf16 %v3680, 0
    %v3697 = vmax.bf16 %v3681, 0
    %v3698 = vmax.bf16 %v3682, 0
    %v3699 = vmax.bf16 %v3683, 0
    %v3700 = vmax.bf16 %v3684, 0
    %v3701 = vmax.bf16 %v3685, 0
    %v3702 = vmax.bf16 %v3686, 0
    %v3703 = vmax.bf16 %v3687, 0
    %v3705 = vlaneseq
    %v3706 = vshrl.u32 %v3705, 7
    %v3707 = vsub.s32 0, %v3706
    %v3708 = vrot.slane %v3060, %v3707
    %3710 = vmatprep.subr.bf16.mxu0 0
    %3711 = vmatpush1.bf16.msra.mxu0 %v2909
    %3712 = vmatprep.subr.bf16.mxu0 0
    %3713 = vmatpush1.bf16.msra.mxu0 %v2910
    %3714 = vmatprep.subr.bf16.mxu0 0
    %3715 = vmatpush1.bf16.msra.mxu0 %v2911
    %3716 = vmatprep.subr.bf16.mxu0 0
    %3717 = vmatpush1.bf16.msra.mxu0 %v2912
    %3718 = vmatprep.subr.bf16.mxu0 0
    %3719 = vmatpush1.bf16.msra.mxu0 %v2913
    %3720 = vmatprep.subr.bf16.mxu0 0
    %3721 = vmatpush1.bf16.msra.mxu0 %v2914
    %3722 = vmatprep.subr.bf16.mxu0 0
    %3723 = vmatpush1.bf16.msra.mxu0 %v2915
    %3724 = vmatprep.subr.bf16.mxu0 0
    %3725 = vmatpush1.bf16.msra.mxu0 %v2916
    %3726 = vmatprep.subr.bf16.mxu0 0
    %3727 = vmatpush1.bf16.msra.mxu0 %v2917
    %3728 = vmatprep.subr.bf16.mxu0 0
    %3729 = vmatpush1.bf16.msra.mxu0 %v2918
    %3730 = vmatprep.subr.bf16.mxu0 0
    %3731 = vmatpush1.bf16.msra.mxu0 %v2919
    %3732 = vmatprep.subr.bf16.mxu0 0
    %3733 = vmatpush1.bf16.msra.mxu0 %v2920
    %3734 = vmatprep.subr.bf16.mxu0 0
    %3735 = vmatpush1.bf16.msra.mxu0 %v2921
    %3736 = vmatprep.subr.bf16.mxu0 0
    %3737 = vmatpush1.bf16.msra.mxu0 %v2922
    %3738 = vmatprep.subr.bf16.mxu0 0
    %3739 = vmatpush1.bf16.msra.mxu0 %v2923
    %3740 = vmatprep.subr.bf16.mxu0 0
    %3741 = vmatpush1.bf16.msra.mxu0 %v2924
    %3742 = vmatprep.mubr.bf16.mxu0 %v3689
    %3743 = vmatmul.mubr.bf16.gmra.mrb[0].mxu0 %v3688
    %v3744 = vpop.f32.mrb[0].mxu0
    %v3745 = vadd.f32 %v3708, %v3744
    %v3746 = vpop.f32.mrb[0].mxu0
    %v3747 = vpop.f32.mrb[0].mxu0
    %v3748 = vpop.f32.mrb[0].mxu0
    %3749 = vdwg.mxu0
    %3750 = vmatprep.subr.bf16.mxu0 0
    %3751 = vmatpush1.bf16.msra.mxu0 %v2925
    %3752 = vmatprep.subr.bf16.mxu0 0
    %3753 = vmatpush1.bf16.msra.mxu0 %v2926
    %3754 = vmatprep.subr.bf16.mxu0 0
    %3755 = vmatpush1.bf16.msra.mxu0 %v2927
    %3756 = vmatprep.subr.bf16.mxu0 0
    %3757 = vmatpush1.bf16.msra.mxu0 %v2928
    %3758 = vmatprep.subr.bf16.mxu0 0
    %3759 = vmatpush1.bf16.msra.mxu0 %v2929
    %3760 = vmatprep.subr.bf16.mxu0 0
    %3761 = vmatpush1.bf16.msra.mxu0 %v2930
    %3762 = vmatprep.subr.bf16.mxu0 0
    %3763 = vmatpush1.bf16.msra.mxu0 %v2931
    %3764 = vmatprep.subr.bf16.mxu0 0
    %3765 = vmatpush1.bf16.msra.mxu0 %v2932
    %3766 = vmatprep.subr.bf16.mxu0 0
    %3767 = vmatpush1.bf16.msra.mxu0 %v2933
    %3768 = vmatprep.subr.bf16.mxu0 0
    %3769 = vmatpush1.bf16.msra.mxu0 %v2934
    %3770 = vmatprep.subr.bf16.mxu0 0
    %3771 = vmatpush1.bf16.msra.mxu0 %v2935
    %3772 = vmatprep.subr.bf16.mxu0 0
    %3773 = vmatpush1.bf16.msra.mxu0 %v2936
    %3774 = vmatprep.subr.bf16.mxu0 0
    %3775 = vmatpush1.bf16.msra.mxu0 %v2937
    %3776 = vmatprep.subr.bf16.mxu0 0
    %3777 = vmatpush1.bf16.msra.mxu0 %v2938
    %3778 = vmatprep.subr.bf16.mxu0 0
    %3779 = vmatpush1.bf16.msra.mxu0 %v2939
    %3780 = vmatprep.subr.bf16.mxu0 0
    %3781 = vmatpush1.bf16.msra.mxu0 %v2940
    %3782 = vmatprep.mubr.bf16.mxu0 %v3691
    %3783 = vmatmul.mubr.bf16.gmra.mrb[0].mxu0 %v3690
    %v3784 = vpop.f32.mrb[0].mxu0
    %v3785 = vadd.f32 %v3745, %v3784
    %v3786 = vpop.f32.mrb[0].mxu0
    %v3787 = vpop.f32.mrb[0].mxu0
    %v3788 = vpop.f32.mrb[0].mxu0
    %3789 = vdwg.mxu0
    %3790 = vmatprep.subr.bf16.mxu0 0
    %3791 = vmatpush1.bf16.msra.mxu0 %v2941
    %3792 = vmatprep.subr.bf16.mxu0 0
    %3793 = vmatpush1.bf16.msra.mxu0 %v2942
    %3794 = vmatprep.subr.bf16.mxu0 0
    %3795 = vmatpush1.bf16.msra.mxu0 %v2943
    %3796 = vmatprep.subr.bf16.mxu0 0
    %3797 = vmatpush1.bf16.msra.mxu0 %v2944
    %3798 = vmatprep.subr.bf16.mxu0 0
    %3799 = vmatpush1.bf16.msra.mxu0 %v2945
    %3800 = vmatprep.subr.bf16.mxu0 0
    %3801 = vmatpush1.bf16.msra.mxu0 %v2946
    %3802 = vmatprep.subr.bf16.mxu0 0
    %3803 = vmatpush1.bf16.msra.mxu0 %v2947
    %3804 = vmatprep.subr.bf16.mxu0 0
    %3805 = vmatpush1.bf16.msra.mxu0 %v2948
    %3806 = vmatprep.subr.bf16.mxu0 0
    %3807 = vmatpush1.bf16.msra.mxu0 %v2949
    %3808 = vmatprep.subr.bf16.mxu0 0
    %3809 = vmatpush1.bf16.msra.mxu0 %v2950
    %3810 = vmatprep.subr.bf16.mxu0 0
    %3811 = vmatpush1.bf16.msra.mxu0 %v2951
    %3812 = vmatprep.subr.bf16.mxu0 0
    %3813 = vmatpush1.bf16.msra.mxu0 %v2952
    %3814 = vmatprep.subr.bf16.mxu0 0
    %3815 = vmatpush1.bf16.msra.mxu0 %v2953
    %3816 = vmatprep.subr.bf16.mxu0 0
    %3817 = vmatpush1.bf16.msra.mxu0 %v2954
    %3818 = vmatprep.subr.bf16.mxu0 0
    %3819 = vmatpush1.bf16.msra.mxu0 %v2955
    %3820 = vmatprep.subr.bf16.mxu0 0
    %3821 = vmatpush1.bf16.msra.mxu0 %v2956
    %3822 = vmatprep.mubr.bf16.mxu0 %v3693
    %3823 = vmatmul.mubr.bf16.gmra.mrb[0].mxu0 %v3692
    %v3824 = vpop.f32.mrb[0].mxu0
    %v3825 = vadd.f32 %v3785, %v3824
    %v3826 = vpop.f32.mrb[0].mxu0
    %v3827 = vpop.f32.mrb[0].mxu0
    %v3828 = vpop.f32.mrb[0].mxu0
    %3829 = vdwg.mxu0
    %3830 = vmatprep.subr.bf16.mxu0 0
    %3831 = vmatpush1.bf16.msra.mxu0 %v2957
    %3832 = vmatprep.subr.bf16.mxu0 0
    %3833 = vmatpush1.bf16.msra.mxu0 %v2958
    %3834 = vmatprep.subr.bf16.mxu0 0
    %3835 = vmatpush1.bf16.msra.mxu0 %v2959
    %3836 = vmatprep.subr.bf16.mxu0 0
    %3837 = vmatpush1.bf16.msra.mxu0 %v2960
    %3838 = vmatprep.subr.bf16.mxu0 0
    %3839 = vmatpush1.bf16.msra.mxu0 %v2961
    %3840 = vmatprep.subr.bf16.mxu0 0
    %3841 = vmatpush1.bf16.msra.mxu0 %v2962
    %3842 = vmatprep.subr.bf16.mxu0 0
    %3843 = vmatpush1.bf16.msra.mxu0 %v2963
    %3844 = vmatprep.subr.bf16.mxu0 0
    %3845 = vmatpush1.bf16.msra.mxu0 %v2964
    %3846 = vmatprep.subr.bf16.mxu0 0
    %3847 = vmatpush1.bf16.msra.mxu0 %v2965
    %3848 = vmatprep.subr.bf16.mxu0 0
    %3849 = vmatpush1.bf16.msra.mxu0 %v2966
    %3850 = vmatprep.subr.bf16.mxu0 0
    %3851 = vmatpush1.bf16.msra.mxu0 %v2967
    %3852 = vmatprep.subr.bf16.mxu0 0
    %3853 = vmatpush1.bf16.msra.mxu0 %v2968
    %3854 = vmatprep.subr.bf16.mxu0 0
    %3855 = vmatpush1.bf16.msra.mxu0 %v2969
    %3856 = vmatprep.subr.bf16.mxu0 0
    %3857 = vmatpush1.bf16.msra.mxu0 %v2970
    %3858 = vmatprep.subr.bf16.mxu0 0
    %3859 = vmatpush1.bf16.msra.mxu0 %v2971
    %3860 = vmatprep.subr.bf16.mxu0 0
    %3861 = vmatpush1.bf16.msra.mxu0 %v2972
    %3862 = vmatprep.mubr.bf16.mxu0 %v3695
    %3863 = vmatmul.mubr.bf16.gmra.mrb[0].mxu0 %v3694
    %v3864 = vpop.f32.mrb[0].mxu0
    %v3865 = vadd.f32 %v3825, %v3864
    %v3866 = vpop.f32.mrb[0].mxu0
    %v3867 = vpop.f32.mrb[0].mxu0
    %v3868 = vpop.f32.mrb[0].mxu0
    %3869 = vdwg.mxu0
    %3870 = vmatprep.subr.bf16.mxu0 0
    %3871 = vmatpush1.bf16.msra.mxu0 %v2973
    %3872 = vmatprep.subr.bf16.mxu0 0
    %3873 = vmatpush1.bf16.msra.mxu0 %v2974
    %3874 = vmatprep.subr.bf16.mxu0 0
    %3875 = vmatpush1.bf16.msra.mxu0 %v2975
    %3876 = vmatprep.subr.bf16.mxu0 0
    %3877 = vmatpush1.bf16.msra.mxu0 %v2976
    %3878 = vmatprep.subr.bf16.mxu0 0
    %3879 = vmatpush1.bf16.msra.mxu0 %v2977
    %3880 = vmatprep.subr.bf16.mxu0 0
    %3881 = vmatpush1.bf16.msra.mxu0 %v2978
    %3882 = vmatprep.subr.bf16.mxu0 0
    %3883 = vmatpush1.bf16.msra.mxu0 %v2979
    %3884 = vmatprep.subr.bf16.mxu0 0
    %3885 = vmatpush1.bf16.msra.mxu0 %v2980
    %3886 = vmatprep.subr.bf16.mxu0 0
    %3887 = vmatpush1.bf16.msra.mxu0 %v2981
    %3888 = vmatprep.subr.bf16.mxu0 0
    %3889 = vmatpush1.bf16.msra.mxu0 %v2982
    %3890 = vmatprep.subr.bf16.mxu0 0
    %3891 = vmatpush1.bf16.msra.mxu0 %v2983
    %3892 = vmatprep.subr.bf16.mxu0 0
    %3893 = vmatpush1.bf16.msra.mxu0 %v2984
    %3894 = vmatprep.subr.bf16.mxu0 0
    %3895 = vmatpush1.bf16.msra.mxu0 %v2985
    %3896 = vmatprep.subr.bf16.mxu0 0
    %3897 = vmatpush1.bf16.msra.mxu0 %v2986
    %3898 = vmatprep.subr.bf16.mxu0 0
    %3899 = vmatpush1.bf16.msra.mxu0 %v2987
    %3900 = vmatprep.subr.bf16.mxu0 0
    %3901 = vmatpush1.bf16.msra.mxu0 %v2988
    %3902 = vmatprep.mubr.bf16.mxu0 %v3697
    %3903 = vmatmul.mubr.bf16.gmra.mrb[0].mxu0 %v3696
    %v3904 = vpop.f32.mrb[0].mxu0
    %v3905 = vadd.f32 %v3865, %v3904
    %v3906 = vpop.f32.mrb[0].mxu0
    %v3907 = vpop.f32.mrb[0].mxu0
    %v3908 = vpop.f32.mrb[0].mxu0
    %3909 = vdwg.mxu0
    %3910 = vmatprep.subr.bf16.mxu0 0
    %3911 = vmatpush1.bf16.msra.mxu0 %v2989
    %3912 = vmatprep.subr.bf16.mxu0 0
    %3913 = vmatpush1.bf16.msra.mxu0 %v2990
    %3914 = vmatprep.subr.bf16.mxu0 0
    %3915 = vmatpush1.bf16.msra.mxu0 %v2991
    %3916 = vmatprep.subr.bf16.mxu0 0
    %3917 = vmatpush1.bf16.msra.mxu0 %v2992
    %3918 = vmatprep.subr.bf16.mxu0 0
    %3919 = vmatpush1.bf16.msra.mxu0 %v2993
    %3920 = vmatprep.subr.bf16.mxu0 0
    %3921 = vmatpush1.bf16.msra.mxu0 %v2994
    %3922 = vmatprep.subr.bf16.mxu0 0
    %3923 = vmatpush1.bf16.msra.mxu0 %v2995
    %3924 = vmatprep.subr.bf16.mxu0 0
    %3925 = vmatpush1.bf16.msra.mxu0 %v2996
    %3926 = vmatprep.subr.bf16.mxu0 0
    %3927 = vmatpush1.bf16.msra.mxu0 %v2997
    %3928 = vmatprep.subr.bf16.mxu0 0
    %3929 = vmatpush1.bf16.msra.mxu0 %v2998
    %3930 = vmatprep.subr.bf16.mxu0 0
    %3931 = vmatpush1.bf16.msra.mxu0 %v2999
    %3932 = vmatprep.subr.bf16.mxu0 0
    %3933 = vmatpush1.bf16.msra.mxu0 %v3000
    %3934 = vmatprep.subr.bf16.mxu0 0
    %3935 = vmatpush1.bf16.msra.mxu0 %v3001
    %3936 = vmatprep.subr.bf16.mxu0 0
    %3937 = vmatpush1.bf16.msra.mxu0 %v3002
    %3938 = vmatprep.subr.bf16.mxu0 0
    %3939 = vmatpush1.bf16.msra.mxu0 %v3003
    %3940 = vmatprep.subr.bf16.mxu0 0
    %3941 = vmatpush1.bf16.msra.mxu0 %v3004
    %3942 = vmatprep.mubr.bf16.mxu0 %v3699
    %3943 = vmatmul.mubr.bf16.gmra.mrb[0].mxu0 %v3698
    %v3944 = vpop.f32.mrb[0].mxu0
    %v3945 = vadd.f32 %v3905, %v3944
    %v3946 = vpop.f32.mrb[0].mxu0
    %v3947 = vpop.f32.mrb[0].mxu0
    %v3948 = vpop.f32.mrb[0].mxu0
    %3949 = vdwg.mxu0
    %3950 = vmatprep.subr.bf16.mxu0 0
    %3951 = vmatpush1.bf16.msra.mxu0 %v3005
    %3952 = vmatprep.subr.bf16.mxu0 0
    %3953 = vmatpush1.bf16.msra.mxu0 %v3006
    %3954 = vmatprep.subr.bf16.mxu0 0
    %3955 = vmatpush1.bf16.msra.mxu0 %v3007
    %3956 = vmatprep.subr.bf16.mxu0 0
    %3957 = vmatpush1.bf16.msra.mxu0 %v3008
    %3958 = vmatprep.subr.bf16.mxu0 0
    %3959 = vmatpush1.bf16.msra.mxu0 %v3009
    %3960 = vmatprep.subr.bf16.mxu0 0
    %3961 = vmatpush1.bf16.msra.mxu0 %v3010
    %3962 = vmatprep.subr.bf16.mxu0 0
    %3963 = vmatpush1.bf16.msra.mxu0 %v3011
    %3964 = vmatprep.subr.bf16.mxu0 0
    %3965 = vmatpush1.bf16.msra.mxu0 %v3012
    %3966 = vmatprep.subr.bf16.mxu0 0
    %3967 = vmatpush1.bf16.msra.mxu0 %v3013
    %3968 = vmatprep.subr.bf16.mxu0 0
    %3969 = vmatpush1.bf16.msra.mxu0 %v3014
    %3970 = vmatprep.subr.bf16.mxu0 0
    %3971 = vmatpush1.bf16.msra.mxu0 %v3015
    %3972 = vmatprep.subr.bf16.mxu0 0
    %3973 = vmatpush1.bf16.msra.mxu0 %v3016
    %3974 = vmatprep.subr.bf16.mxu0 0
    %3975 = vmatpush1.bf16.msra.mxu0 %v3017
    %3976 = vmatprep.subr.bf16.mxu0 0
    %3977 = vmatpush1.bf16.msra.mxu0 %v3018
    %3978 = vmatprep.subr.bf16.mxu0 0
    %3979 = vmatpush1.bf16.msra.mxu0 %v3019
    %3980 = vmatprep.subr.bf16.mxu0 0
    %3981 = vmatpush1.bf16.msra.mxu0 %v3020
    %3982 = vmatprep.mubr.bf16.mxu0 %v3701
    %3983 = vmatmul.mubr.bf16.gmra.mrb[0].mxu0 %v3700
    %v3984 = vpop.f32.mrb[0].mxu0
    %v3985 = vadd.f32 %v3945, %v3984
    %v3986 = vpop.f32.mrb[0].mxu0
    %v3987 = vpop.f32.mrb[0].mxu0
    %v3988 = vpop.f32.mrb[0].mxu0
    %3989 = vdwg.mxu0
    %3990 = vmatprep.subr.bf16.mxu0 0
    %3991 = vmatpush1.bf16.msra.mxu0 %v3021
    %3992 = vmatprep.subr.bf16.mxu0 0
    %3993 = vmatpush1.bf16.msra.mxu0 %v3022
    %3994 = vmatprep.subr.bf16.mxu0 0
    %3995 = vmatpush1.bf16.msra.mxu0 %v3023
    %3996 = vmatprep.subr.bf16.mxu0 0
    %3997 = vmatpush1.bf16.msra.mxu0 %v3024
    %3998 = vmatprep.subr.bf16.mxu0 0
    %3999 = vmatpush1.bf16.msra.mxu0 %v3025
    %4000 = vmatprep.subr.bf16.mxu0 0
    %4001 = vmatpush1.bf16.msra.mxu0 %v3026
    %4002 = vmatprep.subr.bf16.mxu0 0
    %4003 = vmatpush1.bf16.msra.mxu0 %v3027
    %4004 = vmatprep.subr.bf16.mxu0 0
    %4005 = vmatpush1.bf16.msra.mxu0 %v3028
    %4006 = vmatprep.subr.bf16.mxu0 0
    %4007 = vmatpush1.bf16.msra.mxu0 %v3029
    %4008 = vmatprep.subr.bf16.mxu0 0
    %4009 = vmatpush1.bf16.msra.mxu0 %v3030
    %4010 = vmatprep.subr.bf16.mxu0 0
    %4011 = vmatpush1.bf16.msra.mxu0 %v3031
    %4012 = vmatprep.subr.bf16.mxu0 0
    %4013 = vmatpush1.bf16.msra.mxu0 %v3032
    %4014 = vmatprep.subr.bf16.mxu0 0
    %4015 = vmatpush1.bf16.msra.mxu0 %v3033
    %4016 = vmatprep.subr.bf16.mxu0 0
    %4017 = vmatpush1.bf16.msra.mxu0 %v3034
    %4018 = vmatprep.subr.bf16.mxu0 0
    %4019 = vmatpush1.bf16.msra.mxu0 %v3035
    %4020 = vmatprep.subr.bf16.mxu0 0
    %4021 = vmatpush1.bf16.msra.mxu0 %v3036
    %4022 = vmatprep.mubr.bf16.mxu0 %v3703
    %4023 = vmatmul.mubr.bf16.gmra.mrb[0].mxu0 %v3702
    %v4024 = vpop.f32.mrb[0].mxu0
    %v4025 = vadd.f32 %v3985, %v4024
    %v4026 = vpop.f32.mrb[0].mxu0
    %v4027 = vpop.f32.mrb[0].mxu0
    %v4028 = vpop.f32.mrb[0].mxu0
    %4029 = vdwg.mxu0
    %v4030 = vlaneseq
    %v4031 = vand.u32 %v4030, 127
    %vm4032 = vcmp.lt.s32.totalorder %v4031, 5
    %v4033 = vsel %vm4032, %v4025, -1e+30
    %vm4034 = vcmask 1044480
    %v4035 = vsel %vm4034, %v4033, -inf
    %4036 = vmax.xlane.f32.xlu0 %v4035
    %v4037 = vpop.xlane.xlu0 %4036
    %v4038 = vsub.f32 %v4033, %v4037
    %v4039 = vmul.f32 %v4038, 1.442695
    %v4040 = vpow.pop %v4039
    %v4041 = vsel %vm4034, %v4040, 0.0
    %4042 = vadd.xlane.f32.xlu0 %v4041
    %v4043 = vpop.xlane.xlu0 %4042
    %v4044 = vrcp.pop %v4043
    %v4045 = vmul.f32 %v4040, %v4044
    %4046 = vst [vmem:[#allocation8] sm:$0x1f] %v4045
    // Predicated region
    $region38: #{_ai_forward_impl.1} parent=1 // pred_check
      _
    $region39: #{_ai_forward_impl.1} parent=1 // pred_check_branch
      %4048 = sbr.rel (0) target = $region41
    $region40: #{_ai_forward_impl.1} parent=1 // pred_region
      %s4050 = ssub.s32 128, 128
      %4051 = vsyncadd [#allocation4], %s4050
      %s4053 = sshll.u32 [#allocation8], 4
      %s4054 = int_to_ptr.vmem [resolvable:$true] %s4053
      %4056 = dma.vmem_to_hbm [thread:$0]  %s4054, 128, %s6, [#allocation4]
    $region41: #{_ai_forward_impl.1} parent=1 // pred_fallthru
      _
    // Predicated region
    $region42: #{_ai_forward_impl.1} parent=1 // pred_check
      _
    $region43: #{_ai_forward_impl.1} parent=1 // pred_check_branch
      %4058 = sbr.rel (0) target = $region45
    $region44: #{_ai_forward_impl.1} parent=1 // pred_region
      %4059 = dma.done [#allocation4], 128
    $region45: #{_ai_forward_impl.1} parent=1 // pred_fallthru
      _
    %4060 = vsyncpa [#allocation3], 1
    %4061 = vsyncpa [#allocation6], 1
    %4062 = vsyncpa [#allocation4], 1

</llo_original>
